<compile_context>
chip_gen: v7x
topology: tpu7x:2x2x1
jax: 0.10.0
libtpu: 0.0.40
codegen_flags: <defaults>
</compile_context>

<pallas_src>
import functools

import jax
import jax.numpy as jnp
from jax import lax
from jax.experimental import pallas as pl
from jax.experimental.pallas import tpu as pltpu


# ---------------------------------------------------------------------------
# Helpers
# ---------------------------------------------------------------------------

def _round_up(x, m):
    return (x + m - 1) // m * m


def _cdiv(a, b):
    return (a + b - 1) // b


def _pad2(a, rows, cols):
    """Zero-pad a 2-D array up to (rows, cols)."""
    return jnp.pad(a, ((0, rows - a.shape[0]), (0, cols - a.shape[1])))


def _pick_tm(M, tm):
    """Row-tile size: <=512, multiple of 16, and >=2 tiles when rows permit."""
    if tm is None:
        tm = 512
    tm = max(16, min(tm, _round_up(M, 16)))
    tm = _round_up(tm, 16)
    if M >= 32:  # guarantee at least 2 grid steps for megacore sharding
        tm = min(tm, _round_up(_cdiv(M, 2), 16))
    return tm


# ---------------------------------------------------------------------------
# Pallas kernel: fused (proj-folded) 3-layer MLP, grid = (M tiles, vocab tiles)
# ---------------------------------------------------------------------------

def _fused_mlp_kernel(x_ref, w01_ref, b01_ref, w2_ref, b2_ref,
                      w3_ref, b3_ref, o_ref, h2_ref):
    """Per (row-tile i, vocab-tile j):
        j == 0 : h2 = relu(relu(x@W01 + b01) @ W2 + b2)  -> VMEM scratch
        all j  : o  = h2 @ W3[:, j-tile] + b3[j-tile]
    Matmul inputs are in the weight dtype (bf16 by default); accumulation is
    f32 via preferred_element_type; bias-add and ReLU run in f32 on the VPU.
    """
    @pl.when(pl.program_id(1) == 0)
    def _():
        cdt = w2_ref.dtype
        h = jnp.dot(x_ref[...], w01_ref[...],
                    preferred_element_type=jnp.float32)
        h = jnp.maximum(h + b01_ref[...], 0.0)
        h = jnp.dot(h.astype(cdt), w2_ref[...],
                    preferred_element_type=jnp.float32)
        h = jnp.maximum(h + b2_ref[...], 0.0)
        h2_ref[...] = h.astype(h2_ref.dtype)

    out = jnp.dot(h2_ref[...], w3_ref[...],
                  preferred_element_type=jnp.float32) + b3_ref[...]
    o_ref[...] = out.astype(o_ref.dtype)


# ---------------------------------------------------------------------------
# Wrapper: fused projection + MLP over the flattened feature map
# ---------------------------------------------------------------------------

def fused_proj_mlp_pallas(x_rows, params, *, tm=None, tv_cap=2048,
                          compute_dtype=jnp.bfloat16):
    """x_rows: (M, C_in) rows of the backbone feature map (NHWC-flattened).

    Returns (M, V) f32 logits. Lane dims are padded to multiples of 128
    inside; the result is sliced back only if padding was introduced.
    """
    M, C_in = x_rows.shape
    H1 = params["w1"].shape[1]                # 512
    H2 = params["w2"].shape[1]                # 512
    V = params["w3"].shape[1]                 # vocab_size

    cdt = compute_dtype
    bpe = jnp.dtype(cdt).itemsize

    # --- fold the 1x1 conv projection (no nonlinearity before MLP layer 1)
    #     W01 = proj_w.T @ w1  (C_in, H1) ;  b01 = proj_b @ w1 + b1
    hp = lax.Precision.HIGHEST
    w01 = jnp.dot(params["proj_w"].astype(jnp.float32).T,
                  params["w1"].astype(jnp.float32), precision=hp)
    b01 = (jnp.dot(params["proj_b"].astype(jnp.float32),
                   params["w1"].astype(jnp.float32), precision=hp)
           + params["b1"].astype(jnp.float32))

    # --- lane-dense padding (multiples of 128 on the last dim of each operand)
    Cp = _round_up(C_in, 128)
    H1p = _round_up(H1, 128)
    H2p = _round_up(H2, 128)
    Vp = _round_up(V, 128)

    # --- vocab tiling (innermost "arbitrary" grid axis)
    tv_cap = max(128, _round_up(tv_cap, 128))
    n_v = _cdiv(Vp, tv_cap)
    tv = _round_up(_cdiv(Vp, n_v), 128)
    Vp = n_v * tv

    # --- row tiling (outer "parallel" grid axis)
    tm = _pick_tm(M, tm)
    M_pad = _round_up(M, tm)
    n_m = M_pad // tm

    # --- operand prep (weights in compute dtype, biases in f32)
    x_p = _pad2(x_rows, M_pad, Cp).astype(cdt)
    w01_p = _pad2(w01, Cp, H1p).astype(cdt)
    w2_p = _pad2(params["w2"].astype(jnp.float32), H1p, H2p).astype(cdt)
    w3_p = _pad2(params["w3"].astype(jnp.float32), H2p, Vp).astype(cdt)
    b01_p = _pad2(b01.reshape(1, H1), 1, H1p)
    b2_p = _pad2(params["b2"].reshape(1, H2).astype(jnp.float32), 1, H2p)
    b3_p = _pad2(params["b3"].reshape(1, V).astype(jnp.float32), 1, Vp)

    # --- explicit VMEM budget (single-buffered resident weights, 2x streamed)
    need = bpe * (Cp * H1p + H1p * H2p)          # resident W01, W2 (x1)
    need += 4 * (H1p + H2p + tv)                 # f32 biases
    need += 2 * (bpe * H2p * tv + 4 * tv)        # W3/b3 tiles (x2)
    need += 2 * bpe * tm * Cp                    # x tiles (x2)
    need += 2 * 4 * tm * tv                      # out tiles (x2)
    need += bpe * tm * H2p                       # h2 scratch
    vmem_limit = int(min(max(2 * need, 32 * 1024 * 1024), 64 * 1024 * 1024))

    flops = 2 * M_pad * (Cp * H1p + H1p * H2p + H2p * Vp)
    bytes_accessed = (bpe * (M_pad * Cp + Cp * H1p + H1p * H2p + H2p * Vp)
                      + 4 * (M_pad * Vp + H1p + H2p + Vp))
    cost = pl.CostEstimate(flops=flops, transcendentals=0,
                           bytes_accessed=bytes_accessed)

    # Resident (constant index_map) operands: single-buffered.
    def const_spec(shape):
        return pl.BlockSpec(shape, lambda i, j: (0, 0),
                            pipeline_mode=pl.Buffered(buffer_count=1))

    # W3/b3 walk the vocab axis; single-buffer them only if there is one tile.
    if n_v == 1:
        w3_spec = pl.BlockSpec((H2p, tv), lambda i, j: (0, j),
                               pipeline_mode=pl.Buffered(buffer_count=1))
        b3_spec = pl.BlockSpec((1, tv), lambda i, j: (0, j),
                               pipeline_mode=pl.Buffered(buffer_count=1))
    else:
        w3_spec = pl.BlockSpec((H2p, tv), lambda i, j: (0, j))
        b3_spec = pl.BlockSpec((1, tv), lambda i, j: (0, j))

    out_p = pl.pallas_call(
        _fused_mlp_kernel,
        out_shape=jax.ShapeDtypeStruct((M_pad, Vp), jnp.float32),
        grid=(n_m, n_v),
        in_specs=[
            pl.BlockSpec((tm, Cp), lambda i, j: (i, 0)),   # x row tile
            const_spec((Cp, H1p)),                         # W01 (folded proj+w1)
            const_spec((1, H1p)),                          # b01
            const_spec((H1p, H2p)),                        # W2
            const_spec((1, H2p)),                          # b2
            w3_spec,                                       # W3 vocab tile
            b3_spec,                                       # b3 vocab tile
        ],
        out_specs=pl.BlockSpec((tm, tv), lambda i, j: (i, j)),
        scratch_shapes=[pltpu.VMEM((tm, H2p), cdt)],       # h2, reused over j
        compiler_params=pltpu.CompilerParams(
            dimension_semantics=("parallel", "arbitrary"),
            vmem_limit_bytes=vmem_limit,
        ),
        cost_estimate=cost,
    )(x_p, w01_p, b01_p, w2_p, b2_p, w3_p, b3_p)

    if M_pad == M and Vp == V:
        return out_p                      # no padded-output round trip
    return out_p[:M, :V]


# ---------------------------------------------------------------------------
# TSOM forward (Pallas for input_proj + MLP; backbone/transformer are stubs)
# ---------------------------------------------------------------------------

def tsom_forward(src, params, imgsize, *, tm=None, compute_dtype=jnp.bfloat16):
    """Replicates TSOM.forward starting from the backbone feature map `src`.

    src: (B, C_backbone, Hf, Wf) — last feature map from the backbone.
    # TODO(synk): backbone and transformer are external black-box modules with
    # no definition given; the transformer is stubbed as a spatial-flatten
    # pass-through producing hs (and loss_vae = 0), so input_proj + MLP fuse
    # into one Pallas kernel (and the activation-free projection folds into
    # MLP layer 1). The cancelling (B,S,hid)<->(S,B,hid) permutes are elided.
    """
    B, C_in, Hf, Wf = src.shape
    V = params["w3"].shape[1]

    # h_w = tensor([imgsize, imgsize]).repeat(B, 1).unsqueeze(0)  (kept for fidelity)
    h_w = jnp.tile(jnp.array([imgsize, imgsize], jnp.int32), (B, 1))[None]
    del h_w  # only consumed by the (stubbed) transformer

    # Single NCHW -> NHWC layout change, flattened to (M, C_in) rows.
    M = B * Hf * Wf
    x_rows = jnp.transpose(src, (0, 2, 3, 1)).reshape(M, C_in)

    out_rows = fused_proj_mlp_pallas(x_rows, params, tm=tm,
                                     compute_dtype=compute_dtype)  # (M, V)

    loss_vae = jnp.float32(0.0)
    return out_rows.reshape(B, Hf * Wf, V), loss_vae


# ---------------------------------------------------------------------------
# Deterministic parameter init + pure-JAX reference + smoke test
# ---------------------------------------------------------------------------

def init_params(key, c_backbone, hidden_dim, mlp_hidden, vocab_size):
    ks = jax.random.split(key, 8)
    scale = 0.02
    return {
        # input_proj: Conv2d(c_backbone, hidden_dim, kernel_size=1), weight squeezed
        "proj_w": scale * jax.random.normal(ks[0], (hidden_dim, c_backbone), jnp.float32),
        "proj_b": scale * jax.random.normal(ks[1], (hidden_dim,), jnp.float32),
        # MLP(hidden_dim, 512, vocab_size, 3) — weights stored as (in, out)
        "w1": scale * jax.random.normal(ks[2], (hidden_dim, mlp_hidden), jnp.float32),
        "b1": scale * jax.random.normal(ks[3], (mlp_hidden,), jnp.float32),
        "w2": scale * jax.random.normal(ks[4], (mlp_hidden, mlp_hidden), jnp.float32),
        "b2": scale * jax.random.normal(ks[5], (mlp_hidden,), jnp.float32),
        "w3": scale * jax.random.normal(ks[6], (mlp_hidden, vocab_size), jnp.float32),
        "b3": scale * jax.random.normal(ks[7], (vocab_size,), jnp.float32),
    }


def reference_forward(src, params):
    """Pure-JAX f32 reference (HIGHEST precision matmuls) for correctness."""
    B, C, H, W = src.shape
    hp = lax.Precision.HIGHEST
    x2 = jnp.transpose(src, (0, 2, 3, 1)).reshape(B * H * W, C)
    proj = jnp.dot(x2, params["proj_w"].T, precision=hp) + params["proj_b"]
    h = jnp.maximum(jnp.dot(proj, params["w1"], precision=hp) + params["b1"], 0.0)
    h = jnp.maximum(jnp.dot(h, params["w2"], precision=hp) + params["b2"], 0.0)
    out = jnp.dot(h, params["w3"], precision=hp) + params["b3"]
    return out.reshape(B, H * W, -1)


if __name__ == "__main__":
    # Small shapes consistent with the module:
    B = 2                 # batch
    C_BACKBONE = 4        # backbone.num_channels
    HF = WF = 16          # backbone feature-map spatial size -> M = 512 rows
    HIDDEN = 32           # hidden_dim
    MLP_HIDDEN = 512      # fixed in TSOM.__init__ (MLP(hidden_dim, 512, vocab, 3))
    VOCAB = 16            # vocab_size
    IMGSIZE = 64          # self.imgsize (only feeds h_w / stubbed transformer)

    key = jax.random.PRNGKey(0)
    k_x, k_p = jax.random.split(key)
    src = jax.random.normal(k_x, (B, C_BACKBONE, HF, WF), jnp.float32)
    params = init_params(k_p, C_BACKBONE, HIDDEN, MLP_HIDDEN, VOCAB)

    fwd = jax.jit(functools.partial(tsom_forward, imgsize=IMGSIZE))
    out, loss_vae = fwd(src, params)
    out = jax.block_until_ready(out)

    ref = reference_forward(src, params)
    assert out.shape == (B, HF * WF, VOCAB), out.shape
    # bf16 MXU compute with f32 accumulation vs. f32 reference.
    assert bool(jnp.allclose(out, ref, atol=2e-3, rtol=2e-2)), \
        "mismatch vs JAX reference"

    print("KERNEL_OK")
</pallas_src>

<mosaic_0001>
module attributes {stable_mosaic.version = 11 : i64} {
  func.func @_fused_mlp_kernel(%arg0: i32, %arg1: i32, %arg2: memref<256x128xbf16, #tpu.memory_space<vmem>>, %arg3: memref<128x512xbf16, #tpu.memory_space<vmem>>, %arg4: memref<1x512xf32, #tpu.memory_space<vmem>>, %arg5: memref<512x512xbf16, #tpu.memory_space<vmem>>, %arg6: memref<1x512xf32, #tpu.memory_space<vmem>>, %arg7: memref<512x128xbf16, #tpu.memory_space<vmem>>, %arg8: memref<1x128xf32, #tpu.memory_space<vmem>>, %arg9: memref<256x128xf32, #tpu.memory_space<vmem>>, %arg10: memref<256x512xbf16, #tpu.memory_space<vmem>>) attributes {dimension_semantics = [#tpu.dimension_semantics<parallel>, #tpu.dimension_semantics<arbitrary>], iteration_bounds = array<i64: 2, 1>, scalar_prefetch = 0 : i64, scratch_operands = 1 : i64, tpu.core_type = #tpu.core_type<tc>, window_params = [{transform_indices = @transform_0, window_bounds = array<i64: 256, 128>}, {pipeline_mode = #tpu.pipeline_mode<synchronous>, transform_indices = @transform_1, window_bounds = array<i64: 128, 512>}, {pipeline_mode = #tpu.pipeline_mode<synchronous>, transform_indices = @transform_2, window_bounds = array<i64: 1, 512>}, {pipeline_mode = #tpu.pipeline_mode<synchronous>, transform_indices = @transform_3, window_bounds = array<i64: 512, 512>}, {pipeline_mode = #tpu.pipeline_mode<synchronous>, transform_indices = @transform_4, window_bounds = array<i64: 1, 512>}, {pipeline_mode = #tpu.pipeline_mode<synchronous>, transform_indices = @transform_5, window_bounds = array<i64: 512, 128>}, {pipeline_mode = #tpu.pipeline_mode<synchronous>, transform_indices = @transform_6, window_bounds = array<i64: 1, 128>}, {transform_indices = @transform_7, window_bounds = array<i64: 256, 128>}]} {
    %c0_i32 = arith.constant 0 : i32
    %0 = arith.cmpi eq, %arg1, %c0_i32 : i32
    %1 = arith.extui %0 : i1 to i32
    %c0_i32_0 = arith.constant 0 : i32
    %2 = arith.cmpi ne, %1, %c0_i32_0 : i32
    scf.if %2 {
      %c0_8 = arith.constant 0 : index
      %c0_9 = arith.constant 0 : index
      %10 = vector.load %arg2[%c0_8, %c0_9] : memref<256x128xbf16, #tpu.memory_space<vmem>>, vector<256x128xbf16>
      %c0_10 = arith.constant 0 : index
      %c0_11 = arith.constant 0 : index
      %11 = vector.load %arg3[%c0_10, %c0_11] : memref<128x512xbf16, #tpu.memory_space<vmem>>, vector<128x512xbf16>
      %cst_12 = arith.constant dense<0.000000e+00> : vector<256x512xf32>
      %12 = tpu.matmul %10, %11, %cst_12 {dimension_numbers = #tpu.dot_dimension_numbers<[1], [0], [0], [1], [0, 0, 1, 1], [], []>} : vector<256x128xbf16>, vector<128x512xbf16>, vector<256x512xf32> -> vector<256x512xf32>
      %c0_13 = arith.constant 0 : index
      %c0_14 = arith.constant 0 : index
      %13 = vector.load %arg4[%c0_13, %c0_14] : memref<1x512xf32, #tpu.memory_space<vmem>>, vector<1x512xf32>
      %14 = vector.broadcast %13 : vector<1x512xf32> to vector<256x512xf32>
      %15 = arith.addf %12, %14 : vector<256x512xf32>
      %cst_15 = arith.constant 0.000000e+00 : f32
      %16 = vector.broadcast %cst_15 : f32 to vector<256x512xf32>
      %17 = arith.maximumf %15, %16 : vector<256x512xf32>
      %18 = arith.truncf %17 : vector<256x512xf32> to vector<256x512xbf16>
      %c0_16 = arith.constant 0 : index
      %c0_17 = arith.constant 0 : index
      %19 = vector.load %arg5[%c0_16, %c0_17] : memref<512x512xbf16, #tpu.memory_space<vmem>>, vector<512x512xbf16>
      %cst_18 = arith.constant dense<0.000000e+00> : vector<256x512xf32>
      %20 = tpu.matmul %18, %19, %cst_18 {dimension_numbers = #tpu.dot_dimension_numbers<[1], [0], [0], [1], [0, 0, 1, 1], [], []>} : vector<256x512xbf16>, vector<512x512xbf16>, vector<256x512xf32> -> vector<256x512xf32>
      %c0_19 = arith.constant 0 : index
      %c0_20 = arith.constant 0 : index
      %21 = vector.load %arg6[%c0_19, %c0_20] : memref<1x512xf32, #tpu.memory_space<vmem>>, vector<1x512xf32>
      %22 = vector.broadcast %21 : vector<1x512xf32> to vector<256x512xf32>
      %23 = arith.addf %20, %22 : vector<256x512xf32>
      %cst_21 = arith.constant 0.000000e+00 : f32
      %24 = vector.broadcast %cst_21 : f32 to vector<256x512xf32>
      %25 = arith.maximumf %23, %24 : vector<256x512xf32>
      %26 = arith.truncf %25 : vector<256x512xf32> to vector<256x512xbf16>
      %c0_22 = arith.constant 0 : index
      %c0_23 = arith.constant 0 : index
      %27 = vector.load %arg10[%c0_22, %c0_23] : memref<256x512xbf16, #tpu.memory_space<vmem>>, vector<256x512xbf16>
      tpu.vector_store %arg10[%c0_22, %c0_23], %26 {strides = array<i32>} : memref<256x512xbf16, #tpu.memory_space<vmem>>, vector<256x512xbf16>,
    } else {
    }
    %c0 = arith.constant 0 : index
    %c0_1 = arith.constant 0 : index
    %3 = vector.load %arg10[%c0, %c0_1] : memref<256x512xbf16, #tpu.memory_space<vmem>>, vector<256x512xbf16>
    %c0_2 = arith.constant 0 : index
    %c0_3 = arith.constant 0 : index
    %4 = vector.load %arg7[%c0_2, %c0_3] : memref<512x128xbf16, #tpu.memory_space<vmem>>, vector<512x128xbf16>
    %cst = arith.constant dense<0.000000e+00> : vector<256x128xf32>
    %5 = tpu.matmul %3, %4, %cst {dimension_numbers = #tpu.dot_dimension_numbers<[1], [0], [0], [1], [0, 0, 1, 1], [], []>} : vector<256x512xbf16>, vector<512x128xbf16>, vector<256x128xf32> -> vector<256x128xf32>
    %c0_4 = arith.constant 0 : index
    %c0_5 = arith.constant 0 : index
    %6 = vector.load %arg8[%c0_4, %c0_5] : memref<1x128xf32, #tpu.memory_space<vmem>>, vector<1x128xf32>
    %7 = vector.broadcast %6 : vector<1x128xf32> to vector<256x128xf32>
    %8 = arith.addf %5, %7 : vector<256x128xf32>
    %c0_6 = arith.constant 0 : index
    %c0_7 = arith.constant 0 : index
    %9 = vector.load %arg9[%c0_6, %c0_7] : memref<256x128xf32, #tpu.memory_space<vmem>>, vector<256x128xf32>
    tpu.vector_store %arg9[%c0_6, %c0_7], %8 {strides = array<i32>} : memref<256x128xf32, #tpu.memory_space<vmem>>, vector<256x128xf32>,
    return
  }
  func.func @transform_0(%arg0: i32, %arg1: i32) -> (i32, i32) {
    %c0_i32 = arith.constant 0 : i32
    %c0_i32_0 = arith.constant 0 : i32
    return %arg0, %c0_i32 : i32, i32
  }
  func.func @transform_1(%arg0: i32, %arg1: i32) -> (i32, i32) {
    %c0_i32 = arith.constant 0 : i32
    %c0_i32_0 = arith.constant 0 : i32
    %c0_i32_1 = arith.constant 0 : i32
    return %c0_i32, %c0_i32_0 : i32, i32
  }
  func.func @transform_2(%arg0: i32, %arg1: i32) -> (i32, i32) {
    %c0_i32 = arith.constant 0 : i32
    %c0_i32_0 = arith.constant 0 : i32
    %c0_i32_1 = arith.constant 0 : i32
    return %c0_i32, %c0_i32_0 : i32, i32
  }
  func.func @transform_3(%arg0: i32, %arg1: i32) -> (i32, i32) {
    %c0_i32 = arith.constant 0 : i32
    %c0_i32_0 = arith.constant 0 : i32
    %c0_i32_1 = arith.constant 0 : i32
    return %c0_i32, %c0_i32_0 : i32, i32
  }
  func.func @transform_4(%arg0: i32, %arg1: i32) -> (i32, i32) {
    %c0_i32 = arith.constant 0 : i32
    %c0_i32_0 = arith.constant 0 : i32
    %c0_i32_1 = arith.constant 0 : i32
    return %c0_i32, %c0_i32_0 : i32, i32
  }
  func.func @transform_5(%arg0: i32, %arg1: i32) -> (i32, i32) {
    %c0_i32 = arith.constant 0 : i32
    %c0_i32_0 = arith.constant 0 : i32
    return %c0_i32, %arg1 : i32, i32
  }
  func.func @transform_6(%arg0: i32, %arg1: i32) -> (i32, i32) {
    %c0_i32 = arith.constant 0 : i32
    %c0_i32_0 = arith.constant 0 : i32
    return %c0_i32, %arg1 : i32, i32
  }
  func.func @transform_7(%arg0: i32, %arg1: i32) -> (i32, i32) {
    %c0_i32 = arith.constant 0 : i32
    return %arg0, %arg1 : i32, i32
  }
}

</mosaic_0001>

<llo_original>
// kernel: tsom_forward.1
$region0: #{tsom_forward.1}
  #allocation0 [shape = 'u32[]', space=smem, size = 0x4, offset = 0x4, fixed_abs, tag = 'smem constant byte address 0x4 - core index']
  #allocation1 [shape = 'u32[144,128]{1,0:T(1,128)}', space=vmem, size = 0x12000, scoped, tag = 'internal scratch']
  #allocation2 [shape = 'bf16[256,512]{1,0:T(16,128)(2,1)}', space=vmem, size = 0x40000, scoped, tag = 'scratch operand']
  %s0 = inlined_call_operand.vmem [shape: bf16[512,128], index: 0, kind: input, shape index: {}]
  %s1 = inlined_call_operand.vmem [shape: bf16[128,512], index: 1, kind: input, shape index: {}]
  %s2 = inlined_call_operand.vmem [shape: f32[1,512], index: 2, kind: input, shape index: {}]
  %s3 = inlined_call_operand.vmem [shape: bf16[512,512], index: 3, kind: input, shape index: {}]
  %s4 = inlined_call_operand.vmem [shape: f32[1,512], index: 4, kind: input, shape index: {}]
  %s5 = inlined_call_operand.vmem [shape: bf16[512,128], index: 5, kind: input, shape index: {}]
  %s6 = inlined_call_operand.vmem [shape: f32[1,128], index: 6, kind: input, shape index: {}]
  %s7 = inlined_call_operand.vmem [shape: f32[512,128], index: 7, kind: output, shape index: {}]
  %s8 = sld [smem:[#allocation0]]
  $region65: #{tsom_forward.1} parent=0
    _
  %s10 = ssub.s32 1, %s8
  %s11 = scalar_select 0, %s10, %s8
  loop: start=0, step=1, limit=4
  $region2: #{tsom_forward.1} parent=0 // loop_pre_header
    _
  $region3: #{tsom_forward.1} parent=0 // loop_header
    %s13 = sphi 0, %s17
    %p14 = scmp.ge.s32.totalorder %s13, 4
    %s20 = sphi 0, %s32
    %s21 = sphi 0, %s28
    %s22 = sphi 0, %s20
    %s23 = sphi 0, %s21
    %s24 = sphi 0, %s22
    %s25 = sphi 0, %s23
    %s35 = sphi 0, %s37
    %s38 = sphi 0, %s35
    %s39 = sphi 0, %s38
    %s55 = sphi 0, %s39
    %s59 = sphi 0, %s59
    %s61 = sphi 0, %s59
    %s62 = sphi 0, %s61
    %s76 = sphi 0, %s62
    %s80 = sphi 0, %s80
    %s82 = sphi 0, %s80
    %s83 = sphi 0, %s82
    %s97 = sphi 0, %s83
    %s101 = sphi 0, %s101
    %s103 = sphi 0, %s101
    %s104 = sphi 0, %s103
    %s118 = sphi 0, %s104
    %s122 = sphi 0, %s122
    %s124 = sphi 0, %s122
    %s125 = sphi 0, %s124
    %s139 = sphi 0, %s125
    %s145 = sphi 0, %s147
    %s148 = sphi 0, %s145
    %s149 = sphi 0, %s148
    %s165 = sphi 0, %s149
    %s171 = sphi 0, %s173
    %s174 = sphi 0, %s171
    %s175 = sphi 0, %s174
    %s191 = sphi 0, %s175
    %s199 = sphi 0, %s201
    %s202 = sphi 0, %s199
    %s203 = sphi 0, %s202
    %s219 = sphi 0, %s203
  $region4: #{tsom_forward.1} parent=0 // loop_header_branch
    %16 = sbr.rel (%p14) target = $region8
  $region5: #{tsom_forward.1} parent=0 // loop_body
    %s18 = ssub.s32 %s13, 1
    %s19 = ssub.s32 %s13, 2
    %s26 = sadd.s32 1, %s21
    %p27 = scmp.ge.s32.totalorder %s26, 1
    %s28 = scalar_select %p27, 0, %s26
    %s29 = sadd.s32 1, %s20
    %s30 = scalar_select %p27, %s29, %s20
    %p31 = scmp.ge.s32.totalorder %s30, 2
    %s32 = scalar_select %p31, 0, %s30
    %s33 = ssub.s32 %s20, %s32
    %p34 = scmp.eq.s32.totalorder %s33, 0
    %s36 = sadd.s32 %s35, 1
    %s37 = scalar_select %p34, %s35, %s36
    %p40 = pneg %p34
    %p41 = scmp.eq.s32.totalorder %s13, 1
    %p42 = por %p40, %p41
    %p43 = scmp.ne.s32.totalorder %s35, %s38
    %p44 = scmp.eq.s32.totalorder %s13, 0
    %p45 = por %p43, %p44
    %p46 = scmp.ne.s32.totalorder %s35, %s38
    %p47 = scmp.eq.s32.totalorder %s18, 1
    %p48 = por %p46, %p47
    %p49 = scmp.ne.s32.totalorder %s38, %s39
    %p50 = scmp.eq.s32.totalorder %s18, 0
    %p51 = por %p49, %p50
    %p52 = scmp.ne.s32.totalorder %s38, %s39
    %p53 = scmp.eq.s32.totalorder %s19, 1
    %p54 = por %p52, %p53
    %p56 = scmp.ne.s32.totalorder %s39, %s55
    %p57 = scmp.eq.s32.totalorder %s19, 0
    %p58 = por %p56, %p57
    %s60 = sadd.s32 %s59, 1
    %p63 = scmp.eq.s32.totalorder %s13, 1
    %p64 = scmp.ne.s32.totalorder %s59, %s61
    %p65 = scmp.eq.s32.totalorder %s13, 0
    %p66 = por %p64, %p65
    %p67 = scmp.ne.s32.totalorder %s59, %s61
    %p68 = scmp.eq.s32.totalorder %s18, 1
    %p69 = por %p67, %p68
    %p70 = scmp.ne.s32.totalorder %s61, %s62
    %p71 = scmp.eq.s32.totalorder %s18, 0
    %p72 = por %p70, %p71
    %p73 = scmp.ne.s32.totalorder %s61, %s62
    %p74 = scmp.eq.s32.totalorder %s19, 1
    %p75 = por %p73, %p74
    %p77 = scmp.ne.s32.totalorder %s62, %s76
    %p78 = scmp.eq.s32.totalorder %s19, 0
    %p79 = por %p77, %p78
    %s81 = sadd.s32 %s80, 1
    %p84 = scmp.eq.s32.totalorder %s13, 1
    %p85 = scmp.ne.s32.totalorder %s80, %s82
    %p86 = scmp.eq.s32.totalorder %s13, 0
    %p87 = por %p85, %p86
    %p88 = scmp.ne.s32.totalorder %s80, %s82
    %p89 = scmp.eq.s32.totalorder %s18, 1
    %p90 = por %p88, %p89
    %p91 = scmp.ne.s32.totalorder %s82, %s83
    %p92 = scmp.eq.s32.totalorder %s18, 0
    %p93 = por %p91, %p92
    %p94 = scmp.ne.s32.totalorder %s82, %s83
    %p95 = scmp.eq.s32.totalorder %s19, 1
    %p96 = por %p94, %p95
    %p98 = scmp.ne.s32.totalorder %s83, %s97
    %p99 = scmp.eq.s32.totalorder %s19, 0
    %p100 = por %p98, %p99
    %s102 = sadd.s32 %s101, 1
    %p105 = scmp.eq.s32.totalorder %s13, 1
    %p106 = scmp.ne.s32.totalorder %s101, %s103
    %p107 = scmp.eq.s32.totalorder %s13, 0
    %p108 = por %p106, %p107
    %p109 = scmp.ne.s32.totalorder %s101, %s103
    %p110 = scmp.eq.s32.totalorder %s18, 1
    %p111 = por %p109, %p110
    %p112 = scmp.ne.s32.totalorder %s103, %s104
    %p113 = scmp.eq.s32.totalorder %s18, 0
    %p114 = por %p112, %p113
    %p115 = scmp.ne.s32.totalorder %s103, %s104
    %p116 = scmp.eq.s32.totalorder %s19, 1
    %p117 = por %p115, %p116
    %p119 = scmp.ne.s32.totalorder %s104, %s118
    %p120 = scmp.eq.s32.totalorder %s19, 0
    %p121 = por %p119, %p120
    %s123 = sadd.s32 %s122, 1
    %p126 = scmp.eq.s32.totalorder %s13, 1
    %p127 = scmp.ne.s32.totalorder %s122, %s124
    %p128 = scmp.eq.s32.totalorder %s13, 0
    %p129 = por %p127, %p128
    %p130 = scmp.ne.s32.totalorder %s122, %s124
    %p131 = scmp.eq.s32.totalorder %s18, 1
    %p132 = por %p130, %p131
    %p133 = scmp.ne.s32.totalorder %s124, %s125
    %p134 = scmp.eq.s32.totalorder %s18, 0
    %p135 = por %p133, %p134
    %p136 = scmp.ne.s32.totalorder %s124, %s125
    %p137 = scmp.eq.s32.totalorder %s19, 1
    %p138 = por %p136, %p137
    %p140 = scmp.ne.s32.totalorder %s125, %s139
    %p141 = scmp.eq.s32.totalorder %s19, 0
    %p142 = por %p140, %p141
    %s143 = ssub.s32 %s21, %s28
    %p144 = scmp.eq.s32.totalorder %s143, 0
    %s146 = sadd.s32 %s145, 1
    %s147 = scalar_select %p144, %s145, %s146
    %p150 = pneg %p144
    %p151 = scmp.eq.s32.totalorder %s13, 1
    %p152 = por %p150, %p151
    %p153 = scmp.ne.s32.totalorder %s145, %s148
    %p154 = scmp.eq.s32.totalorder %s13, 0
    %p155 = por %p153, %p154
    %p156 = scmp.ne.s32.totalorder %s145, %s148
    %p157 = scmp.eq.s32.totalorder %s18, 1
    %p158 = por %p156, %p157
    %p159 = scmp.ne.s32.totalorder %s148, %s149
    %p160 = scmp.eq.s32.totalorder %s18, 0
    %p161 = por %p159, %p160
    %p162 = scmp.ne.s32.totalorder %s148, %s149
    %p163 = scmp.eq.s32.totalorder %s19, 1
    %p164 = por %p162, %p163
    %p166 = scmp.ne.s32.totalorder %s149, %s165
    %p167 = scmp.eq.s32.totalorder %s19, 0
    %p168 = por %p166, %p167
    %s169 = ssub.s32 %s21, %s28
    %p170 = scmp.eq.s32.totalorder %s169, 0
    %s172 = sadd.s32 %s171, 1
    %s173 = scalar_select %p170, %s171, %s172
    %p176 = pneg %p170
    %p177 = scmp.eq.s32.totalorder %s13, 1
    %p178 = por %p176, %p177
    %p179 = scmp.ne.s32.totalorder %s171, %s174
    %p180 = scmp.eq.s32.totalorder %s13, 0
    %p181 = por %p179, %p180
    %p182 = scmp.ne.s32.totalorder %s171, %s174
    %p183 = scmp.eq.s32.totalorder %s18, 1
    %p184 = por %p182, %p183
    %p185 = scmp.ne.s32.totalorder %s174, %s175
    %p186 = scmp.eq.s32.totalorder %s18, 0
    %p187 = por %p185, %p186
    %p188 = scmp.ne.s32.totalorder %s174, %s175
    %p189 = scmp.eq.s32.totalorder %s19, 1
    %p190 = por %p188, %p189
    %p192 = scmp.ne.s32.totalorder %s175, %s191
    %p193 = scmp.eq.s32.totalorder %s19, 0
    %p194 = por %p192, %p193
    %s195 = ssub.s32 %s20, %s32
    %s196 = ssub.s32 %s21, %s28
    %s197 = sor.u32 %s195, %s196
    %p198 = scmp.eq.s32.totalorder %s197, 0
    %s200 = sadd.s32 %s199, 1
    %s201 = scalar_select %p198, %s199, %s200
    %p204 = pneg %p198
    %p205 = scmp.eq.s32.totalorder %s13, 1
    %p206 = por %p204, %p205
    %p207 = scmp.ne.s32.totalorder %s199, %s202
    %p208 = scmp.eq.s32.totalorder %s13, 0
    %p209 = por %p207, %p208
    %p210 = scmp.ne.s32.totalorder %s199, %s202
    %p211 = scmp.eq.s32.totalorder %s18, 1
    %p212 = por %p210, %p211
    %p213 = scmp.ne.s32.totalorder %s202, %s203
    %p214 = scmp.eq.s32.totalorder %s18, 0
    %p215 = por %p213, %p214
    %p216 = scmp.ne.s32.totalorder %s202, %s203
    %p217 = scmp.eq.s32.totalorder %s19, 1
    %p218 = por %p216, %p217
    %p220 = scmp.ne.s32.totalorder %s203, %s219
    %p221 = scmp.eq.s32.totalorder %s19, 0
    %p222 = por %p220, %p221
    %p223 = scmp.le.s32.totalorder 1, %s13
    %p224 = scmp.lt.s32.totalorder %s13, 3
    %p225 = pnand %p223, %p224
    %p226 = pneg %p225
    // Predicated region
    $region9: #{tsom_forward.1} parent=5 // pred_check
      _
    $region10: #{tsom_forward.1} parent=5 // pred_check_branch
      %228 = sbr.rel (%p225) target = $region12
    $region11: #{tsom_forward.1} parent=5 // pred_region
      %s229 = ssub.s32 %s13, 1
      // Predicated region
      $region13: #{tsom_forward.1} parent=11 // pred_check
        %p230 = pneg %p72
      $region14: #{tsom_forward.1} parent=11 // pred_check_branch
        %232 = sbr.rel (%p230) target = $region16
      $region15: #{tsom_forward.1} parent=11 // pred_region
        _
      $region16: #{tsom_forward.1} parent=11 // pred_fallthru
        _
      // Predicated region
      $region17: #{tsom_forward.1} parent=11 // pred_check
        %p233 = pneg %p93
      $region18: #{tsom_forward.1} parent=11 // pred_check_branch
        %235 = sbr.rel (%p233) target = $region20
      $region19: #{tsom_forward.1} parent=11 // pred_region
        _
      $region20: #{tsom_forward.1} parent=11 // pred_fallthru
        _
      // Predicated region
      $region21: #{tsom_forward.1} parent=11 // pred_check
        %p236 = pneg %p114
      $region22: #{tsom_forward.1} parent=11 // pred_check_branch
        %238 = sbr.rel (%p236) target = $region24
      $region23: #{tsom_forward.1} parent=11 // pred_region
        _
      $region24: #{tsom_forward.1} parent=11 // pred_fallthru
        _
      // Predicated region
      $region25: #{tsom_forward.1} parent=11 // pred_check
        %p239 = pneg %p135
      $region26: #{tsom_forward.1} parent=11 // pred_check_branch
        %241 = sbr.rel (%p239) target = $region28
      $region27: #{tsom_forward.1} parent=11 // pred_region
        _
      $region28: #{tsom_forward.1} parent=11 // pred_fallthru
        _
      // Predicated region
      $region29: #{tsom_forward.1} parent=11 // pred_check
        %p242 = pneg %p161
      $region30: #{tsom_forward.1} parent=11 // pred_check_branch
        %244 = sbr.rel (%p242) target = $region32
      $region31: #{tsom_forward.1} parent=11 // pred_region
        %p245 = scmp.lt.s32.totalorder %s23, 0
        %s246 = scalar_select %p245, %s23, 0
        %s247 = smul.addr %s246, 4
        %s248 = scalar_lea.vmem %s5, %s247
      $region32: #{tsom_forward.1} parent=11 // pred_fallthru
        _
      // Predicated region
      $region33: #{tsom_forward.1} parent=11 // pred_check
        %p249 = pneg %p187
      $region34: #{tsom_forward.1} parent=11 // pred_check_branch
        %251 = sbr.rel (%p249) target = $region36
      $region35: #{tsom_forward.1} parent=11 // pred_region
        %p252 = scmp.lt.s32.totalorder %s23, 0
        %s253 = scalar_select %p252, %s23, 0
        %s254 = scalar_lea.vmem %s6, %s253
      $region36: #{tsom_forward.1} parent=11 // pred_fallthru
        _
    $region12: #{tsom_forward.1} parent=5 // pred_fallthru
      _
    %p255 = scmp.lt.s32.totalorder %s13, 2
    // Predicated region
    $region37: #{tsom_forward.1} parent=5 // pred_check
      %p256 = pneg %p255
    $region38: #{tsom_forward.1} parent=5 // pred_check_branch
      %258 = sbr.rel (%p256) target = $region40
    $region39: #{tsom_forward.1} parent=5 // pred_region
      // Predicated region
      $region41: #{tsom_forward.1} parent=39 // pred_check
        %p259 = pneg %p45
      $region42: #{tsom_forward.1} parent=39 // pred_check_branch
        %261 = sbr.rel (%p259) target = $region44
      $region43: #{tsom_forward.1} parent=39 // pred_region
        %s262 = smul.u32 32, %s20
        %p263 = scmp.lt.s32.totalorder %s262, 63
        %s264 = scalar_select %p263, %s262, 63
        %s265 = smul.addr %s264, 4
        %s266 = scalar_lea.vmem %s0, %s265
        %s267 = smul.u32 32, %s20
      $region44: #{tsom_forward.1} parent=39 // pred_fallthru
        _
    $region40: #{tsom_forward.1} parent=5 // pred_fallthru
      _
    %p268 = scmp.le.s32.totalorder 1, %s13
    %p269 = scmp.lt.s32.totalorder %s13, 3
    %p270 = pnand %p268, %p269
    %p271 = pneg %p270
    // Predicated region
    $region45: #{tsom_forward.1} parent=5 // pred_check
      _
    $region46: #{tsom_forward.1} parent=5 // pred_check_branch
      %273 = sbr.rel (%p270) target = $region48
    $region47: #{tsom_forward.1} parent=5 // pred_region
      %s274 = ssub.s32 %s13, 1
      %s275 = smul.u32 32, %s22
      %p276 = scmp.lt.s32.totalorder %s275, 63
      %s277 = scalar_select %p276, %s275, 63
      %s278 = smul.addr %s277, 4
      %s279 = scalar_lea.vmem %s0, %s278
      %p280 = pneg %p51
      %p281 = pneg %p48
      %p282 = pneg %p72
      %p283 = pneg %p69
      %p284 = pneg %p93
      %p285 = pneg %p90
      %p286 = pneg %p114
      %p287 = pneg %p111
      %p288 = pneg %p135
      %p289 = pneg %p132
      %p290 = scmp.lt.s32.totalorder %s23, 0
      %s291 = scalar_select %p290, %s23, 0
      %s292 = smul.addr %s291, 4
      %s293 = scalar_lea.vmem %s5, %s292
      %p294 = pneg %p161
      %p295 = pneg %p158
      %p296 = scmp.lt.s32.totalorder %s23, 0
      %s297 = scalar_select %p296, %s23, 0
      %s298 = scalar_lea.vmem %s6, %s297
      %p299 = pneg %p187
      %p300 = pneg %p184
      %p301 = pneg %p215
      %p302 = pneg %p212
      %s303 = smul.u32 32, %s22
      %p304 = scmp.lt.s32.totalorder %s303, 63
      %s305 = scalar_select %p304, %s303, 63
      %p306 = scmp.lt.s32.totalorder %s23, 0
      %s307 = scalar_select %p306, %s23, 0
      %s308 = sadd.s32 %s307, %s305
      %s309 = smul.addr %s308, 8
      %s310 = scalar_lea.vmem %s7, %s309
      %s311 = smul.u32 32, %s22
      %p312 = scmp.lt.s32.totalorder %s311, 63
      %s313 = scalar_select %p312, %s311, 63
      %s314 = smul.addr %s313, 4
      %s315 = scalar_lea.vmem %s0, %s314
      %s316 = smul.u32 32, %s22
      %p317 = scmp.lt.s32.totalorder %s23, 0
      %s318 = scalar_select %p317, %s23, 0
      %s319 = smul.addr %s318, 4
      %s320 = scalar_lea.vmem %s5, %s319
      %p321 = scmp.lt.s32.totalorder %s23, 0
      %s322 = scalar_select %p321, %s23, 0
      %s323 = scalar_lea.vmem %s6, %s322
      %s324 = smul.u32 32, %s22
      %p325 = scmp.lt.s32.totalorder %s324, 63
      %s326 = scalar_select %p325, %s324, 63
      %p327 = scmp.lt.s32.totalorder %s23, 0
      %s328 = scalar_select %p327, %s23, 0
      %s329 = sadd.s32 %s328, %s326
      %s330 = smul.addr %s329, 8
      %s331 = scalar_lea.vmem %s7, %s330
      %s332 = smul.u32 32, %s22
      %p334 = scmp.eq.s32.totalorder %s23, 0
      // Predicated region
      $region49: #{tsom_forward.1} parent=47 // pred_check
        %p335 = pneg %p334
      $region50: #{tsom_forward.1} parent=47 // pred_check_branch
        %337 = sbr.rel (%p335) target = $region52
      $region51: #{tsom_forward.1} parent=47 // pred_region
        %v338 = vld [vmem:[%s315] sm:$0xf]
        %v339 = vld [vmem:[%s315 + $0x4] sm:$0xf]
        %v340 = vld [vmem:[%s315 + $0x8] sm:$0xf]
        %v341 = vld [vmem:[%s315 + $0xc] sm:$0xf]
        %v342 = vld [vmem:[%s315 + $0x10] sm:$0xf]
        %v343 = vld [vmem:[%s315 + $0x14] sm:$0xf]
        %v344 = vld [vmem:[%s315 + $0x18] sm:$0xf]
        %v345 = vld [vmem:[%s315 + $0x1c] sm:$0xf]
        %v346 = vld [vmem:[%s315 + $0x20] sm:$0xf]
        %v347 = vld [vmem:[%s315 + $0x24] sm:$0xf]
        %v348 = vld [vmem:[%s315 + $0x28] sm:$0xf]
        %v349 = vld [vmem:[%s315 + $0x2c] sm:$0xf]
        %v350 = vld [vmem:[%s315 + $0x30] sm:$0xf]
        %v351 = vld [vmem:[%s315 + $0x34] sm:$0xf]
        %v352 = vld [vmem:[%s315 + $0x38] sm:$0xf]
        %v353 = vld [vmem:[%s315 + $0x3c] sm:$0xf]
        %v354 = vld [vmem:[%s315 + $0x40] sm:$0xf]
        %v355 = vld [vmem:[%s315 + $0x44] sm:$0xf]
        %v356 = vld [vmem:[%s315 + $0x48] sm:$0xf]
        %v357 = vld [vmem:[%s315 + $0x4c] sm:$0xf]
        %v358 = vld [vmem:[%s315 + $0x50] sm:$0xf]
        %v359 = vld [vmem:[%s315 + $0x54] sm:$0xf]
        %v360 = vld [vmem:[%s315 + $0x58] sm:$0xf]
        %v361 = vld [vmem:[%s315 + $0x5c] sm:$0xf]
        %v362 = vld [vmem:[%s315 + $0x60] sm:$0xf]
        %v363 = vld [vmem:[%s315 + $0x64] sm:$0xf]
        %v364 = vld [vmem:[%s315 + $0x68] sm:$0xf]
        %v365 = vld [vmem:[%s315 + $0x6c] sm:$0xf]
        %v366 = vld [vmem:[%s315 + $0x70] sm:$0xf]
        %v367 = vld [vmem:[%s315 + $0x74] sm:$0xf]
        %v368 = vld [vmem:[%s315 + $0x78] sm:$0xf]
        %v369 = vld [vmem:[%s315 + $0x7c] sm:$0xf]
        %v370 = vld [vmem:[%s1] sm:$0xff]
        %v371 = vld [vmem:[%s1 + $0x8] sm:$0xff]
        %v372 = vld [vmem:[%s1 + $0x10] sm:$0xff]
        %v373 = vld [vmem:[%s1 + $0x18] sm:$0xff]
        %v374 = vld [vmem:[%s1 + $0x20] sm:$0xff]
        %v375 = vld [vmem:[%s1 + $0x28] sm:$0xff]
        %v376 = vld [vmem:[%s1 + $0x30] sm:$0xff]
        %v377 = vld [vmem:[%s1 + $0x38] sm:$0xff]
        %v378 = vld [vmem:[%s1 + $0x40] sm:$0xff]
        %v379 = vld [vmem:[%s1 + $0x48] sm:$0xff]
        %v380 = vld [vmem:[%s1 + $0x50] sm:$0xff]
        %v381 = vld [vmem:[%s1 + $0x58] sm:$0xff]
        %v382 = vld [vmem:[%s1 + $0x60] sm:$0xff]
        %v383 = vld [vmem:[%s1 + $0x68] sm:$0xff]
        %v384 = vld [vmem:[%s1 + $0x70] sm:$0xff]
        %v385 = vld [vmem:[%s1 + $0x78] sm:$0xff]
        %v386 = vld [vmem:[%s1 + $0x80] sm:$0xff]
        %v387 = vld [vmem:[%s1 + $0x88] sm:$0xff]
        %v388 = vld [vmem:[%s1 + $0x90] sm:$0xff]
        %v389 = vld [vmem:[%s1 + $0x98] sm:$0xff]
        %v390 = vld [vmem:[%s1 + $0xa0] sm:$0xff]
        %v391 = vld [vmem:[%s1 + $0xa8] sm:$0xff]
        %v392 = vld [vmem:[%s1 + $0xb0] sm:$0xff]
        %v393 = vld [vmem:[%s1 + $0xb8] sm:$0xff]
        %v394 = vld [vmem:[%s1 + $0xc0] sm:$0xff]
        %v395 = vld [vmem:[%s1 + $0xc8] sm:$0xff]
        %v396 = vld [vmem:[%s1 + $0xd0] sm:$0xff]
        %v397 = vld [vmem:[%s1 + $0xd8] sm:$0xff]
        %v398 = vld [vmem:[%s1 + $0xe0] sm:$0xff]
        %v399 = vld [vmem:[%s1 + $0xe8] sm:$0xff]
        %v400 = vld [vmem:[%s1 + $0xf0] sm:$0xff]
        %v401 = vld [vmem:[%s1 + $0xf8] sm:$0xff]
        %v402 = vld [vmem:[%s2] sm:$0xf]
        %v404 = vlaneseq
        %v405 = vshrl.u32 %v404, 7
        %v406 = vsub.s32 0, %v405
        %v407 = vrot.slane %v402, %v406
        %v408 = vlaneseq
        %v409 = vshrl.u32 %v408, 7
        %v410 = vsub.s32 1, %v409
        %v411 = vrot.slane %v402, %v410
        %v412 = vlaneseq
        %v413 = vshrl.u32 %v412, 7
        %v414 = vsub.s32 2, %v413
        %v415 = vrot.slane %v402, %v414
        %v416 = vlaneseq
        %v417 = vshrl.u32 %v416, 7
        %v418 = vsub.s32 3, %v417
        %v419 = vrot.slane %v402, %v418
        %v456 = vunpack.c.l.b16 %v338
        %v457 = vunpack.c.l.b16 %v339
        %v458 = vunpack.c.l.b16 %v340
        %v459 = vunpack.c.l.b16 %v341
        %v460 = vunpack.c.l.b16 %v342
        %v461 = vunpack.c.l.b16 %v343
        %v462 = vunpack.c.l.b16 %v344
        %v463 = vunpack.c.l.b16 %v345
        %v464 = vunpack.c.l.b16 %v346
        %v465 = vunpack.c.l.b16 %v347
        %v466 = vunpack.c.l.b16 %v348
        %v467 = vunpack.c.l.b16 %v349
        %v468 = vunpack.c.l.b16 %v350
        %v469 = vunpack.c.l.b16 %v351
        %v470 = vunpack.c.l.b16 %v352
        %v471 = vunpack.c.l.b16 %v353
        %v472 = vunpack.c.l.b16 %v354
        %v473 = vunpack.c.l.b16 %v355
        %v474 = vunpack.c.l.b16 %v356
        %v475 = vunpack.c.l.b16 %v357
        %v476 = vunpack.c.l.b16 %v358
        %v477 = vunpack.c.l.b16 %v359
        %v478 = vunpack.c.l.b16 %v360
        %v479 = vunpack.c.l.b16 %v361
        %v480 = vunpack.c.l.b16 %v362
        %v481 = vunpack.c.l.b16 %v363
        %v482 = vunpack.c.l.b16 %v364
        %v483 = vunpack.c.l.b16 %v365
        %v484 = vunpack.c.l.b16 %v366
        %v485 = vunpack.c.l.b16 %v367
        %v486 = vunpack.c.l.b16 %v368
        %v487 = vunpack.c.l.b16 %v369
        %v488 = vpack.c.b16 %v457, %v456
        %v489 = vpack.c.b16 %v459, %v458
        %v490 = vpack.c.b16 %v461, %v460
        %v491 = vpack.c.b16 %v463, %v462
        %v492 = vpack.c.b16 %v465, %v464
        %v493 = vpack.c.b16 %v467, %v466
        %v494 = vpack.c.b16 %v469, %v468
        %v495 = vpack.c.b16 %v471, %v470
        %v496 = vpack.c.b16 %v473, %v472
        %v497 = vpack.c.b16 %v475, %v474
        %v498 = vpack.c.b16 %v477, %v476
        %v499 = vpack.c.b16 %v479, %v478
        %v500 = vpack.c.b16 %v481, %v480
        %v501 = vpack.c.b16 %v483, %v482
        %v502 = vpack.c.b16 %v485, %v484
        %v503 = vpack.c.b16 %v487, %v486
        %v552 = vunpack.c.l.b16 %v370
        %v553 = vunpack.c.h.b16 %v370
        %v554 = vunpack.c.l.b16 %v371
        %v555 = vunpack.c.h.b16 %v371
        %v556 = vunpack.c.l.b16 %v372
        %v557 = vunpack.c.h.b16 %v372
        %v558 = vunpack.c.l.b16 %v373
        %v559 = vunpack.c.h.b16 %v373
        %v560 = vunpack.c.l.b16 %v374
        %v561 = vunpack.c.h.b16 %v374
        %v562 = vunpack.c.l.b16 %v375
        %v563 = vunpack.c.h.b16 %v375
        %v564 = vunpack.c.l.b16 %v376
        %v565 = vunpack.c.h.b16 %v376
        %v566 = vunpack.c.l.b16 %v377
        %v567 = vunpack.c.h.b16 %v377
        %v568 = vunpack.c.l.b16 %v378
        %v569 = vunpack.c.h.b16 %v378
        %v570 = vunpack.c.l.b16 %v379
        %v571 = vunpack.c.h.b16 %v379
        %v572 = vunpack.c.l.b16 %v380
        %v573 = vunpack.c.h.b16 %v380
        %v574 = vunpack.c.l.b16 %v381
        %v575 = vunpack.c.h.b16 %v381
        %v576 = vunpack.c.l.b16 %v382
        %v577 = vunpack.c.h.b16 %v382
        %v578 = vunpack.c.l.b16 %v383
        %v579 = vunpack.c.h.b16 %v383
        %v580 = vunpack.c.l.b16 %v384
        %v581 = vunpack.c.h.b16 %v384
        %v582 = vunpack.c.l.b16 %v385
        %v583 = vunpack.c.h.b16 %v385
        %v584 = vunpack.c.l.b16 %v386
        %v585 = vunpack.c.h.b16 %v386
        %v586 = vunpack.c.l.b16 %v387
        %v587 = vunpack.c.h.b16 %v387
        %v588 = vunpack.c.l.b16 %v388
        %v589 = vunpack.c.h.b16 %v388
        %v590 = vunpack.c.l.b16 %v389
        %v591 = vunpack.c.h.b16 %v389
        %v592 = vunpack.c.l.b16 %v390
        %v593 = vunpack.c.h.b16 %v390
        %v594 = vunpack.c.l.b16 %v391
        %v595 = vunpack.c.h.b16 %v391
        %v596 = vunpack.c.l.b16 %v392
        %v597 = vunpack.c.h.b16 %v392
        %v598 = vunpack.c.l.b16 %v393
        %v599 = vunpack.c.h.b16 %v393
        %v600 = vunpack.c.l.b16 %v394
        %v601 = vunpack.c.h.b16 %v394
        %v602 = vunpack.c.l.b16 %v395
        %v603 = vunpack.c.h.b16 %v395
        %v604 = vunpack.c.l.b16 %v396
        %v605 = vunpack.c.h.b16 %v396
        %v606 = vunpack.c.l.b16 %v397
        %v607 = vunpack.c.h.b16 %v397
        %v608 = vunpack.c.l.b16 %v398
        %v609 = vunpack.c.h.b16 %v398
        %v610 = vunpack.c.l.b16 %v399
        %v611 = vunpack.c.h.b16 %v399
        %v612 = vunpack.c.l.b16 %v400
        %v613 = vunpack.c.h.b16 %v400
        %v614 = vunpack.c.l.b16 %v401
        %v615 = vunpack.c.h.b16 %v401
        %v616 = vpack.c.b16 %v556, %v552
        %v617 = vpack.c.b16 %v557, %v553
        %v618 = vpack.c.b16 %v558, %v554
        %v619 = vpack.c.b16 %v559, %v555
        %v620 = vpack.c.b16 %v564, %v560
        %v621 = vpack.c.b16 %v565, %v561
        %v622 = vpack.c.b16 %v566, %v562
        %v623 = vpack.c.b16 %v567, %v563
        %v624 = vpack.c.b16 %v572, %v568
        %v625 = vpack.c.b16 %v573, %v569
        %v626 = vpack.c.b16 %v574, %v570
        %v627 = vpack.c.b16 %v575, %v571
        %v628 = vpack.c.b16 %v580, %v576
        %v629 = vpack.c.b16 %v581, %v577
        %v630 = vpack.c.b16 %v582, %v578
        %v631 = vpack.c.b16 %v583, %v579
        %v632 = vpack.c.b16 %v588, %v584
        %v633 = vpack.c.b16 %v589, %v585
        %v634 = vpack.c.b16 %v590, %v586
        %v635 = vpack.c.b16 %v591, %v587
        %v636 = vpack.c.b16 %v596, %v592
        %v637 = vpack.c.b16 %v597, %v593
        %v638 = vpack.c.b16 %v598, %v594
        %v639 = vpack.c.b16 %v599, %v595
        %v640 = vpack.c.b16 %v604, %v600
        %v641 = vpack.c.b16 %v605, %v601
        %v642 = vpack.c.b16 %v606, %v602
        %v643 = vpack.c.b16 %v607, %v603
        %v644 = vpack.c.b16 %v612, %v608
        %v645 = vpack.c.b16 %v613, %v609
        %v646 = vpack.c.b16 %v614, %v610
        %v647 = vpack.c.b16 %v615, %v611
        %680 = vmatprep.subr.bf16.mxu0 %v617
        %681 = vmatpush1.bf16.msra.mxu0 %v616
        %682 = vmatprep.subr.bf16.mxu0 %v621
        %683 = vmatpush1.bf16.msra.mxu0 %v620
        %684 = vmatprep.subr.bf16.mxu0 %v625
        %685 = vmatpush1.bf16.msra.mxu0 %v624
        %686 = vmatprep.subr.bf16.mxu0 %v629
        %687 = vmatpush1.bf16.msra.mxu0 %v628
        %688 = vmatprep.subr.bf16.mxu0 %v633
        %689 = vmatpush1.bf16.msra.mxu0 %v632
        %690 = vmatprep.subr.bf16.mxu0 %v637
        %691 = vmatpush1.bf16.msra.mxu0 %v636
        %692 = vmatprep.subr.bf16.mxu0 %v641
        %693 = vmatpush1.bf16.msra.mxu0 %v640
        %694 = vmatprep.subr.bf16.mxu0 %v645
        %695 = vmatpush1.bf16.msra.mxu0 %v644
        %696 = vmatprep.subr.bf16.mxu0 0
        %697 = vmatpush1.bf16.msra.mxu0 0
        %698 = vmatprep.subr.bf16.mxu0 0
        %699 = vmatpush1.bf16.msra.mxu0 0
        %700 = vmatprep.subr.bf16.mxu0 0
        %701 = vmatpush1.bf16.msra.mxu0 0
        %702 = vmatprep.subr.bf16.mxu0 0
        %703 = vmatpush1.bf16.msra.mxu0 0
        %704 = vmatprep.subr.bf16.mxu0 0
        %705 = vmatpush1.bf16.msra.mxu0 0
        %706 = vmatprep.subr.bf16.mxu0 0
        %707 = vmatpush1.bf16.msra.mxu0 0
        %708 = vmatprep.subr.bf16.mxu0 0
        %709 = vmatpush1.bf16.msra.mxu0 0
        %710 = vmatprep.subr.bf16.mxu0 0
        %711 = vmatpush1.bf16.msra.mxu0 0
        %712 = vmatprep.mubr.bf16.mxu0 0
        %713 = vmatmul.mubr.bf16.gmra.mrb[0].mxu0 %v488
        %v714 = vpop.f32.mrb[0].mxu0
        %v715 = vadd.f32 %v407, %v714
        %v716 = vpop.f32.mrb[0].mxu0
        %v717 = vadd.f32 %v411, %v716
        %v718 = vpop.f32.mrb[0].mxu0
        %v719 = vadd.f32 %v407, %v718
        %v720 = vpop.f32.mrb[0].mxu0
        %v721 = vadd.f32 %v411, %v720
        %722 = vmatprep.mubr.bf16.mxu0 0
        %723 = vmatmul.mubr.bf16.gmra.mrb[0].mxu0 %v489
        %v724 = vpop.f32.mrb[0].mxu0
        %v725 = vadd.f32 %v407, %v724
        %v726 = vpop.f32.mrb[0].mxu0
        %v727 = vadd.f32 %v411, %v726
        %v728 = vpop.f32.mrb[0].mxu0
        %v729 = vadd.f32 %v407, %v728
        %v730 = vpop.f32.mrb[0].mxu0
        %v731 = vadd.f32 %v411, %v730
        %732 = vmatprep.mubr.bf16.mxu0 0
        %733 = vmatmul.mubr.bf16.gmra.mrb[0].mxu0 %v490
        %v734 = vpop.f32.mrb[0].mxu0
        %v735 = vadd.f32 %v407, %v734
        %v736 = vpop.f32.mrb[0].mxu0
        %v737 = vadd.f32 %v411, %v736
        %v738 = vpop.f32.mrb[0].mxu0
        %v739 = vadd.f32 %v407, %v738
        %v740 = vpop.f32.mrb[0].mxu0
        %v741 = vadd.f32 %v411, %v740
        %742 = vmatprep.mubr.bf16.mxu0 0
        %743 = vmatmul.mubr.bf16.gmra.mrb[0].mxu0 %v491
        %v744 = vpop.f32.mrb[0].mxu0
        %v745 = vadd.f32 %v407, %v744
        %v746 = vpop.f32.mrb[0].mxu0
        %v747 = vadd.f32 %v411, %v746
        %v748 = vpop.f32.mrb[0].mxu0
        %v749 = vadd.f32 %v407, %v748
        %v750 = vpop.f32.mrb[0].mxu0
        %v751 = vadd.f32 %v411, %v750
        %752 = vmatprep.mubr.bf16.mxu0 0
        %753 = vmatmul.mubr.bf16.gmra.mrb[0].mxu0 %v492
        %v754 = vpop.f32.mrb[0].mxu0
        %v755 = vadd.f32 %v407, %v754
        %v756 = vpop.f32.mrb[0].mxu0
        %v757 = vadd.f32 %v411, %v756
        %v758 = vpop.f32.mrb[0].mxu0
        %v759 = vadd.f32 %v407, %v758
        %v760 = vpop.f32.mrb[0].mxu0
        %v761 = vadd.f32 %v411, %v760
        %762 = vmatprep.mubr.bf16.mxu0 0
        %763 = vmatmul.mubr.bf16.gmra.mrb[0].mxu0 %v493
        %v764 = vpop.f32.mrb[0].mxu0
        %v765 = vadd.f32 %v407, %v764
        %v766 = vpop.f32.mrb[0].mxu0
        %v767 = vadd.f32 %v411, %v766
        %v768 = vpop.f32.mrb[0].mxu0
        %v769 = vadd.f32 %v407, %v768
        %v770 = vpop.f32.mrb[0].mxu0
        %v771 = vadd.f32 %v411, %v770
        %772 = vmatprep.mubr.bf16.mxu0 0
        %773 = vmatmul.mubr.bf16.gmra.mrb[0].mxu0 %v494
        %v774 = vpop.f32.mrb[0].mxu0
        %v775 = vadd.f32 %v407, %v774
        %v776 = vpop.f32.mrb[0].mxu0
        %v777 = vadd.f32 %v411, %v776
        %v778 = vpop.f32.mrb[0].mxu0
        %v779 = vadd.f32 %v407, %v778
        %v780 = vpop.f32.mrb[0].mxu0
        %v781 = vadd.f32 %v411, %v780
        %782 = vmatprep.mubr.bf16.mxu0 0
        %783 = vmatmul.mubr.bf16.gmra.mrb[0].mxu0 %v495
        %v784 = vpop.f32.mrb[0].mxu0
        %v785 = vadd.f32 %v407, %v784
        %v786 = vpop.f32.mrb[0].mxu0
        %v787 = vadd.f32 %v411, %v786
        %v788 = vpop.f32.mrb[0].mxu0
        %v789 = vadd.f32 %v407, %v788
        %v790 = vpop.f32.mrb[0].mxu0
        %v791 = vadd.f32 %v411, %v790
        %792 = vmatprep.mubr.bf16.mxu0 0
        %793 = vmatmul.mubr.bf16.gmra.mrb[0].mxu0 %v496
        %v794 = vpop.f32.mrb[0].mxu0
        %v795 = vadd.f32 %v407, %v794
        %v796 = vpop.f32.mrb[0].mxu0
        %v797 = vadd.f32 %v411, %v796
        %v798 = vpop.f32.mrb[0].mxu0
        %v799 = vadd.f32 %v407, %v798
        %v800 = vpop.f32.mrb[0].mxu0
        %v801 = vadd.f32 %v411, %v800
        %802 = vmatprep.mubr.bf16.mxu0 0
        %803 = vmatmul.mubr.bf16.gmra.mrb[0].mxu0 %v497
        %v804 = vpop.f32.mrb[0].mxu0
        %v805 = vadd.f32 %v407, %v804
        %v806 = vpop.f32.mrb[0].mxu0
        %v807 = vadd.f32 %v411, %v806
        %v808 = vpop.f32.mrb[0].mxu0
        %v809 = vadd.f32 %v407, %v808
        %v810 = vpop.f32.mrb[0].mxu0
        %v811 = vadd.f32 %v411, %v810
        %812 = vmatprep.mubr.bf16.mxu0 0
        %813 = vmatmul.mubr.bf16.gmra.mrb[0].mxu0 %v498
        %v814 = vpop.f32.mrb[0].mxu0
        %v815 = vadd.f32 %v407, %v814
        %v816 = vpop.f32.mrb[0].mxu0
        %v817 = vadd.f32 %v411, %v816
        %v818 = vpop.f32.mrb[0].mxu0
        %v819 = vadd.f32 %v407, %v818
        %v820 = vpop.f32.mrb[0].mxu0
        %v821 = vadd.f32 %v411, %v820
        %822 = vmatprep.mubr.bf16.mxu0 0
        %823 = vmatmul.mubr.bf16.gmra.mrb[0].mxu0 %v499
        %v824 = vpop.f32.mrb[0].mxu0
        %v825 = vadd.f32 %v407, %v824
        %v826 = vpop.f32.mrb[0].mxu0
        %v827 = vadd.f32 %v411, %v826
        %v828 = vpop.f32.mrb[0].mxu0
        %v829 = vadd.f32 %v407, %v828
        %v830 = vpop.f32.mrb[0].mxu0
        %v831 = vadd.f32 %v411, %v830
        %832 = vmatprep.mubr.bf16.mxu0 0
        %833 = vmatmul.mubr.bf16.gmra.mrb[0].mxu0 %v500
        %v834 = vpop.f32.mrb[0].mxu0
        %v835 = vadd.f32 %v407, %v834
        %v836 = vpop.f32.mrb[0].mxu0
        %v837 = vadd.f32 %v411, %v836
        %v838 = vpop.f32.mrb[0].mxu0
        %v839 = vadd.f32 %v407, %v838
        %v840 = vpop.f32.mrb[0].mxu0
        %v841 = vadd.f32 %v411, %v840
        %842 = vmatprep.mubr.bf16.mxu0 0
        %843 = vmatmul.mubr.bf16.gmra.mrb[0].mxu0 %v501
        %v844 = vpop.f32.mrb[0].mxu0
        %v845 = vadd.f32 %v407, %v844
        %v846 = vpop.f32.mrb[0].mxu0
        %v847 = vadd.f32 %v411, %v846
        %v848 = vpop.f32.mrb[0].mxu0
        %v849 = vadd.f32 %v407, %v848
        %v850 = vpop.f32.mrb[0].mxu0
        %v851 = vadd.f32 %v411, %v850
        %852 = vmatprep.mubr.bf16.mxu0 0
        %853 = vmatmul.mubr.bf16.gmra.mrb[0].mxu0 %v502
        %v854 = vpop.f32.mrb[0].mxu0
        %v855 = vadd.f32 %v407, %v854
        %v856 = vpop.f32.mrb[0].mxu0
        %v857 = vadd.f32 %v411, %v856
        %v858 = vpop.f32.mrb[0].mxu0
        %v859 = vadd.f32 %v407, %v858
        %v860 = vpop.f32.mrb[0].mxu0
        %v861 = vadd.f32 %v411, %v860
        %862 = vmatprep.mubr.bf16.mxu0 0
        %863 = vmatmul.mubr.bf16.gmra.mrb[0].mxu0 %v503
        %v864 = vpop.f32.mrb[0].mxu0
        %v865 = vadd.f32 %v407, %v864
        %v866 = vpop.f32.mrb[0].mxu0
        %v867 = vadd.f32 %v411, %v866
        %v868 = vpop.f32.mrb[0].mxu0
        %v869 = vadd.f32 %v407, %v868
        %v870 = vpop.f32.mrb[0].mxu0
        %v871 = vadd.f32 %v411, %v870
        %872 = vdwg.mxu0
        %873 = vmatprep.subr.bf16.mxu0 %v619
        %874 = vmatpush1.bf16.msra.mxu0 %v618
        %875 = vmatprep.subr.bf16.mxu0 %v623
        %876 = vmatpush1.bf16.msra.mxu0 %v622
        %877 = vmatprep.subr.bf16.mxu0 %v627
        %878 = vmatpush1.bf16.msra.mxu0 %v626
        %879 = vmatprep.subr.bf16.mxu0 %v631
        %880 = vmatpush1.bf16.msra.mxu0 %v630
        %881 = vmatprep.subr.bf16.mxu0 %v635
        %882 = vmatpush1.bf16.msra.mxu0 %v634
        %883 = vmatprep.subr.bf16.mxu0 %v639
        %884 = vmatpush1.bf16.msra.mxu0 %v638
        %885 = vmatprep.subr.bf16.mxu0 %v643
        %886 = vmatpush1.bf16.msra.mxu0 %v642
        %887 = vmatprep.subr.bf16.mxu0 %v647
        %888 = vmatpush1.bf16.msra.mxu0 %v646
        %889 = vmatprep.subr.bf16.mxu0 0
        %890 = vmatpush1.bf16.msra.mxu0 0
        %891 = vmatprep.subr.bf16.mxu0 0
        %892 = vmatpush1.bf16.msra.mxu0 0
        %893 = vmatprep.subr.bf16.mxu0 0
        %894 = vmatpush1.bf16.msra.mxu0 0
        %895 = vmatprep.subr.bf16.mxu0 0
        %896 = vmatpush1.bf16.msra.mxu0 0
        %897 = vmatprep.subr.bf16.mxu0 0
        %898 = vmatpush1.bf16.msra.mxu0 0
        %899 = vmatprep.subr.bf16.mxu0 0
        %900 = vmatpush1.bf16.msra.mxu0 0
        %901 = vmatprep.subr.bf16.mxu0 0
        %902 = vmatpush1.bf16.msra.mxu0 0
        %903 = vmatprep.subr.bf16.mxu0 0
        %904 = vmatpush1.bf16.msra.mxu0 0
        %905 = vmatprep.mubr.bf16.mxu0 0
        %906 = vmatmul.mubr.bf16.gmra.mrb[0].mxu0 %v488
        %v907 = vpop.f32.mrb[0].mxu0
        %v908 = vadd.f32 %v415, %v907
        %v909 = vpop.f32.mrb[0].mxu0
        %v910 = vadd.f32 %v419, %v909
        %v911 = vpop.f32.mrb[0].mxu0
        %v912 = vadd.f32 %v415, %v911
        %v913 = vpop.f32.mrb[0].mxu0
        %v914 = vadd.f32 %v419, %v913
        %915 = vmatprep.mubr.bf16.mxu0 0
        %916 = vmatmul.mubr.bf16.gmra.mrb[0].mxu0 %v489
        %v917 = vpop.f32.mrb[0].mxu0
        %v918 = vadd.f32 %v415, %v917
        %v919 = vpop.f32.mrb[0].mxu0
        %v920 = vadd.f32 %v419, %v919
        %v921 = vpop.f32.mrb[0].mxu0
        %v922 = vadd.f32 %v415, %v921
        %v923 = vpop.f32.mrb[0].mxu0
        %v924 = vadd.f32 %v419, %v923
        %925 = vmatprep.mubr.bf16.mxu0 0
        %926 = vmatmul.mubr.bf16.gmra.mrb[0].mxu0 %v490
        %v927 = vpop.f32.mrb[0].mxu0
        %v928 = vadd.f32 %v415, %v927
        %v929 = vpop.f32.mrb[0].mxu0
        %v930 = vadd.f32 %v419, %v929
        %v931 = vpop.f32.mrb[0].mxu0
        %v932 = vadd.f32 %v415, %v931
        %v933 = vpop.f32.mrb[0].mxu0
        %v934 = vadd.f32 %v419, %v933
        %935 = vmatprep.mubr.bf16.mxu0 0
        %936 = vmatmul.mubr.bf16.gmra.mrb[0].mxu0 %v491
        %v937 = vpop.f32.mrb[0].mxu0
        %v938 = vadd.f32 %v415, %v937
        %v939 = vpop.f32.mrb[0].mxu0
        %v940 = vadd.f32 %v419, %v939
        %v941 = vpop.f32.mrb[0].mxu0
        %v942 = vadd.f32 %v415, %v941
        %v943 = vpop.f32.mrb[0].mxu0
        %v944 = vadd.f32 %v419, %v943
        %945 = vmatprep.mubr.bf16.mxu0 0
        %946 = vmatmul.mubr.bf16.gmra.mrb[0].mxu0 %v492
        %v947 = vpop.f32.mrb[0].mxu0
        %v948 = vadd.f32 %v415, %v947
        %v949 = vpop.f32.mrb[0].mxu0
        %v950 = vadd.f32 %v419, %v949
        %v951 = vpop.f32.mrb[0].mxu0
        %v952 = vadd.f32 %v415, %v951
        %v953 = vpop.f32.mrb[0].mxu0
        %v954 = vadd.f32 %v419, %v953
        %955 = vmatprep.mubr.bf16.mxu0 0
        %956 = vmatmul.mubr.bf16.gmra.mrb[0].mxu0 %v493
        %v957 = vpop.f32.mrb[0].mxu0
        %v958 = vadd.f32 %v415, %v957
        %v959 = vpop.f32.mrb[0].mxu0
        %v960 = vadd.f32 %v419, %v959
        %v961 = vpop.f32.mrb[0].mxu0
        %v962 = vadd.f32 %v415, %v961
        %v963 = vpop.f32.mrb[0].mxu0
        %v964 = vadd.f32 %v419, %v963
        %965 = vmatprep.mubr.bf16.mxu0 0
        %966 = vmatmul.mubr.bf16.gmra.mrb[0].mxu0 %v494
        %v967 = vpop.f32.mrb[0].mxu0
        %v968 = vadd.f32 %v415, %v967
        %v969 = vpop.f32.mrb[0].mxu0
        %v970 = vadd.f32 %v419, %v969
        %v971 = vpop.f32.mrb[0].mxu0
        %v972 = vadd.f32 %v415, %v971
        %v973 = vpop.f32.mrb[0].mxu0
        %v974 = vadd.f32 %v419, %v973
        %975 = vmatprep.mubr.bf16.mxu0 0
        %976 = vmatmul.mubr.bf16.gmra.mrb[0].mxu0 %v495
        %v977 = vpop.f32.mrb[0].mxu0
        %v978 = vadd.f32 %v415, %v977
        %v979 = vpop.f32.mrb[0].mxu0
        %v980 = vadd.f32 %v419, %v979
        %v981 = vpop.f32.mrb[0].mxu0
        %v982 = vadd.f32 %v415, %v981
        %v983 = vpop.f32.mrb[0].mxu0
        %v984 = vadd.f32 %v419, %v983
        %985 = vmatprep.mubr.bf16.mxu0 0
        %986 = vmatmul.mubr.bf16.gmra.mrb[0].mxu0 %v496
        %v987 = vpop.f32.mrb[0].mxu0
        %v988 = vadd.f32 %v415, %v987
        %v989 = vpop.f32.mrb[0].mxu0
        %v990 = vadd.f32 %v419, %v989
        %v991 = vpop.f32.mrb[0].mxu0
        %v992 = vadd.f32 %v415, %v991
        %v993 = vpop.f32.mrb[0].mxu0
        %v994 = vadd.f32 %v419, %v993
        %995 = vmatprep.mubr.bf16.mxu0 0
        %996 = vmatmul.mubr.bf16.gmra.mrb[0].mxu0 %v497
        %v997 = vpop.f32.mrb[0].mxu0
        %v998 = vadd.f32 %v415, %v997
        %v999 = vpop.f32.mrb[0].mxu0
        %v1000 = vadd.f32 %v419, %v999
        %v1001 = vpop.f32.mrb[0].mxu0
        %v1002 = vadd.f32 %v415, %v1001
        %v1003 = vpop.f32.mrb[0].mxu0
        %v1004 = vadd.f32 %v419, %v1003
        %1005 = vmatprep.mubr.bf16.mxu0 0
        %1006 = vmatmul.mubr.bf16.gmra.mrb[0].mxu0 %v498
        %v1007 = vpop.f32.mrb[0].mxu0
        %v1008 = vadd.f32 %v415, %v1007
        %v1009 = vpop.f32.mrb[0].mxu0
        %v1010 = vadd.f32 %v419, %v1009
        %v1011 = vpop.f32.mrb[0].mxu0
        %v1012 = vadd.f32 %v415, %v1011
        %v1013 = vpop.f32.mrb[0].mxu0
        %v1014 = vadd.f32 %v419, %v1013
        %1015 = vmatprep.mubr.bf16.mxu0 0
        %1016 = vmatmul.mubr.bf16.gmra.mrb[0].mxu0 %v499
        %v1017 = vpop.f32.mrb[0].mxu0
        %v1018 = vadd.f32 %v415, %v1017
        %v1019 = vpop.f32.mrb[0].mxu0
        %v1020 = vadd.f32 %v419, %v1019
        %v1021 = vpop.f32.mrb[0].mxu0
        %v1022 = vadd.f32 %v415, %v1021
        %v1023 = vpop.f32.mrb[0].mxu0
        %v1024 = vadd.f32 %v419, %v1023
        %1025 = vmatprep.mubr.bf16.mxu0 0
        %1026 = vmatmul.mubr.bf16.gmra.mrb[0].mxu0 %v500
        %v1027 = vpop.f32.mrb[0].mxu0
        %v1028 = vadd.f32 %v415, %v1027
        %v1029 = vpop.f32.mrb[0].mxu0
        %v1030 = vadd.f32 %v419, %v1029
        %v1031 = vpop.f32.mrb[0].mxu0
        %v1032 = vadd.f32 %v415, %v1031
        %v1033 = vpop.f32.mrb[0].mxu0
        %v1034 = vadd.f32 %v419, %v1033
        %1035 = vmatprep.mubr.bf16.mxu0 0
        %1036 = vmatmul.mubr.bf16.gmra.mrb[0].mxu0 %v501
        %v1037 = vpop.f32.mrb[0].mxu0
        %v1038 = vadd.f32 %v415, %v1037
        %v1039 = vpop.f32.mrb[0].mxu0
        %v1040 = vadd.f32 %v419, %v1039
        %v1041 = vpop.f32.mrb[0].mxu0
        %v1042 = vadd.f32 %v415, %v1041
        %v1043 = vpop.f32.mrb[0].mxu0
        %v1044 = vadd.f32 %v419, %v1043
        %1045 = vmatprep.mubr.bf16.mxu0 0
        %1046 = vmatmul.mubr.bf16.gmra.mrb[0].mxu0 %v502
        %v1047 = vpop.f32.mrb[0].mxu0
        %v1048 = vadd.f32 %v415, %v1047
        %v1049 = vpop.f32.mrb[0].mxu0
        %v1050 = vadd.f32 %v419, %v1049
        %v1051 = vpop.f32.mrb[0].mxu0
        %v1052 = vadd.f32 %v415, %v1051
        %v1053 = vpop.f32.mrb[0].mxu0
        %v1054 = vadd.f32 %v419, %v1053
        %1055 = vmatprep.mubr.bf16.mxu0 0
        %1056 = vmatmul.mubr.bf16.gmra.mrb[0].mxu0 %v503
        %v1057 = vpop.f32.mrb[0].mxu0
        %v1058 = vadd.f32 %v415, %v1057
        %v1059 = vpop.f32.mrb[0].mxu0
        %v1060 = vadd.f32 %v419, %v1059
        %v1061 = vpop.f32.mrb[0].mxu0
        %v1062 = vadd.f32 %v415, %v1061
        %v1063 = vpop.f32.mrb[0].mxu0
        %v1064 = vadd.f32 %v419, %v1063
        %1065 = vdwg.mxu0
        %v1066 = vmax.f32 %v715, 0.0
        %v1067 = vmax.f32 %v717, 0.0
        %v1068 = vmax.f32 %v908, 0.0
        %v1069 = vmax.f32 %v910, 0.0
        %v1070 = vmax.f32 %v719, 0.0
        %v1071 = vmax.f32 %v721, 0.0
        %v1072 = vmax.f32 %v912, 0.0
        %v1073 = vmax.f32 %v914, 0.0
        %v1074 = vmax.f32 %v725, 0.0
        %v1075 = vmax.f32 %v727, 0.0
        %v1076 = vmax.f32 %v918, 0.0
        %v1077 = vmax.f32 %v920, 0.0
        %v1078 = vmax.f32 %v729, 0.0
        %v1079 = vmax.f32 %v731, 0.0
        %v1080 = vmax.f32 %v922, 0.0
        %v1081 = vmax.f32 %v924, 0.0
        %v1082 = vmax.f32 %v735, 0.0
        %v1083 = vmax.f32 %v737, 0.0
        %v1084 = vmax.f32 %v928, 0.0
        %v1085 = vmax.f32 %v930, 0.0
        %v1086 = vmax.f32 %v739, 0.0
        %v1087 = vmax.f32 %v741, 0.0
        %v1088 = vmax.f32 %v932, 0.0
        %v1089 = vmax.f32 %v934, 0.0
        %v1090 = vmax.f32 %v745, 0.0
        %v1091 = vmax.f32 %v747, 0.0
        %v1092 = vmax.f32 %v938, 0.0
        %v1093 = vmax.f32 %v940, 0.0
        %v1094 = vmax.f32 %v749, 0.0
        %v1095 = vmax.f32 %v751, 0.0
        %v1096 = vmax.f32 %v942, 0.0
        %v1097 = vmax.f32 %v944, 0.0
        %v1098 = vmax.f32 %v755, 0.0
        %v1099 = vmax.f32 %v757, 0.0
        %v1100 = vmax.f32 %v948, 0.0
        %v1101 = vmax.f32 %v950, 0.0
        %v1102 = vmax.f32 %v759, 0.0
        %v1103 = vmax.f32 %v761, 0.0
        %v1104 = vmax.f32 %v952, 0.0
        %v1105 = vmax.f32 %v954, 0.0
        %v1106 = vmax.f32 %v765, 0.0
        %v1107 = vmax.f32 %v767, 0.0
        %v1108 = vmax.f32 %v958, 0.0
        %v1109 = vmax.f32 %v960, 0.0
        %v1110 = vmax.f32 %v769, 0.0
        %v1111 = vmax.f32 %v771, 0.0
        %v1112 = vmax.f32 %v962, 0.0
        %v1113 = vmax.f32 %v964, 0.0
        %v1114 = vmax.f32 %v775, 0.0
        %v1115 = vmax.f32 %v777, 0.0
        %v1116 = vmax.f32 %v968, 0.0
        %v1117 = vmax.f32 %v970, 0.0
        %v1118 = vmax.f32 %v779, 0.0
        %v1119 = vmax.f32 %v781, 0.0
        %v1120 = vmax.f32 %v972, 0.0
        %v1121 = vmax.f32 %v974, 0.0
        %v1122 = vmax.f32 %v785, 0.0
        %v1123 = vmax.f32 %v787, 0.0
        %v1124 = vmax.f32 %v978, 0.0
        %v1125 = vmax.f32 %v980, 0.0
        %v1126 = vmax.f32 %v789, 0.0
        %v1127 = vmax.f32 %v791, 0.0
        %v1128 = vmax.f32 %v982, 0.0
        %v1129 = vmax.f32 %v984, 0.0
        %v1130 = vmax.f32 %v795, 0.0
        %v1131 = vmax.f32 %v797, 0.0
        %v1132 = vmax.f32 %v988, 0.0
        %v1133 = vmax.f32 %v990, 0.0
        %v1134 = vmax.f32 %v799, 0.0
        %v1135 = vmax.f32 %v801, 0.0
        %v1136 = vmax.f32 %v992, 0.0
        %v1137 = vmax.f32 %v994, 0.0
        %v1138 = vmax.f32 %v805, 0.0
        %v1139 = vmax.f32 %v807, 0.0
        %v1140 = vmax.f32 %v998, 0.0
        %v1141 = vmax.f32 %v1000, 0.0
        %v1142 = vmax.f32 %v809, 0.0
        %v1143 = vmax.f32 %v811, 0.0
        %v1144 = vmax.f32 %v1002, 0.0
        %v1145 = vmax.f32 %v1004, 0.0
        %v1146 = vmax.f32 %v815, 0.0
        %v1147 = vmax.f32 %v817, 0.0
        %v1148 = vmax.f32 %v1008, 0.0
        %v1149 = vmax.f32 %v1010, 0.0
        %v1150 = vmax.f32 %v819, 0.0
        %v1151 = vmax.f32 %v821, 0.0
        %v1152 = vmax.f32 %v1012, 0.0
        %v1153 = vmax.f32 %v1014, 0.0
        %v1154 = vmax.f32 %v825, 0.0
        %v1155 = vmax.f32 %v827, 0.0
        %v1156 = vmax.f32 %v1018, 0.0
        %v1157 = vmax.f32 %v1020, 0.0
        %v1158 = vmax.f32 %v829, 0.0
        %v1159 = vmax.f32 %v831, 0.0
        %v1160 = vmax.f32 %v1022, 0.0
        %v1161 = vmax.f32 %v1024, 0.0
        %v1162 = vmax.f32 %v835, 0.0
        %v1163 = vmax.f32 %v837, 0.0
        %v1164 = vmax.f32 %v1028, 0.0
        %v1165 = vmax.f32 %v1030, 0.0
        %v1166 = vmax.f32 %v839, 0.0
        %v1167 = vmax.f32 %v841, 0.0
        %v1168 = vmax.f32 %v1032, 0.0
        %v1169 = vmax.f32 %v1034, 0.0
        %v1170 = vmax.f32 %v845, 0.0
        %v1171 = vmax.f32 %v847, 0.0
        %v1172 = vmax.f32 %v1038, 0.0
        %v1173 = vmax.f32 %v1040, 0.0
        %v1174 = vmax.f32 %v849, 0.0
        %v1175 = vmax.f32 %v851, 0.0
        %v1176 = vmax.f32 %v1042, 0.0
        %v1177 = vmax.f32 %v1044, 0.0
        %v1178 = vmax.f32 %v855, 0.0
        %v1179 = vmax.f32 %v857, 0.0
        %v1180 = vmax.f32 %v1048, 0.0
        %v1181 = vmax.f32 %v1050, 0.0
        %v1182 = vmax.f32 %v859, 0.0
        %v1183 = vmax.f32 %v861, 0.0
        %v1184 = vmax.f32 %v1052, 0.0
        %v1185 = vmax.f32 %v1054, 0.0
        %v1186 = vmax.f32 %v865, 0.0
        %v1187 = vmax.f32 %v867, 0.0
        %v1188 = vmax.f32 %v1058, 0.0
        %v1189 = vmax.f32 %v1060, 0.0
        %v1190 = vmax.f32 %v869, 0.0
        %v1191 = vmax.f32 %v871, 0.0
        %v1192 = vmax.f32 %v1062, 0.0
        %v1193 = vmax.f32 %v1064, 0.0
        %v1194 = vpack.c.bf16 %v1070, %v1066
        %v1195 = vpack.c.bf16 %v1071, %v1067
        %v1196 = vpack.c.bf16 %v1072, %v1068
        %v1197 = vpack.c.bf16 %v1073, %v1069
        %v1198 = vpack.c.bf16 %v1078, %v1074
        %v1199 = vpack.c.bf16 %v1079, %v1075
        %v1200 = vpack.c.bf16 %v1080, %v1076
        %v1201 = vpack.c.bf16 %v1081, %v1077
        %v1202 = vpack.c.bf16 %v1086, %v1082
        %v1203 = vpack.c.bf16 %v1087, %v1083
        %v1204 = vpack.c.bf16 %v1088, %v1084
        %v1205 = vpack.c.bf16 %v1089, %v1085
        %v1206 = vpack.c.bf16 %v1094, %v1090
        %v1207 = vpack.c.bf16 %v1095, %v1091
        %v1208 = vpack.c.bf16 %v1096, %v1092
        %v1209 = vpack.c.bf16 %v1097, %v1093
        %v1210 = vpack.c.bf16 %v1102, %v1098
        %v1211 = vpack.c.bf16 %v1103, %v1099
        %v1212 = vpack.c.bf16 %v1104, %v1100
        %v1213 = vpack.c.bf16 %v1105, %v1101
        %v1214 = vpack.c.bf16 %v1110, %v1106
        %v1215 = vpack.c.bf16 %v1111, %v1107
        %v1216 = vpack.c.bf16 %v1112, %v1108
        %v1217 = vpack.c.bf16 %v1113, %v1109
        %v1218 = vpack.c.bf16 %v1118, %v1114
        %v1219 = vpack.c.bf16 %v1119, %v1115
        %v1220 = vpack.c.bf16 %v1120, %v1116
        %v1221 = vpack.c.bf16 %v1121, %v1117
        %v1222 = vpack.c.bf16 %v1126, %v1122
        %v1223 = vpack.c.bf16 %v1127, %v1123
        %v1224 = vpack.c.bf16 %v1128, %v1124
        %v1225 = vpack.c.bf16 %v1129, %v1125
        %v1226 = vpack.c.bf16 %v1134, %v1130
        %v1227 = vpack.c.bf16 %v1135, %v1131
        %v1228 = vpack.c.bf16 %v1136, %v1132
        %v1229 = vpack.c.bf16 %v1137, %v1133
        %v1230 = vpack.c.bf16 %v1142, %v1138
        %v1231 = vpack.c.bf16 %v1143, %v1139
        %v1232 = vpack.c.bf16 %v1144, %v1140
        %v1233 = vpack.c.bf16 %v1145, %v1141
        %v1234 = vpack.c.bf16 %v1150, %v1146
        %v1235 = vpack.c.bf16 %v1151, %v1147
        %v1236 = vpack.c.bf16 %v1152, %v1148
        %v1237 = vpack.c.bf16 %v1153, %v1149
        %v1238 = vpack.c.bf16 %v1158, %v1154
        %v1239 = vpack.c.bf16 %v1159, %v1155
        %v1240 = vpack.c.bf16 %v1160, %v1156
        %v1241 = vpack.c.bf16 %v1161, %v1157
        %v1242 = vpack.c.bf16 %v1166, %v1162
        %v1243 = vpack.c.bf16 %v1167, %v1163
        %v1244 = vpack.c.bf16 %v1168, %v1164
        %v1245 = vpack.c.bf16 %v1169, %v1165
        %v1246 = vpack.c.bf16 %v1174, %v1170
        %v1247 = vpack.c.bf16 %v1175, %v1171
        %v1248 = vpack.c.bf16 %v1176, %v1172
        %v1249 = vpack.c.bf16 %v1177, %v1173
        %v1250 = vpack.c.bf16 %v1182, %v1178
        %v1251 = vpack.c.bf16 %v1183, %v1179
        %v1252 = vpack.c.bf16 %v1184, %v1180
        %v1253 = vpack.c.bf16 %v1185, %v1181
        %v1254 = vpack.c.bf16 %v1190, %v1186
        %v1255 = vpack.c.bf16 %v1191, %v1187
        %v1256 = vpack.c.bf16 %v1192, %v1188
        %v1257 = vpack.c.bf16 %v1193, %v1189
        %v1258 = vld [vmem:[%s3] sm:$0xff]
        %v1259 = vld [vmem:[%s3 + $0x8] sm:$0xff]
        %v1260 = vld [vmem:[%s3 + $0x10] sm:$0xff]
        %v1261 = vld [vmem:[%s3 + $0x18] sm:$0xff]
        %v1262 = vld [vmem:[%s3 + $0x20] sm:$0xff]
        %v1263 = vld [vmem:[%s3 + $0x28] sm:$0xff]
        %v1264 = vld [vmem:[%s3 + $0x30] sm:$0xff]
        %v1265 = vld [vmem:[%s3 + $0x38] sm:$0xff]
        %v1266 = vld [vmem:[%s3 + $0x40] sm:$0xff]
        %v1267 = vld [vmem:[%s3 + $0x48] sm:$0xff]
        %v1268 = vld [vmem:[%s3 + $0x50] sm:$0xff]
        %v1269 = vld [vmem:[%s3 + $0x58] sm:$0xff]
        %v1270 = vld [vmem:[%s3 + $0x60] sm:$0xff]
        %v1271 = vld [vmem:[%s3 + $0x68] sm:$0xff]
        %v1272 = vld [vmem:[%s3 + $0x70] sm:$0xff]
        %v1273 = vld [vmem:[%s3 + $0x78] sm:$0xff]
        %v1274 = vld [vmem:[%s3 + $0x80] sm:$0xff]
        %v1275 = vld [vmem:[%s3 + $0x88] sm:$0xff]
        %v1276 = vld [vmem:[%s3 + $0x90] sm:$0xff]
        %v1277 = vld [vmem:[%s3 + $0x98] sm:$0xff]
        %v1278 = vld [vmem:[%s3 + $0xa0] sm:$0xff]
        %v1279 = vld [vmem:[%s3 + $0xa8] sm:$0xff]
        %v1280 = vld [vmem:[%s3 + $0xb0] sm:$0xff]
        %v1281 = vld [vmem:[%s3 + $0xb8] sm:$0xff]
        %v1282 = vld [vmem:[%s3 + $0xc0] sm:$0xff]
        %v1283 = vld [vmem:[%s3 + $0xc8] sm:$0xff]
        %v1284 = vld [vmem:[%s3 + $0xd0] sm:$0xff]
        %v1285 = vld [vmem:[%s3 + $0xd8] sm:$0xff]
        %v1286 = vld [vmem:[%s3 + $0xe0] sm:$0xff]
        %v1287 = vld [vmem:[%s3 + $0xe8] sm:$0xff]
        %v1288 = vld [vmem:[%s3 + $0xf0] sm:$0xff]
        %v1289 = vld [vmem:[%s3 + $0xf8] sm:$0xff]
        %v1290 = vld [vmem:[%s3 + $0x100] sm:$0xff]
        %v1291 = vld [vmem:[%s3 + $0x108] sm:$0xff]
        %v1292 = vld [vmem:[%s3 + $0x110] sm:$0xff]
        %v1293 = vld [vmem:[%s3 + $0x118] sm:$0xff]
        %v1294 = vld [vmem:[%s3 + $0x120] sm:$0xff]
        %v1295 = vld [vmem:[%s3 + $0x128] sm:$0xff]
        %v1296 = vld [vmem:[%s3 + $0x130] sm:$0xff]
        %v1297 = vld [vmem:[%s3 + $0x138] sm:$0xff]
        %v1298 = vld [vmem:[%s3 + $0x140] sm:$0xff]
        %v1299 = vld [vmem:[%s3 + $0x148] sm:$0xff]
        %v1300 = vld [vmem:[%s3 + $0x150] sm:$0xff]
        %v1301 = vld [vmem:[%s3 + $0x158] sm:$0xff]
        %v1302 = vld [vmem:[%s3 + $0x160] sm:$0xff]
        %v1303 = vld [vmem:[%s3 + $0x168] sm:$0xff]
        %v1304 = vld [vmem:[%s3 + $0x170] sm:$0xff]
        %v1305 = vld [vmem:[%s3 + $0x178] sm:$0xff]
        %v1306 = vld [vmem:[%s3 + $0x180] sm:$0xff]
        %v1307 = vld [vmem:[%s3 + $0x188] sm:$0xff]
        %v1308 = vld [vmem:[%s3 + $0x190] sm:$0xff]
        %v1309 = vld [vmem:[%s3 + $0x198] sm:$0xff]
        %v1310 = vld [vmem:[%s3 + $0x1a0] sm:$0xff]
        %v1311 = vld [vmem:[%s3 + $0x1a8] sm:$0xff]
        %v1312 = vld [vmem:[%s3 + $0x1b0] sm:$0xff]
        %v1313 = vld [vmem:[%s3 + $0x1b8] sm:$0xff]
        %v1314 = vld [vmem:[%s3 + $0x1c0] sm:$0xff]
        %v1315 = vld [vmem:[%s3 + $0x1c8] sm:$0xff]
        %v1316 = vld [vmem:[%s3 + $0x1d0] sm:$0xff]
        %v1317 = vld [vmem:[%s3 + $0x1d8] sm:$0xff]
        %v1318 = vld [vmem:[%s3 + $0x1e0] sm:$0xff]
        %v1319 = vld [vmem:[%s3 + $0x1e8] sm:$0xff]
        %v1320 = vld [vmem:[%s3 + $0x1f0] sm:$0xff]
        %v1321 = vld [vmem:[%s3 + $0x1f8] sm:$0xff]
        %v1322 = vld [vmem:[%s3 + $0x200] sm:$0xff]
        %v1323 = vld [vmem:[%s3 + $0x208] sm:$0xff]
        %v1324 = vld [vmem:[%s3 + $0x210] sm:$0xff]
        %v1325 = vld [vmem:[%s3 + $0x218] sm:$0xff]
        %v1326 = vld [vmem:[%s3 + $0x220] sm:$0xff]
        %v1327 = vld [vmem:[%s3 + $0x228] sm:$0xff]
        %v1328 = vld [vmem:[%s3 + $0x230] sm:$0xff]
        %v1329 = vld [vmem:[%s3 + $0x238] sm:$0xff]
        %v1330 = vld [vmem:[%s3 + $0x240] sm:$0xff]
        %v1331 = vld [vmem:[%s3 + $0x248] sm:$0xff]
        %v1332 = vld [vmem:[%s3 + $0x250] sm:$0xff]
        %v1333 = vld [vmem:[%s3 + $0x258] sm:$0xff]
        %v1334 = vld [vmem:[%s3 + $0x260] sm:$0xff]
        %v1335 = vld [vmem:[%s3 + $0x268] sm:$0xff]
        %v1336 = vld [vmem:[%s3 + $0x270] sm:$0xff]
        %v1337 = vld [vmem:[%s3 + $0x278] sm:$0xff]
        %v1338 = vld [vmem:[%s3 + $0x280] sm:$0xff]
        %v1339 = vld [vmem:[%s3 + $0x288] sm:$0xff]
        %v1340 = vld [vmem:[%s3 + $0x290] sm:$0xff]
        %v1341 = vld [vmem:[%s3 + $0x298] sm:$0xff]
        %v1342 = vld [vmem:[%s3 + $0x2a0] sm:$0xff]
        %v1343 = vld [vmem:[%s3 + $0x2a8] sm:$0xff]
        %v1344 = vld [vmem:[%s3 + $0x2b0] sm:$0xff]
        %v1345 = vld [vmem:[%s3 + $0x2b8] sm:$0xff]
        %v1346 = vld [vmem:[%s3 + $0x2c0] sm:$0xff]
        %v1347 = vld [vmem:[%s3 + $0x2c8] sm:$0xff]
        %v1348 = vld [vmem:[%s3 + $0x2d0] sm:$0xff]
        %v1349 = vld [vmem:[%s3 + $0x2d8] sm:$0xff]
        %v1350 = vld [vmem:[%s3 + $0x2e0] sm:$0xff]
        %v1351 = vld [vmem:[%s3 + $0x2e8] sm:$0xff]
        %v1352 = vld [vmem:[%s3 + $0x2f0] sm:$0xff]
        %v1353 = vld [vmem:[%s3 + $0x2f8] sm:$0xff]
        %v1354 = vld [vmem:[%s3 + $0x300] sm:$0xff]
        %v1355 = vld [vmem:[%s3 + $0x308] sm:$0xff]
        %v1356 = vld [vmem:[%s3 + $0x310] sm:$0xff]
        %v1357 = vld [vmem:[%s3 + $0x318] sm:$0xff]
        %v1358 = vld [vmem:[%s3 + $0x320] sm:$0xff]
        %v1359 = vld [vmem:[%s3 + $0x328] sm:$0xff]
        %v1360 = vld [vmem:[%s3 + $0x330] sm:$0xff]
        %v1361 = vld [vmem:[%s3 + $0x338] sm:$0xff]
        %v1362 = vld [vmem:[%s3 + $0x340] sm:$0xff]
        %v1363 = vld [vmem:[%s3 + $0x348] sm:$0xff]
        %v1364 = vld [vmem:[%s3 + $0x350] sm:$0xff]
        %v1365 = vld [vmem:[%s3 + $0x358] sm:$0xff]
        %v1366 = vld [vmem:[%s3 + $0x360] sm:$0xff]
        %v1367 = vld [vmem:[%s3 + $0x368] sm:$0xff]
        %v1368 = vld [vmem:[%s3 + $0x370] sm:$0xff]
        %v1369 = vld [vmem:[%s3 + $0x378] sm:$0xff]
        %v1370 = vld [vmem:[%s3 + $0x380] sm:$0xff]
        %v1371 = vld [vmem:[%s3 + $0x388] sm:$0xff]
        %v1372 = vld [vmem:[%s3 + $0x390] sm:$0xff]
        %v1373 = vld [vmem:[%s3 + $0x398] sm:$0xff]
        %v1374 = vld [vmem:[%s3 + $0x3a0] sm:$0xff]
        %v1375 = vld [vmem:[%s3 + $0x3a8] sm:$0xff]
        %v1376 = vld [vmem:[%s3 + $0x3b0] sm:$0xff]
        %v1377 = vld [vmem:[%s3 + $0x3b8] sm:$0xff]
        %v1378 = vld [vmem:[%s3 + $0x3c0] sm:$0xff]
        %v1379 = vld [vmem:[%s3 + $0x3c8] sm:$0xff]
        %v1380 = vld [vmem:[%s3 + $0x3d0] sm:$0xff]
        %v1381 = vld [vmem:[%s3 + $0x3d8] sm:$0xff]
        %v1382 = vld [vmem:[%s3 + $0x3e0] sm:$0xff]
        %v1383 = vld [vmem:[%s3 + $0x3e8] sm:$0xff]
        %v1384 = vld [vmem:[%s3 + $0x3f0] sm:$0xff]
        %v1385 = vld [vmem:[%s3 + $0x3f8] sm:$0xff]
        %v1386 = vld [vmem:[%s4] sm:$0xf]
        %v1388 = vlaneseq
        %v1389 = vshrl.u32 %v1388, 7
        %v1390 = vsub.s32 0, %v1389
        %v1391 = vrot.slane %v1386, %v1390
        %v1392 = vlaneseq
        %v1393 = vshrl.u32 %v1392, 7
        %v1394 = vsub.s32 1, %v1393
        %v1395 = vrot.slane %v1386, %v1394
        %v1396 = vlaneseq
        %v1397 = vshrl.u32 %v1396, 7
        %v1398 = vsub.s32 2, %v1397
        %v1399 = vrot.slane %v1386, %v1398
        %v1400 = vlaneseq
        %v1401 = vshrl.u32 %v1400, 7
        %v1402 = vsub.s32 3, %v1401
        %v1403 = vrot.slane %v1386, %v1402
        %v1536 = vunpack.c.l.b16 %v1258
        %v1537 = vunpack.c.h.b16 %v1258
        %v1538 = vunpack.c.l.b16 %v1259
        %v1539 = vunpack.c.h.b16 %v1259
        %v1540 = vunpack.c.l.b16 %v1260
        %v1541 = vunpack.c.h.b16 %v1260
        %v1542 = vunpack.c.l.b16 %v1261
        %v1543 = vunpack.c.h.b16 %v1261
        %v1544 = vunpack.c.l.b16 %v1262
        %v1545 = vunpack.c.h.b16 %v1262
        %v1546 = vunpack.c.l.b16 %v1263
        %v1547 = vunpack.c.h.b16 %v1263
        %v1548 = vunpack.c.l.b16 %v1264
        %v1549 = vunpack.c.h.b16 %v1264
        %v1550 = vunpack.c.l.b16 %v1265
        %v1551 = vunpack.c.h.b16 %v1265
        %v1552 = vunpack.c.l.b16 %v1266
        %v1553 = vunpack.c.h.b16 %v1266
        %v1554 = vunpack.c.l.b16 %v1267
        %v1555 = vunpack.c.h.b16 %v1267
        %v1556 = vunpack.c.l.b16 %v1268
        %v1557 = vunpack.c.h.b16 %v1268
        %v1558 = vunpack.c.l.b16 %v1269
        %v1559 = vunpack.c.h.b16 %v1269
        %v1560 = vunpack.c.l.b16 %v1270
        %v1561 = vunpack.c.h.b16 %v1270
        %v1562 = vunpack.c.l.b16 %v1271
        %v1563 = vunpack.c.h.b16 %v1271
        %v1564 = vunpack.c.l.b16 %v1272
        %v1565 = vunpack.c.h.b16 %v1272
        %v1566 = vunpack.c.l.b16 %v1273
        %v1567 = vunpack.c.h.b16 %v1273
        %v1568 = vunpack.c.l.b16 %v1274
        %v1569 = vunpack.c.h.b16 %v1274
        %v1570 = vunpack.c.l.b16 %v1275
        %v1571 = vunpack.c.h.b16 %v1275
        %v1572 = vunpack.c.l.b16 %v1276
        %v1573 = vunpack.c.h.b16 %v1276
        %v1574 = vunpack.c.l.b16 %v1277
        %v1575 = vunpack.c.h.b16 %v1277
        %v1576 = vunpack.c.l.b16 %v1278
        %v1577 = vunpack.c.h.b16 %v1278
        %v1578 = vunpack.c.l.b16 %v1279
        %v1579 = vunpack.c.h.b16 %v1279
        %v1580 = vunpack.c.l.b16 %v1280
        %v1581 = vunpack.c.h.b16 %v1280
        %v1582 = vunpack.c.l.b16 %v1281
        %v1583 = vunpack.c.h.b16 %v1281
        %v1584 = vunpack.c.l.b16 %v1282
        %v1585 = vunpack.c.h.b16 %v1282
        %v1586 = vunpack.c.l.b16 %v1283
        %v1587 = vunpack.c.h.b16 %v1283
        %v1588 = vunpack.c.l.b16 %v1284
        %v1589 = vunpack.c.h.b16 %v1284
        %v1590 = vunpack.c.l.b16 %v1285
        %v1591 = vunpack.c.h.b16 %v1285
        %v1592 = vunpack.c.l.b16 %v1286
        %v1593 = vunpack.c.h.b16 %v1286
        %v1594 = vunpack.c.l.b16 %v1287
        %v1595 = vunpack.c.h.b16 %v1287
        %v1596 = vunpack.c.l.b16 %v1288
        %v1597 = vunpack.c.h.b16 %v1288
        %v1598 = vunpack.c.l.b16 %v1289
        %v1599 = vunpack.c.h.b16 %v1289
        %v1600 = vunpack.c.l.b16 %v1290
        %v1601 = vunpack.c.h.b16 %v1290
        %v1602 = vunpack.c.l.b16 %v1291
        %v1603 = vunpack.c.h.b16 %v1291
        %v1604 = vunpack.c.l.b16 %v1292
        %v1605 = vunpack.c.h.b16 %v1292
        %v1606 = vunpack.c.l.b16 %v1293
        %v1607 = vunpack.c.h.b16 %v1293
        %v1608 = vunpack.c.l.b16 %v1294
        %v1609 = vunpack.c.h.b16 %v1294
        %v1610 = vunpack.c.l.b16 %v1295
        %v1611 = vunpack.c.h.b16 %v1295
        %v1612 = vunpack.c.l.b16 %v1296
        %v1613 = vunpack.c.h.b16 %v1296
        %v1614 = vunpack.c.l.b16 %v1297
        %v1615 = vunpack.c.h.b16 %v1297
        %v1616 = vunpack.c.l.b16 %v1298
        %v1617 = vunpack.c.h.b16 %v1298
        %v1618 = vunpack.c.l.b16 %v1299
        %v1619 = vunpack.c.h.b16 %v1299
        %v1620 = vunpack.c.l.b16 %v1300
        %v1621 = vunpack.c.h.b16 %v1300
        %v1622 = vunpack.c.l.b16 %v1301
        %v1623 = vunpack.c.h.b16 %v1301
        %v1624 = vunpack.c.l.b16 %v1302
        %v1625 = vunpack.c.h.b16 %v1302
        %v1626 = vunpack.c.l.b16 %v1303
        %v1627 = vunpack.c.h.b16 %v1303
        %v1628 = vunpack.c.l.b16 %v1304
        %v1629 = vunpack.c.h.b16 %v1304
        %v1630 = vunpack.c.l.b16 %v1305
        %v1631 = vunpack.c.h.b16 %v1305
        %v1632 = vunpack.c.l.b16 %v1306
        %v1633 = vunpack.c.h.b16 %v1306
        %v1634 = vunpack.c.l.b16 %v1307
        %v1635 = vunpack.c.h.b16 %v1307
        %v1636 = vunpack.c.l.b16 %v1308
        %v1637 = vunpack.c.h.b16 %v1308
        %v1638 = vunpack.c.l.b16 %v1309
        %v1639 = vunpack.c.h.b16 %v1309
        %v1640 = vunpack.c.l.b16 %v1310
        %v1641 = vunpack.c.h.b16 %v1310
        %v1642 = vunpack.c.l.b16 %v1311
        %v1643 = vunpack.c.h.b16 %v1311
        %v1644 = vunpack.c.l.b16 %v1312
        %v1645 = vunpack.c.h.b16 %v1312
        %v1646 = vunpack.c.l.b16 %v1313
        %v1647 = vunpack.c.h.b16 %v1313
        %v1648 = vunpack.c.l.b16 %v1314
        %v1649 = vunpack.c.h.b16 %v1314
        %v1650 = vunpack.c.l.b16 %v1315
        %v1651 = vunpack.c.h.b16 %v1315
        %v1652 = vunpack.c.l.b16 %v1316
        %v1653 = vunpack.c.h.b16 %v1316
        %v1654 = vunpack.c.l.b16 %v1317
        %v1655 = vunpack.c.h.b16 %v1317
        %v1656 = vunpack.c.l.b16 %v1318
        %v1657 = vunpack.c.h.b16 %v1318
        %v1658 = vunpack.c.l.b16 %v1319
        %v1659 = vunpack.c.h.b16 %v1319
        %v1660 = vunpack.c.l.b16 %v1320
        %v1661 = vunpack.c.h.b16 %v1320
        %v1662 = vunpack.c.l.b16 %v1321
        %v1663 = vunpack.c.h.b16 %v1321
        %v1664 = vunpack.c.l.b16 %v1322
        %v1665 = vunpack.c.h.b16 %v1322
        %v1666 = vunpack.c.l.b16 %v1323
        %v1667 = vunpack.c.h.b16 %v1323
        %v1668 = vunpack.c.l.b16 %v1324
        %v1669 = vunpack.c.h.b16 %v1324
        %v1670 = vunpack.c.l.b16 %v1325
        %v1671 = vunpack.c.h.b16 %v1325
        %v1672 = vunpack.c.l.b16 %v1326
        %v1673 = vunpack.c.h.b16 %v1326
        %v1674 = vunpack.c.l.b16 %v1327
        %v1675 = vunpack.c.h.b16 %v1327
        %v1676 = vunpack.c.l.b16 %v1328
        %v1677 = vunpack.c.h.b16 %v1328
        %v1678 = vunpack.c.l.b16 %v1329
        %v1679 = vunpack.c.h.b16 %v1329
        %v1680 = vunpack.c.l.b16 %v1330
        %v1681 = vunpack.c.h.b16 %v1330
        %v1682 = vunpack.c.l.b16 %v1331
        %v1683 = vunpack.c.h.b16 %v1331
        %v1684 = vunpack.c.l.b16 %v1332
        %v1685 = vunpack.c.h.b16 %v1332
        %v1686 = vunpack.c.l.b16 %v1333
        %v1687 = vunpack.c.h.b16 %v1333
        %v1688 = vunpack.c.l.b16 %v1334
        %v1689 = vunpack.c.h.b16 %v1334
        %v1690 = vunpack.c.l.b16 %v1335
        %v1691 = vunpack.c.h.b16 %v1335
        %v1692 = vunpack.c.l.b16 %v1336
        %v1693 = vunpack.c.h.b16 %v1336
        %v1694 = vunpack.c.l.b16 %v1337
        %v1695 = vunpack.c.h.b16 %v1337
        %v1696 = vunpack.c.l.b16 %v1338
        %v1697 = vunpack.c.h.b16 %v1338
        %v1698 = vunpack.c.l.b16 %v1339
        %v1699 = vunpack.c.h.b16 %v1339
        %v1700 = vunpack.c.l.b16 %v1340
        %v1701 = vunpack.c.h.b16 %v1340
        %v1702 = vunpack.c.l.b16 %v1341
        %v1703 = vunpack.c.h.b16 %v1341
        %v1704 = vunpack.c.l.b16 %v1342
        %v1705 = vunpack.c.h.b16 %v1342
        %v1706 = vunpack.c.l.b16 %v1343
        %v1707 = vunpack.c.h.b16 %v1343
        %v1708 = vunpack.c.l.b16 %v1344
        %v1709 = vunpack.c.h.b16 %v1344
        %v1710 = vunpack.c.l.b16 %v1345
        %v1711 = vunpack.c.h.b16 %v1345
        %v1712 = vunpack.c.l.b16 %v1346
        %v1713 = vunpack.c.h.b16 %v1346
        %v1714 = vunpack.c.l.b16 %v1347
        %v1715 = vunpack.c.h.b16 %v1347
        %v1716 = vunpack.c.l.b16 %v1348
        %v1717 = vunpack.c.h.b16 %v1348
        %v1718 = vunpack.c.l.b16 %v1349
        %v1719 = vunpack.c.h.b16 %v1349
        %v1720 = vunpack.c.l.b16 %v1350
        %v1721 = vunpack.c.h.b16 %v1350
        %v1722 = vunpack.c.l.b16 %v1351
        %v1723 = vunpack.c.h.b16 %v1351
        %v1724 = vunpack.c.l.b16 %v1352
        %v1725 = vunpack.c.h.b16 %v1352
        %v1726 = vunpack.c.l.b16 %v1353
        %v1727 = vunpack.c.h.b16 %v1353
        %v1728 = vunpack.c.l.b16 %v1354
        %v1729 = vunpack.c.h.b16 %v1354
        %v1730 = vunpack.c.l.b16 %v1355
        %v1731 = vunpack.c.h.b16 %v1355
        %v1732 = vunpack.c.l.b16 %v1356
        %v1733 = vunpack.c.h.b16 %v1356
        %v1734 = vunpack.c.l.b16 %v1357
        %v1735 = vunpack.c.h.b16 %v1357
        %v1736 = vunpack.c.l.b16 %v1358
        %v1737 = vunpack.c.h.b16 %v1358
        %v1738 = vunpack.c.l.b16 %v1359
        %v1739 = vunpack.c.h.b16 %v1359
        %v1740 = vunpack.c.l.b16 %v1360
        %v1741 = vunpack.c.h.b16 %v1360
        %v1742 = vunpack.c.l.b16 %v1361
        %v1743 = vunpack.c.h.b16 %v1361
        %v1744 = vunpack.c.l.b16 %v1362
        %v1745 = vunpack.c.h.b16 %v1362
        %v1746 = vunpack.c.l.b16 %v1363
        %v1747 = vunpack.c.h.b16 %v1363
        %v1748 = vunpack.c.l.b16 %v1364
        %v1749 = vunpack.c.h.b16 %v1364
        %v1750 = vunpack.c.l.b16 %v1365
        %v1751 = vunpack.c.h.b16 %v1365
        %v1752 = vunpack.c.l.b16 %v1366
        %v1753 = vunpack.c.h.b16 %v1366
        %v1754 = vunpack.c.l.b16 %v1367
        %v1755 = vunpack.c.h.b16 %v1367
        %v1756 = vunpack.c.l.b16 %v1368
        %v1757 = vunpack.c.h.b16 %v1368
        %v1758 = vunpack.c.l.b16 %v1369
        %v1759 = vunpack.c.h.b16 %v1369
        %v1760 = vunpack.c.l.b16 %v1370
        %v1761 = vunpack.c.h.b16 %v1370
        %v1762 = vunpack.c.l.b16 %v1371
        %v1763 = vunpack.c.h.b16 %v1371
        %v1764 = vunpack.c.l.b16 %v1372
        %v1765 = vunpack.c.h.b16 %v1372
        %v1766 = vunpack.c.l.b16 %v1373
        %v1767 = vunpack.c.h.b16 %v1373
        %v1768 = vunpack.c.l.b16 %v1374
        %v1769 = vunpack.c.h.b16 %v1374
        %v1770 = vunpack.c.l.b16 %v1375
        %v1771 = vunpack.c.h.b16 %v1375
        %v1772 = vunpack.c.l.b16 %v1376
        %v1773 = vunpack.c.h.b16 %v1376
        %v1774 = vunpack.c.l.b16 %v1377
        %v1775 = vunpack.c.h.b16 %v1377
        %v1776 = vunpack.c.l.b16 %v1378
        %v1777 = vunpack.c.h.b16 %v1378
        %v1778 = vunpack.c.l.b16 %v1379
        %v1779 = vunpack.c.h.b16 %v1379
        %v1780 = vunpack.c.l.b16 %v1380
        %v1781 = vunpack.c.h.b16 %v1380
        %v1782 = vunpack.c.l.b16 %v1381
        %v1783 = vunpack.c.h.b16 %v1381
        %v1784 = vunpack.c.l.b16 %v1382
        %v1785 = vunpack.c.h.b16 %v1382
        %v1786 = vunpack.c.l.b16 %v1383
        %v1787 = vunpack.c.h.b16 %v1383
        %v1788 = vunpack.c.l.b16 %v1384
        %v1789 = vunpack.c.h.b16 %v1384
        %v1790 = vunpack.c.l.b16 %v1385
        %v1791 = vunpack.c.h.b16 %v1385
        %v1792 = vpack.c.b16 %v1540, %v1536
        %v1793 = vpack.c.b16 %v1541, %v1537
        %v1794 = vpack.c.b16 %v1542, %v1538
        %v1795 = vpack.c.b16 %v1543, %v1539
        %v1796 = vpack.c.b16 %v1548, %v1544
        %v1797 = vpack.c.b16 %v1549, %v1545
        %v1798 = vpack.c.b16 %v1550, %v1546
        %v1799 = vpack.c.b16 %v1551, %v1547
        %v1800 = vpack.c.b16 %v1556, %v1552
        %v1801 = vpack.c.b16 %v1557, %v1553
        %v1802 = vpack.c.b16 %v1558, %v1554
        %v1803 = vpack.c.b16 %v1559, %v1555
        %v1804 = vpack.c.b16 %v1564, %v1560
        %v1805 = vpack.c.b16 %v1565, %v1561
        %v1806 = vpack.c.b16 %v1566, %v1562
        %v1807 = vpack.c.b16 %v1567, %v1563
        %v1808 = vpack.c.b16 %v1572, %v1568
        %v1809 = vpack.c.b16 %v1573, %v1569
        %v1810 = vpack.c.b16 %v1574, %v1570
        %v1811 = vpack.c.b16 %v1575, %v1571
        %v1812 = vpack.c.b16 %v1580, %v1576
        %v1813 = vpack.c.b16 %v1581, %v1577
        %v1814 = vpack.c.b16 %v1582, %v1578
        %v1815 = vpack.c.b16 %v1583, %v1579
        %v1816 = vpack.c.b16 %v1588, %v1584
        %v1817 = vpack.c.b16 %v1589, %v1585
        %v1818 = vpack.c.b16 %v1590, %v1586
        %v1819 = vpack.c.b16 %v1591, %v1587
        %v1820 = vpack.c.b16 %v1596, %v1592
        %v1821 = vpack.c.b16 %v1597, %v1593
        %v1822 = vpack.c.b16 %v1598, %v1594
        %v1823 = vpack.c.b16 %v1599, %v1595
        %v1824 = vpack.c.b16 %v1604, %v1600
        %v1825 = vpack.c.b16 %v1605, %v1601
        %v1826 = vpack.c.b16 %v1606, %v1602
        %v1827 = vpack.c.b16 %v1607, %v1603
        %v1828 = vpack.c.b16 %v1612, %v1608
        %v1829 = vpack.c.b16 %v1613, %v1609
        %v1830 = vpack.c.b16 %v1614, %v1610
        %v1831 = vpack.c.b16 %v1615, %v1611
        %v1832 = vpack.c.b16 %v1620, %v1616
        %v1833 = vpack.c.b16 %v1621, %v1617
        %v1834 = vpack.c.b16 %v1622, %v1618
        %v1835 = vpack.c.b16 %v1623, %v1619
        %v1836 = vpack.c.b16 %v1628, %v1624
        %v1837 = vpack.c.b16 %v1629, %v1625
        %v1838 = vpack.c.b16 %v1630, %v1626
        %v1839 = vpack.c.b16 %v1631, %v1627
        %v1840 = vpack.c.b16 %v1636, %v1632
        %v1841 = vpack.c.b16 %v1637, %v1633
        %v1842 = vpack.c.b16 %v1638, %v1634
        %v1843 = vpack.c.b16 %v1639, %v1635
        %v1844 = vpack.c.b16 %v1644, %v1640
        %v1845 = vpack.c.b16 %v1645, %v1641
        %v1846 = vpack.c.b16 %v1646, %v1642
        %v1847 = vpack.c.b16 %v1647, %v1643
        %v1848 = vpack.c.b16 %v1652, %v1648
        %v1849 = vpack.c.b16 %v1653, %v1649
        %v1850 = vpack.c.b16 %v1654, %v1650
        %v1851 = vpack.c.b16 %v1655, %v1651
        %v1852 = vpack.c.b16 %v1660, %v1656
        %v1853 = vpack.c.b16 %v1661, %v1657
        %v1854 = vpack.c.b16 %v1662, %v1658
        %v1855 = vpack.c.b16 %v1663, %v1659
        %v1856 = vpack.c.b16 %v1668, %v1664
        %v1857 = vpack.c.b16 %v1669, %v1665
        %v1858 = vpack.c.b16 %v1670, %v1666
        %v1859 = vpack.c.b16 %v1671, %v1667
        %v1860 = vpack.c.b16 %v1676, %v1672
        %v1861 = vpack.c.b16 %v1677, %v1673
        %v1862 = vpack.c.b16 %v1678, %v1674
        %v1863 = vpack.c.b16 %v1679, %v1675
        %v1864 = vpack.c.b16 %v1684, %v1680
        %v1865 = vpack.c.b16 %v1685, %v1681
        %v1866 = vpack.c.b16 %v1686, %v1682
        %v1867 = vpack.c.b16 %v1687, %v1683
        %v1868 = vpack.c.b16 %v1692, %v1688
        %v1869 = vpack.c.b16 %v1693, %v1689
        %v1870 = vpack.c.b16 %v1694, %v1690
        %v1871 = vpack.c.b16 %v1695, %v1691
        %v1872 = vpack.c.b16 %v1700, %v1696
        %v1873 = vpack.c.b16 %v1701, %v1697
        %v1874 = vpack.c.b16 %v1702, %v1698
        %v1875 = vpack.c.b16 %v1703, %v1699
        %v1876 = vpack.c.b16 %v1708, %v1704
        %v1877 = vpack.c.b16 %v1709, %v1705
        %v1878 = vpack.c.b16 %v1710, %v1706
        %v1879 = vpack.c.b16 %v1711, %v1707
        %v1880 = vpack.c.b16 %v1716, %v1712
        %v1881 = vpack.c.b16 %v1717, %v1713
        %v1882 = vpack.c.b16 %v1718, %v1714
        %v1883 = vpack.c.b16 %v1719, %v1715
        %v1884 = vpack.c.b16 %v1724, %v1720
        %v1885 = vpack.c.b16 %v1725, %v1721
        %v1886 = vpack.c.b16 %v1726, %v1722
        %v1887 = vpack.c.b16 %v1727, %v1723
        %v1888 = vpack.c.b16 %v1732, %v1728
        %v1889 = vpack.c.b16 %v1733, %v1729
        %v1890 = vpack.c.b16 %v1734, %v1730
        %v1891 = vpack.c.b16 %v1735, %v1731
        %v1892 = vpack.c.b16 %v1740, %v1736
        %v1893 = vpack.c.b16 %v1741, %v1737
        %v1894 = vpack.c.b16 %v1742, %v1738
        %v1895 = vpack.c.b16 %v1743, %v1739
        %v1896 = vpack.c.b16 %v1748, %v1744
        %v1897 = vpack.c.b16 %v1749, %v1745
        %v1898 = vpack.c.b16 %v1750, %v1746
        %v1899 = vpack.c.b16 %v1751, %v1747
        %v1900 = vpack.c.b16 %v1756, %v1752
        %v1901 = vpack.c.b16 %v1757, %v1753
        %v1902 = vpack.c.b16 %v1758, %v1754
        %v1903 = vpack.c.b16 %v1759, %v1755
        %v1904 = vpack.c.b16 %v1764, %v1760
        %v1905 = vpack.c.b16 %v1765, %v1761
        %v1906 = vpack.c.b16 %v1766, %v1762
        %v1907 = vpack.c.b16 %v1767, %v1763
        %v1908 = vpack.c.b16 %v1772, %v1768
        %v1909 = vpack.c.b16 %v1773, %v1769
        %v1910 = vpack.c.b16 %v1774, %v1770
        %v1911 = vpack.c.b16 %v1775, %v1771
        %v1912 = vpack.c.b16 %v1780, %v1776
        %v1913 = vpack.c.b16 %v1781, %v1777
        %v1914 = vpack.c.b16 %v1782, %v1778
        %v1915 = vpack.c.b16 %v1783, %v1779
        %v1916 = vpack.c.b16 %v1788, %v1784
        %v1917 = vpack.c.b16 %v1789, %v1785
        %v1918 = vpack.c.b16 %v1790, %v1786
        %v1919 = vpack.c.b16 %v1791, %v1787
        %2048 = vmatprep.subr.bf16.mxu0 %v1793
        %2049 = vmatpush1.bf16.msra.mxu0 %v1792
        %2050 = vmatprep.subr.bf16.mxu0 %v1797
        %2051 = vmatpush1.bf16.msra.mxu0 %v1796
        %2052 = vmatprep.subr.bf16.mxu0 %v1801
        %2053 = vmatpush1.bf16.msra.mxu0 %v1800
        %2054 = vmatprep.subr.bf16.mxu0 %v1805
        %2055 = vmatpush1.bf16.msra.mxu0 %v1804
        %2056 = vmatprep.subr.bf16.mxu0 %v1809
        %2057 = vmatpush1.bf16.msra.mxu0 %v1808
        %2058 = vmatprep.subr.bf16.mxu0 %v1813
        %2059 = vmatpush1.bf16.msra.mxu0 %v1812
        %2060 = vmatprep.subr.bf16.mxu0 %v1817
        %2061 = vmatpush1.bf16.msra.mxu0 %v1816
        %2062 = vmatprep.subr.bf16.mxu0 %v1821
        %2063 = vmatpush1.bf16.msra.mxu0 %v1820
        %2064 = vmatprep.subr.bf16.mxu0 %v1825
        %2065 = vmatpush1.bf16.msra.mxu0 %v1824
        %2066 = vmatprep.subr.bf16.mxu0 %v1829
        %2067 = vmatpush1.bf16.msra.mxu0 %v1828
        %2068 = vmatprep.subr.bf16.mxu0 %v1833
        %2069 = vmatpush1.bf16.msra.mxu0 %v1832
        %2070 = vmatprep.subr.bf16.mxu0 %v1837
        %2071 = vmatpush1.bf16.msra.mxu0 %v1836
        %2072 = vmatprep.subr.bf16.mxu0 %v1841
        %2073 = vmatpush1.bf16.msra.mxu0 %v1840
        %2074 = vmatprep.subr.bf16.mxu0 %v1845
        %2075 = vmatpush1.bf16.msra.mxu0 %v1844
        %2076 = vmatprep.subr.bf16.mxu0 %v1849
        %2077 = vmatpush1.bf16.msra.mxu0 %v1848
        %2078 = vmatprep.subr.bf16.mxu0 %v1853
        %2079 = vmatpush1.bf16.msra.mxu0 %v1852
        %2080 = vmatprep.mubr.bf16.mxu0 %v1195
        %2081 = vmatmul.mubr.bf16.gmra.mrb[0].mxu0 %v1194
        %v2082 = vpop.f32.mrb[0].mxu0
        %v2083 = vadd.f32 %v1391, %v2082
        %v2084 = vpop.f32.mrb[0].mxu0
        %v2085 = vadd.f32 %v1395, %v2084
        %v2086 = vpop.f32.mrb[0].mxu0
        %v2087 = vadd.f32 %v1391, %v2086
        %v2088 = vpop.f32.mrb[0].mxu0
        %v2089 = vadd.f32 %v1395, %v2088
        %2090 = vmatprep.mubr.bf16.mxu0 %v1199
        %2091 = vmatmul.mubr.bf16.gmra.mrb[0].mxu0 %v1198
        %v2092 = vpop.f32.mrb[0].mxu0
        %v2093 = vadd.f32 %v1391, %v2092
        %v2094 = vpop.f32.mrb[0].mxu0
        %v2095 = vadd.f32 %v1395, %v2094
        %v2096 = vpop.f32.mrb[0].mxu0
        %v2097 = vadd.f32 %v1391, %v2096
        %v2098 = vpop.f32.mrb[0].mxu0
        %v2099 = vadd.f32 %v1395, %v2098
        %2100 = vmatprep.mubr.bf16.mxu0 %v1203
        %2101 = vmatmul.mubr.bf16.gmra.mrb[0].mxu0 %v1202
        %v2102 = vpop.f32.mrb[0].mxu0
        %v2103 = vadd.f32 %v1391, %v2102
        %v2104 = vpop.f32.mrb[0].mxu0
        %v2105 = vadd.f32 %v1395, %v2104
        %v2106 = vpop.f32.mrb[0].mxu0
        %v2107 = vadd.f32 %v1391, %v2106
        %v2108 = vpop.f32.mrb[0].mxu0
        %v2109 = vadd.f32 %v1395, %v2108
        %2110 = vmatprep.mubr.bf16.mxu0 %v1207
        %2111 = vmatmul.mubr.bf16.gmra.mrb[0].mxu0 %v1206
        %v2112 = vpop.f32.mrb[0].mxu0
        %v2113 = vadd.f32 %v1391, %v2112
        %v2114 = vpop.f32.mrb[0].mxu0
        %v2115 = vadd.f32 %v1395, %v2114
        %v2116 = vpop.f32.mrb[0].mxu0
        %v2117 = vadd.f32 %v1391, %v2116
        %v2118 = vpop.f32.mrb[0].mxu0
        %v2119 = vadd.f32 %v1395, %v2118
        %2120 = vmatprep.mubr.bf16.mxu0 %v1211
        %2121 = vmatmul.mubr.bf16.gmra.mrb[0].mxu0 %v1210
        %v2122 = vpop.f32.mrb[0].mxu0
        %v2123 = vadd.f32 %v1391, %v2122
        %v2124 = vpop.f32.mrb[0].mxu0
        %v2125 = vadd.f32 %v1395, %v2124
        %v2126 = vpop.f32.mrb[0].mxu0
        %v2127 = vadd.f32 %v1391, %v2126
        %v2128 = vpop.f32.mrb[0].mxu0
        %v2129 = vadd.f32 %v1395, %v2128
        %2130 = vmatprep.mubr.bf16.mxu0 %v1215
        %2131 = vmatmul.mubr.bf16.gmra.mrb[0].mxu0 %v1214
        %v2132 = vpop.f32.mrb[0].mxu0
        %v2133 = vadd.f32 %v1391, %v2132
        %v2134 = vpop.f32.mrb[0].mxu0
        %v2135 = vadd.f32 %v1395, %v2134
        %v2136 = vpop.f32.mrb[0].mxu0
        %v2137 = vadd.f32 %v1391, %v2136
        %v2138 = vpop.f32.mrb[0].mxu0
        %v2139 = vadd.f32 %v1395, %v2138
        %2140 = vmatprep.mubr.bf16.mxu0 %v1219
        %2141 = vmatmul.mubr.bf16.gmra.mrb[0].mxu0 %v1218
        %v2142 = vpop.f32.mrb[0].mxu0
        %v2143 = vadd.f32 %v1391, %v2142
        %v2144 = vpop.f32.mrb[0].mxu0
        %v2145 = vadd.f32 %v1395, %v2144
        %v2146 = vpop.f32.mrb[0].mxu0
        %v2147 = vadd.f32 %v1391, %v2146
        %v2148 = vpop.f32.mrb[0].mxu0
        %v2149 = vadd.f32 %v1395, %v2148
        %2150 = vmatprep.mubr.bf16.mxu0 %v1223
        %2151 = vmatmul.mubr.bf16.gmra.mrb[0].mxu0 %v1222
        %v2152 = vpop.f32.mrb[0].mxu0
        %v2153 = vadd.f32 %v1391, %v2152
        %v2154 = vpop.f32.mrb[0].mxu0
        %v2155 = vadd.f32 %v1395, %v2154
        %v2156 = vpop.f32.mrb[0].mxu0
        %v2157 = vadd.f32 %v1391, %v2156
        %v2158 = vpop.f32.mrb[0].mxu0
        %v2159 = vadd.f32 %v1395, %v2158
        %2160 = vmatprep.mubr.bf16.mxu0 %v1227
        %2161 = vmatmul.mubr.bf16.gmra.mrb[0].mxu0 %v1226
        %v2162 = vpop.f32.mrb[0].mxu0
        %v2163 = vadd.f32 %v1391, %v2162
        %v2164 = vpop.f32.mrb[0].mxu0
        %v2165 = vadd.f32 %v1395, %v2164
        %v2166 = vpop.f32.mrb[0].mxu0
        %v2167 = vadd.f32 %v1391, %v2166
        %v2168 = vpop.f32.mrb[0].mxu0
        %v2169 = vadd.f32 %v1395, %v2168
        %2170 = vmatprep.mubr.bf16.mxu0 %v1231
        %2171 = vmatmul.mubr.bf16.gmra.mrb[0].mxu0 %v1230
        %v2172 = vpop.f32.mrb[0].mxu0
        %v2173 = vadd.f32 %v1391, %v2172
        %v2174 = vpop.f32.mrb[0].mxu0
        %v2175 = vadd.f32 %v1395, %v2174
        %v2176 = vpop.f32.mrb[0].mxu0
        %v2177 = vadd.f32 %v1391, %v2176
        %v2178 = vpop.f32.mrb[0].mxu0
        %v2179 = vadd.f32 %v1395, %v2178
        %2180 = vmatprep.mubr.bf16.mxu0 %v1235
        %2181 = vmatmul.mubr.bf16.gmra.mrb[0].mxu0 %v1234
        %v2182 = vpop.f32.mrb[0].mxu0
        %v2183 = vadd.f32 %v1391, %v2182
        %v2184 = vpop.f32.mrb[0].mxu0
        %v2185 = vadd.f32 %v1395, %v2184
        %v2186 = vpop.f32.mrb[0].mxu0
        %v2187 = vadd.f32 %v1391, %v2186
        %v2188 = vpop.f32.mrb[0].mxu0
        %v2189 = vadd.f32 %v1395, %v2188
        %2190 = vmatprep.mubr.bf16.mxu0 %v1239
        %2191 = vmatmul.mubr.bf16.gmra.mrb[0].mxu0 %v1238
        %v2192 = vpop.f32.mrb[0].mxu0
        %v2193 = vadd.f32 %v1391, %v2192
        %v2194 = vpop.f32.mrb[0].mxu0
        %v2195 = vadd.f32 %v1395, %v2194
        %v2196 = vpop.f32.mrb[0].mxu0
        %v2197 = vadd.f32 %v1391, %v2196
        %v2198 = vpop.f32.mrb[0].mxu0
        %v2199 = vadd.f32 %v1395, %v2198
        %2200 = vmatprep.mubr.bf16.mxu0 %v1243
        %2201 = vmatmul.mubr.bf16.gmra.mrb[0].mxu0 %v1242
        %v2202 = vpop.f32.mrb[0].mxu0
        %v2203 = vadd.f32 %v1391, %v2202
        %v2204 = vpop.f32.mrb[0].mxu0
        %v2205 = vadd.f32 %v1395, %v2204
        %v2206 = vpop.f32.mrb[0].mxu0
        %v2207 = vadd.f32 %v1391, %v2206
        %v2208 = vpop.f32.mrb[0].mxu0
        %v2209 = vadd.f32 %v1395, %v2208
        %2210 = vmatprep.mubr.bf16.mxu0 %v1247
        %2211 = vmatmul.mubr.bf16.gmra.mrb[0].mxu0 %v1246
        %v2212 = vpop.f32.mrb[0].mxu0
        %v2213 = vadd.f32 %v1391, %v2212
        %v2214 = vpop.f32.mrb[0].mxu0
        %v2215 = vadd.f32 %v1395, %v2214
        %v2216 = vpop.f32.mrb[0].mxu0
        %v2217 = vadd.f32 %v1391, %v2216
        %v2218 = vpop.f32.mrb[0].mxu0
        %v2219 = vadd.f32 %v1395, %v2218
        %2220 = vmatprep.mubr.bf16.mxu0 %v1251
        %2221 = vmatmul.mubr.bf16.gmra.mrb[0].mxu0 %v1250
        %v2222 = vpop.f32.mrb[0].mxu0
        %v2223 = vadd.f32 %v1391, %v2222
        %v2224 = vpop.f32.mrb[0].mxu0
        %v2225 = vadd.f32 %v1395, %v2224
        %v2226 = vpop.f32.mrb[0].mxu0
        %v2227 = vadd.f32 %v1391, %v2226
        %v2228 = vpop.f32.mrb[0].mxu0
        %v2229 = vadd.f32 %v1395, %v2228
        %2230 = vmatprep.mubr.bf16.mxu0 %v1255
        %2231 = vmatmul.mubr.bf16.gmra.mrb[0].mxu0 %v1254
        %v2232 = vpop.f32.mrb[0].mxu0
        %v2233 = vadd.f32 %v1391, %v2232
        %v2234 = vpop.f32.mrb[0].mxu0
        %v2235 = vadd.f32 %v1395, %v2234
        %v2236 = vpop.f32.mrb[0].mxu0
        %v2237 = vadd.f32 %v1391, %v2236
        %v2238 = vpop.f32.mrb[0].mxu0
        %v2239 = vadd.f32 %v1395, %v2238
        %2240 = vdwg.mxu0
        %2241 = vmatprep.subr.bf16.mxu0 %v1857
        %2242 = vmatpush1.bf16.msra.mxu0 %v1856
        %2243 = vmatprep.subr.bf16.mxu0 %v1861
        %2244 = vmatpush1.bf16.msra.mxu0 %v1860
        %2245 = vmatprep.subr.bf16.mxu0 %v1865
        %2246 = vmatpush1.bf16.msra.mxu0 %v1864
        %2247 = vmatprep.subr.bf16.mxu0 %v1869
        %2248 = vmatpush1.bf16.msra.mxu0 %v1868
        %2249 = vmatprep.subr.bf16.mxu0 %v1873
        %2250 = vmatpush1.bf16.msra.mxu0 %v1872
        %2251 = vmatprep.subr.bf16.mxu0 %v1877
        %2252 = vmatpush1.bf16.msra.mxu0 %v1876
        %2253 = vmatprep.subr.bf16.mxu0 %v1881
        %2254 = vmatpush1.bf16.msra.mxu0 %v1880
        %2255 = vmatprep.subr.bf16.mxu0 %v1885
        %2256 = vmatpush1.bf16.msra.mxu0 %v1884
        %2257 = vmatprep.subr.bf16.mxu0 %v1889
        %2258 = vmatpush1.bf16.msra.mxu0 %v1888
        %2259 = vmatprep.subr.bf16.mxu0 %v1893
        %2260 = vmatpush1.bf16.msra.mxu0 %v1892
        %2261 = vmatprep.subr.bf16.mxu0 %v1897
        %2262 = vmatpush1.bf16.msra.mxu0 %v1896
        %2263 = vmatprep.subr.bf16.mxu0 %v1901
        %2264 = vmatpush1.bf16.msra.mxu0 %v1900
        %2265 = vmatprep.subr.bf16.mxu0 %v1905
        %2266 = vmatpush1.bf16.msra.mxu0 %v1904
        %2267 = vmatprep.subr.bf16.mxu0 %v1909
        %2268 = vmatpush1.bf16.msra.mxu0 %v1908
        %2269 = vmatprep.subr.bf16.mxu0 %v1913
        %2270 = vmatpush1.bf16.msra.mxu0 %v1912
        %2271 = vmatprep.subr.bf16.mxu0 %v1917
        %2272 = vmatpush1.bf16.msra.mxu0 %v1916
        %2273 = vmatprep.mubr.bf16.mxu0 %v1197
        %2274 = vmatmul.mubr.bf16.gmra.mrb[0].mxu0 %v1196
        %v2275 = vpop.f32.mrb[0].mxu0
        %v2276 = vadd.f32 %v2083, %v2275
        %v2277 = vpop.f32.mrb[0].mxu0
        %v2278 = vadd.f32 %v2085, %v2277
        %v2279 = vpop.f32.mrb[0].mxu0
        %v2280 = vadd.f32 %v2087, %v2279
        %v2281 = vpop.f32.mrb[0].mxu0
        %v2282 = vadd.f32 %v2089, %v2281
        %2283 = vmatprep.mubr.bf16.mxu0 %v1201
        %2284 = vmatmul.mubr.bf16.gmra.mrb[0].mxu0 %v1200
        %v2285 = vpop.f32.mrb[0].mxu0
        %v2286 = vadd.f32 %v2093, %v2285
        %v2287 = vpop.f32.mrb[0].mxu0
        %v2288 = vadd.f32 %v2095, %v2287
        %v2289 = vpop.f32.mrb[0].mxu0
        %v2290 = vadd.f32 %v2097, %v2289
        %v2291 = vpop.f32.mrb[0].mxu0
        %v2292 = vadd.f32 %v2099, %v2291
        %2293 = vmatprep.mubr.bf16.mxu0 %v1205
        %2294 = vmatmul.mubr.bf16.gmra.mrb[0].mxu0 %v1204
        %v2295 = vpop.f32.mrb[0].mxu0
        %v2296 = vadd.f32 %v2103, %v2295
        %v2297 = vpop.f32.mrb[0].mxu0
        %v2298 = vadd.f32 %v2105, %v2297
        %v2299 = vpop.f32.mrb[0].mxu0
        %v2300 = vadd.f32 %v2107, %v2299
        %v2301 = vpop.f32.mrb[0].mxu0
        %v2302 = vadd.f32 %v2109, %v2301
        %2303 = vmatprep.mubr.bf16.mxu0 %v1209
        %2304 = vmatmul.mubr.bf16.gmra.mrb[0].mxu0 %v1208
        %v2305 = vpop.f32.mrb[0].mxu0
        %v2306 = vadd.f32 %v2113, %v2305
        %v2307 = vpop.f32.mrb[0].mxu0
        %v2308 = vadd.f32 %v2115, %v2307
        %v2309 = vpop.f32.mrb[0].mxu0
        %v2310 = vadd.f32 %v2117, %v2309
        %v2311 = vpop.f32.mrb[0].mxu0
        %v2312 = vadd.f32 %v2119, %v2311
        %2313 = vmatprep.mubr.bf16.mxu0 %v1213
        %2314 = vmatmul.mubr.bf16.gmra.mrb[0].mxu0 %v1212
        %v2315 = vpop.f32.mrb[0].mxu0
        %v2316 = vadd.f32 %v2123, %v2315
        %v2317 = vpop.f32.mrb[0].mxu0
        %v2318 = vadd.f32 %v2125, %v2317
        %v2319 = vpop.f32.mrb[0].mxu0
        %v2320 = vadd.f32 %v2127, %v2319
        %v2321 = vpop.f32.mrb[0].mxu0
        %v2322 = vadd.f32 %v2129, %v2321
        %2323 = vmatprep.mubr.bf16.mxu0 %v1217
        %2324 = vmatmul.mubr.bf16.gmra.mrb[0].mxu0 %v1216
        %v2325 = vpop.f32.mrb[0].mxu0
        %v2326 = vadd.f32 %v2133, %v2325
        %v2327 = vpop.f32.mrb[0].mxu0
        %v2328 = vadd.f32 %v2135, %v2327
        %v2329 = vpop.f32.mrb[0].mxu0
        %v2330 = vadd.f32 %v2137, %v2329
        %v2331 = vpop.f32.mrb[0].mxu0
        %v2332 = vadd.f32 %v2139, %v2331
        %2333 = vmatprep.mubr.bf16.mxu0 %v1221
        %2334 = vmatmul.mubr.bf16.gmra.mrb[0].mxu0 %v1220
        %v2335 = vpop.f32.mrb[0].mxu0
        %v2336 = vadd.f32 %v2143, %v2335
        %v2337 = vpop.f32.mrb[0].mxu0
        %v2338 = vadd.f32 %v2145, %v2337
        %v2339 = vpop.f32.mrb[0].mxu0
        %v2340 = vadd.f32 %v2147, %v2339
        %v2341 = vpop.f32.mrb[0].mxu0
        %v2342 = vadd.f32 %v2149, %v2341
        %2343 = vmatprep.mubr.bf16.mxu0 %v1225
        %2344 = vmatmul.mubr.bf16.gmra.mrb[0].mxu0 %v1224
        %v2345 = vpop.f32.mrb[0].mxu0
        %v2346 = vadd.f32 %v2153, %v2345
        %v2347 = vpop.f32.mrb[0].mxu0
        %v2348 = vadd.f32 %v2155, %v2347
        %v2349 = vpop.f32.mrb[0].mxu0
        %v2350 = vadd.f32 %v2157, %v2349
        %v2351 = vpop.f32.mrb[0].mxu0
        %v2352 = vadd.f32 %v2159, %v2351
        %2353 = vmatprep.mubr.bf16.mxu0 %v1229
        %2354 = vmatmul.mubr.bf16.gmra.mrb[0].mxu0 %v1228
        %v2355 = vpop.f32.mrb[0].mxu0
        %v2356 = vadd.f32 %v2163, %v2355
        %v2357 = vpop.f32.mrb[0].mxu0
        %v2358 = vadd.f32 %v2165, %v2357
        %v2359 = vpop.f32.mrb[0].mxu0
        %v2360 = vadd.f32 %v2167, %v2359
        %v2361 = vpop.f32.mrb[0].mxu0
        %v2362 = vadd.f32 %v2169, %v2361
        %2363 = vmatprep.mubr.bf16.mxu0 %v1233
        %2364 = vmatmul.mubr.bf16.gmra.mrb[0].mxu0 %v1232
        %v2365 = vpop.f32.mrb[0].mxu0
        %v2366 = vadd.f32 %v2173, %v2365
        %v2367 = vpop.f32.mrb[0].mxu0
        %v2368 = vadd.f32 %v2175, %v2367
        %v2369 = vpop.f32.mrb[0].mxu0
        %v2370 = vadd.f32 %v2177, %v2369
        %v2371 = vpop.f32.mrb[0].mxu0
        %v2372 = vadd.f32 %v2179, %v2371
        %2373 = vmatprep.mubr.bf16.mxu0 %v1237
        %2374 = vmatmul.mubr.bf16.gmra.mrb[0].mxu0 %v1236
        %v2375 = vpop.f32.mrb[0].mxu0
        %v2376 = vadd.f32 %v2183, %v2375
        %v2377 = vpop.f32.mrb[0].mxu0
        %v2378 = vadd.f32 %v2185, %v2377
        %v2379 = vpop.f32.mrb[0].mxu0
        %v2380 = vadd.f32 %v2187, %v2379
        %v2381 = vpop.f32.mrb[0].mxu0
        %v2382 = vadd.f32 %v2189, %v2381
        %2383 = vmatprep.mubr.bf16.mxu0 %v1241
        %2384 = vmatmul.mubr.bf16.gmra.mrb[0].mxu0 %v1240
        %v2385 = vpop.f32.mrb[0].mxu0
        %v2386 = vadd.f32 %v2193, %v2385
        %v2387 = vpop.f32.mrb[0].mxu0
        %v2388 = vadd.f32 %v2195, %v2387
        %v2389 = vpop.f32.mrb[0].mxu0
        %v2390 = vadd.f32 %v2197, %v2389
        %v2391 = vpop.f32.mrb[0].mxu0
        %v2392 = vadd.f32 %v2199, %v2391
        %2393 = vmatprep.mubr.bf16.mxu0 %v1245
        %2394 = vmatmul.mubr.bf16.gmra.mrb[0].mxu0 %v1244
        %v2395 = vpop.f32.mrb[0].mxu0
        %v2396 = vadd.f32 %v2203, %v2395
        %v2397 = vpop.f32.mrb[0].mxu0
        %v2398 = vadd.f32 %v2205, %v2397
        %v2399 = vpop.f32.mrb[0].mxu0
        %v2400 = vadd.f32 %v2207, %v2399
        %v2401 = vpop.f32.mrb[0].mxu0
        %v2402 = vadd.f32 %v2209, %v2401
        %2403 = vmatprep.mubr.bf16.mxu0 %v1249
        %2404 = vmatmul.mubr.bf16.gmra.mrb[0].mxu0 %v1248
        %v2405 = vpop.f32.mrb[0].mxu0
        %v2406 = vadd.f32 %v2213, %v2405
        %v2407 = vpop.f32.mrb[0].mxu0
        %v2408 = vadd.f32 %v2215, %v2407
        %v2409 = vpop.f32.mrb[0].mxu0
        %v2410 = vadd.f32 %v2217, %v2409
        %v2411 = vpop.f32.mrb[0].mxu0
        %v2412 = vadd.f32 %v2219, %v2411
        %2413 = vmatprep.mubr.bf16.mxu0 %v1253
        %2414 = vmatmul.mubr.bf16.gmra.mrb[0].mxu0 %v1252
        %v2415 = vpop.f32.mrb[0].mxu0
        %v2416 = vadd.f32 %v2223, %v2415
        %v2417 = vpop.f32.mrb[0].mxu0
        %v2418 = vadd.f32 %v2225, %v2417
        %v2419 = vpop.f32.mrb[0].mxu0
        %v2420 = vadd.f32 %v2227, %v2419
        %v2421 = vpop.f32.mrb[0].mxu0
        %v2422 = vadd.f32 %v2229, %v2421
        %2423 = vmatprep.mubr.bf16.mxu0 %v1257
        %2424 = vmatmul.mubr.bf16.gmra.mrb[0].mxu0 %v1256
        %v2425 = vpop.f32.mrb[0].mxu0
        %v2426 = vadd.f32 %v2233, %v2425
        %v2427 = vpop.f32.mrb[0].mxu0
        %v2428 = vadd.f32 %v2235, %v2427
        %v2429 = vpop.f32.mrb[0].mxu0
        %v2430 = vadd.f32 %v2237, %v2429
        %v2431 = vpop.f32.mrb[0].mxu0
        %v2432 = vadd.f32 %v2239, %v2431
        %2433 = vdwg.mxu0
        %2434 = vmatprep.subr.bf16.mxu0 %v1795
        %2435 = vmatpush1.bf16.msra.mxu0 %v1794
        %2436 = vmatprep.subr.bf16.mxu0 %v1799
        %2437 = vmatpush1.bf16.msra.mxu0 %v1798
        %2438 = vmatprep.subr.bf16.mxu0 %v1803
        %2439 = vmatpush1.bf16.msra.mxu0 %v1802
        %2440 = vmatprep.subr.bf16.mxu0 %v1807
        %2441 = vmatpush1.bf16.msra.mxu0 %v1806
        %2442 = vmatprep.subr.bf16.mxu0 %v1811
        %2443 = vmatpush1.bf16.msra.mxu0 %v1810
        %2444 = vmatprep.subr.bf16.mxu0 %v1815
        %2445 = vmatpush1.bf16.msra.mxu0 %v1814
        %2446 = vmatprep.subr.bf16.mxu0 %v1819
        %2447 = vmatpush1.bf16.msra.mxu0 %v1818
        %2448 = vmatprep.subr.bf16.mxu0 %v1823
        %2449 = vmatpush1.bf16.msra.mxu0 %v1822
        %2450 = vmatprep.subr.bf16.mxu0 %v1827
        %2451 = vmatpush1.bf16.msra.mxu0 %v1826
        %2452 = vmatprep.subr.bf16.mxu0 %v1831
        %2453 = vmatpush1.bf16.msra.mxu0 %v1830
        %2454 = vmatprep.subr.bf16.mxu0 %v1835
        %2455 = vmatpush1.bf16.msra.mxu0 %v1834
        %2456 = vmatprep.subr.bf16.mxu0 %v1839
        %2457 = vmatpush1.bf16.msra.mxu0 %v1838
        %2458 = vmatprep.subr.bf16.mxu0 %v1843
        %2459 = vmatpush1.bf16.msra.mxu0 %v1842
        %2460 = vmatprep.subr.bf16.mxu0 %v1847
        %2461 = vmatpush1.bf16.msra.mxu0 %v1846
        %2462 = vmatprep.subr.bf16.mxu0 %v1851
        %2463 = vmatpush1.bf16.msra.mxu0 %v1850
        %2464 = vmatprep.subr.bf16.mxu0 %v1855
        %2465 = vmatpush1.bf16.msra.mxu0 %v1854
        %2466 = vmatprep.mubr.bf16.mxu0 %v1195
        %2467 = vmatmul.mubr.bf16.gmra.mrb[0].mxu0 %v1194
        %v2468 = vpop.f32.mrb[0].mxu0
        %v2469 = vadd.f32 %v1399, %v2468
        %v2470 = vpop.f32.mrb[0].mxu0
        %v2471 = vadd.f32 %v1403, %v2470
        %v2472 = vpop.f32.mrb[0].mxu0
        %v2473 = vadd.f32 %v1399, %v2472
        %v2474 = vpop.f32.mrb[0].mxu0
        %v2475 = vadd.f32 %v1403, %v2474
        %2476 = vmatprep.mubr.bf16.mxu0 %v1199
        %2477 = vmatmul.mubr.bf16.gmra.mrb[0].mxu0 %v1198
        %v2478 = vpop.f32.mrb[0].mxu0
        %v2479 = vadd.f32 %v1399, %v2478
        %v2480 = vpop.f32.mrb[0].mxu0
        %v2481 = vadd.f32 %v1403, %v2480
        %v2482 = vpop.f32.mrb[0].mxu0
        %v2483 = vadd.f32 %v1399, %v2482
        %v2484 = vpop.f32.mrb[0].mxu0
        %v2485 = vadd.f32 %v1403, %v2484
        %2486 = vmatprep.mubr.bf16.mxu0 %v1203
        %2487 = vmatmul.mubr.bf16.gmra.mrb[0].mxu0 %v1202
        %v2488 = vpop.f32.mrb[0].mxu0
        %v2489 = vadd.f32 %v1399, %v2488
        %v2490 = vpop.f32.mrb[0].mxu0
        %v2491 = vadd.f32 %v1403, %v2490
        %v2492 = vpop.f32.mrb[0].mxu0
        %v2493 = vadd.f32 %v1399, %v2492
        %v2494 = vpop.f32.mrb[0].mxu0
        %v2495 = vadd.f32 %v1403, %v2494
        %2496 = vmatprep.mubr.bf16.mxu0 %v1207
        %2497 = vmatmul.mubr.bf16.gmra.mrb[0].mxu0 %v1206
        %v2498 = vpop.f32.mrb[0].mxu0
        %v2499 = vadd.f32 %v1399, %v2498
        %v2500 = vpop.f32.mrb[0].mxu0
        %v2501 = vadd.f32 %v1403, %v2500
        %v2502 = vpop.f32.mrb[0].mxu0
        %v2503 = vadd.f32 %v1399, %v2502
        %v2504 = vpop.f32.mrb[0].mxu0
        %v2505 = vadd.f32 %v1403, %v2504
        %2506 = vmatprep.mubr.bf16.mxu0 %v1211
        %2507 = vmatmul.mubr.bf16.gmra.mrb[0].mxu0 %v1210
        %v2508 = vpop.f32.mrb[0].mxu0
        %v2509 = vadd.f32 %v1399, %v2508
        %v2510 = vpop.f32.mrb[0].mxu0
        %v2511 = vadd.f32 %v1403, %v2510
        %v2512 = vpop.f32.mrb[0].mxu0
        %v2513 = vadd.f32 %v1399, %v2512
        %v2514 = vpop.f32.mrb[0].mxu0
        %v2515 = vadd.f32 %v1403, %v2514
        %2516 = vmatprep.mubr.bf16.mxu0 %v1215
        %2517 = vmatmul.mubr.bf16.gmra.mrb[0].mxu0 %v1214
        %v2518 = vpop.f32.mrb[0].mxu0
        %v2519 = vadd.f32 %v1399, %v2518
        %v2520 = vpop.f32.mrb[0].mxu0
        %v2521 = vadd.f32 %v1403, %v2520
        %v2522 = vpop.f32.mrb[0].mxu0
        %v2523 = vadd.f32 %v1399, %v2522
        %v2524 = vpop.f32.mrb[0].mxu0
        %v2525 = vadd.f32 %v1403, %v2524
        %2526 = vmatprep.mubr.bf16.mxu0 %v1219
        %2527 = vmatmul.mubr.bf16.gmra.mrb[0].mxu0 %v1218
        %v2528 = vpop.f32.mrb[0].mxu0
        %v2529 = vadd.f32 %v1399, %v2528
        %v2530 = vpop.f32.mrb[0].mxu0
        %v2531 = vadd.f32 %v1403, %v2530
        %v2532 = vpop.f32.mrb[0].mxu0
        %v2533 = vadd.f32 %v1399, %v2532
        %v2534 = vpop.f32.mrb[0].mxu0
        %v2535 = vadd.f32 %v1403, %v2534
        %2536 = vmatprep.mubr.bf16.mxu0 %v1223
        %2537 = vmatmul.mubr.bf16.gmra.mrb[0].mxu0 %v1222
        %v2538 = vpop.f32.mrb[0].mxu0
        %v2539 = vadd.f32 %v1399, %v2538
        %v2540 = vpop.f32.mrb[0].mxu0
        %v2541 = vadd.f32 %v1403, %v2540
        %v2542 = vpop.f32.mrb[0].mxu0
        %v2543 = vadd.f32 %v1399, %v2542
        %v2544 = vpop.f32.mrb[0].mxu0
        %v2545 = vadd.f32 %v1403, %v2544
        %2546 = vmatprep.mubr.bf16.mxu0 %v1227
        %2547 = vmatmul.mubr.bf16.gmra.mrb[0].mxu0 %v1226
        %v2548 = vpop.f32.mrb[0].mxu0
        %v2549 = vadd.f32 %v1399, %v2548
        %v2550 = vpop.f32.mrb[0].mxu0
        %v2551 = vadd.f32 %v1403, %v2550
        %v2552 = vpop.f32.mrb[0].mxu0
        %v2553 = vadd.f32 %v1399, %v2552
        %v2554 = vpop.f32.mrb[0].mxu0
        %v2555 = vadd.f32 %v1403, %v2554
        %2556 = vmatprep.mubr.bf16.mxu0 %v1231
        %2557 = vmatmul.mubr.bf16.gmra.mrb[0].mxu0 %v1230
        %v2558 = vpop.f32.mrb[0].mxu0
        %v2559 = vadd.f32 %v1399, %v2558
        %v2560 = vpop.f32.mrb[0].mxu0
        %v2561 = vadd.f32 %v1403, %v2560
        %v2562 = vpop.f32.mrb[0].mxu0
        %v2563 = vadd.f32 %v1399, %v2562
        %v2564 = vpop.f32.mrb[0].mxu0
        %v2565 = vadd.f32 %v1403, %v2564
        %2566 = vmatprep.mubr.bf16.mxu0 %v1235
        %2567 = vmatmul.mubr.bf16.gmra.mrb[0].mxu0 %v1234
        %v2568 = vpop.f32.mrb[0].mxu0
        %v2569 = vadd.f32 %v1399, %v2568
        %v2570 = vpop.f32.mrb[0].mxu0
        %v2571 = vadd.f32 %v1403, %v2570
        %v2572 = vpop.f32.mrb[0].mxu0
        %v2573 = vadd.f32 %v1399, %v2572
        %v2574 = vpop.f32.mrb[0].mxu0
        %v2575 = vadd.f32 %v1403, %v2574
        %2576 = vmatprep.mubr.bf16.mxu0 %v1239
        %2577 = vmatmul.mubr.bf16.gmra.mrb[0].mxu0 %v1238
        %v2578 = vpop.f32.mrb[0].mxu0
        %v2579 = vadd.f32 %v1399, %v2578
        %v2580 = vpop.f32.mrb[0].mxu0
        %v2581 = vadd.f32 %v1403, %v2580
        %v2582 = vpop.f32.mrb[0].mxu0
        %v2583 = vadd.f32 %v1399, %v2582
        %v2584 = vpop.f32.mrb[0].mxu0
        %v2585 = vadd.f32 %v1403, %v2584
        %2586 = vmatprep.mubr.bf16.mxu0 %v1243
        %2587 = vmatmul.mubr.bf16.gmra.mrb[0].mxu0 %v1242
        %v2588 = vpop.f32.mrb[0].mxu0
        %v2589 = vadd.f32 %v1399, %v2588
        %v2590 = vpop.f32.mrb[0].mxu0
        %v2591 = vadd.f32 %v1403, %v2590
        %v2592 = vpop.f32.mrb[0].mxu0
        %v2593 = vadd.f32 %v1399, %v2592
        %v2594 = vpop.f32.mrb[0].mxu0
        %v2595 = vadd.f32 %v1403, %v2594
        %2596 = vmatprep.mubr.bf16.mxu0 %v1247
        %2597 = vmatmul.mubr.bf16.gmra.mrb[0].mxu0 %v1246
        %v2598 = vpop.f32.mrb[0].mxu0
        %v2599 = vadd.f32 %v1399, %v2598
        %v2600 = vpop.f32.mrb[0].mxu0
        %v2601 = vadd.f32 %v1403, %v2600
        %v2602 = vpop.f32.mrb[0].mxu0
        %v2603 = vadd.f32 %v1399, %v2602
        %v2604 = vpop.f32.mrb[0].mxu0
        %v2605 = vadd.f32 %v1403, %v2604
        %2606 = vmatprep.mubr.bf16.mxu0 %v1251
        %2607 = vmatmul.mubr.bf16.gmra.mrb[0].mxu0 %v1250
        %v2608 = vpop.f32.mrb[0].mxu0
        %v2609 = vadd.f32 %v1399, %v2608
        %v2610 = vpop.f32.mrb[0].mxu0
        %v2611 = vadd.f32 %v1403, %v2610
        %v2612 = vpop.f32.mrb[0].mxu0
        %v2613 = vadd.f32 %v1399, %v2612
        %v2614 = vpop.f32.mrb[0].mxu0
        %v2615 = vadd.f32 %v1403, %v2614
        %2616 = vmatprep.mubr.bf16.mxu0 %v1255
        %2617 = vmatmul.mubr.bf16.gmra.mrb[0].mxu0 %v1254
        %v2618 = vpop.f32.mrb[0].mxu0
        %v2619 = vadd.f32 %v1399, %v2618
        %v2620 = vpop.f32.mrb[0].mxu0
        %v2621 = vadd.f32 %v1403, %v2620
        %v2622 = vpop.f32.mrb[0].mxu0
        %v2623 = vadd.f32 %v1399, %v2622
        %v2624 = vpop.f32.mrb[0].mxu0
        %v2625 = vadd.f32 %v1403, %v2624
        %2626 = vdwg.mxu0
        %2627 = vmatprep.subr.bf16.mxu0 %v1859
        %2628 = vmatpush1.bf16.msra.mxu0 %v1858
        %2629 = vmatprep.subr.bf16.mxu0 %v1863
        %2630 = vmatpush1.bf16.msra.mxu0 %v1862
        %2631 = vmatprep.subr.bf16.mxu0 %v1867
        %2632 = vmatpush1.bf16.msra.mxu0 %v1866
        %2633 = vmatprep.subr.bf16.mxu0 %v1871
        %2634 = vmatpush1.bf16.msra.mxu0 %v1870
        %2635 = vmatprep.subr.bf16.mxu0 %v1875
        %2636 = vmatpush1.bf16.msra.mxu0 %v1874
        %2637 = vmatprep.subr.bf16.mxu0 %v1879
        %2638 = vmatpush1.bf16.msra.mxu0 %v1878
        %2639 = vmatprep.subr.bf16.mxu0 %v1883
        %2640 = vmatpush1.bf16.msra.mxu0 %v1882
        %2641 = vmatprep.subr.bf16.mxu0 %v1887
        %2642 = vmatpush1.bf16.msra.mxu0 %v1886
        %2643 = vmatprep.subr.bf16.mxu0 %v1891
        %2644 = vmatpush1.bf16.msra.mxu0 %v1890
        %2645 = vmatprep.subr.bf16.mxu0 %v1895
        %2646 = vmatpush1.bf16.msra.mxu0 %v1894
        %2647 = vmatprep.subr.bf16.mxu0 %v1899
        %2648 = vmatpush1.bf16.msra.mxu0 %v1898
        %2649 = vmatprep.subr.bf16.mxu0 %v1903
        %2650 = vmatpush1.bf16.msra.mxu0 %v1902
        %2651 = vmatprep.subr.bf16.mxu0 %v1907
        %2652 = vmatpush1.bf16.msra.mxu0 %v1906
        %2653 = vmatprep.subr.bf16.mxu0 %v1911
        %2654 = vmatpush1.bf16.msra.mxu0 %v1910
        %2655 = vmatprep.subr.bf16.mxu0 %v1915
        %2656 = vmatpush1.bf16.msra.mxu0 %v1914
        %2657 = vmatprep.subr.bf16.mxu0 %v1919
        %2658 = vmatpush1.bf16.msra.mxu0 %v1918
        %2659 = vmatprep.mubr.bf16.mxu0 %v1197
        %2660 = vmatmul.mubr.bf16.gmra.mrb[0].mxu0 %v1196
        %v2661 = vpop.f32.mrb[0].mxu0
        %v2662 = vadd.f32 %v2469, %v2661
        %v2663 = vpop.f32.mrb[0].mxu0
        %v2664 = vadd.f32 %v2471, %v2663
        %v2665 = vpop.f32.mrb[0].mxu0
        %v2666 = vadd.f32 %v2473, %v2665
        %v2667 = vpop.f32.mrb[0].mxu0
        %v2668 = vadd.f32 %v2475, %v2667
        %2669 = vmatprep.mubr.bf16.mxu0 %v1201
        %2670 = vmatmul.mubr.bf16.gmra.mrb[0].mxu0 %v1200
        %v2671 = vpop.f32.mrb[0].mxu0
        %v2672 = vadd.f32 %v2479, %v2671
        %v2673 = vpop.f32.mrb[0].mxu0
        %v2674 = vadd.f32 %v2481, %v2673
        %v2675 = vpop.f32.mrb[0].mxu0
        %v2676 = vadd.f32 %v2483, %v2675
        %v2677 = vpop.f32.mrb[0].mxu0
        %v2678 = vadd.f32 %v2485, %v2677
        %2679 = vmatprep.mubr.bf16.mxu0 %v1205
        %2680 = vmatmul.mubr.bf16.gmra.mrb[0].mxu0 %v1204
        %v2681 = vpop.f32.mrb[0].mxu0
        %v2682 = vadd.f32 %v2489, %v2681
        %v2683 = vpop.f32.mrb[0].mxu0
        %v2684 = vadd.f32 %v2491, %v2683
        %v2685 = vpop.f32.mrb[0].mxu0
        %v2686 = vadd.f32 %v2493, %v2685
        %v2687 = vpop.f32.mrb[0].mxu0
        %v2688 = vadd.f32 %v2495, %v2687
        %2689 = vmatprep.mubr.bf16.mxu0 %v1209
        %2690 = vmatmul.mubr.bf16.gmra.mrb[0].mxu0 %v1208
        %v2691 = vpop.f32.mrb[0].mxu0
        %v2692 = vadd.f32 %v2499, %v2691
        %v2693 = vpop.f32.mrb[0].mxu0
        %v2694 = vadd.f32 %v2501, %v2693
        %v2695 = vpop.f32.mrb[0].mxu0
        %v2696 = vadd.f32 %v2503, %v2695
        %v2697 = vpop.f32.mrb[0].mxu0
        %v2698 = vadd.f32 %v2505, %v2697
        %2699 = vmatprep.mubr.bf16.mxu0 %v1213
        %2700 = vmatmul.mubr.bf16.gmra.mrb[0].mxu0 %v1212
        %v2701 = vpop.f32.mrb[0].mxu0
        %v2702 = vadd.f32 %v2509, %v2701
        %v2703 = vpop.f32.mrb[0].mxu0
        %v2704 = vadd.f32 %v2511, %v2703
        %v2705 = vpop.f32.mrb[0].mxu0
        %v2706 = vadd.f32 %v2513, %v2705
        %v2707 = vpop.f32.mrb[0].mxu0
        %v2708 = vadd.f32 %v2515, %v2707
        %2709 = vmatprep.mubr.bf16.mxu0 %v1217
        %2710 = vmatmul.mubr.bf16.gmra.mrb[0].mxu0 %v1216
        %v2711 = vpop.f32.mrb[0].mxu0
        %v2712 = vadd.f32 %v2519, %v2711
        %v2713 = vpop.f32.mrb[0].mxu0
        %v2714 = vadd.f32 %v2521, %v2713
        %v2715 = vpop.f32.mrb[0].mxu0
        %v2716 = vadd.f32 %v2523, %v2715
        %v2717 = vpop.f32.mrb[0].mxu0
        %v2718 = vadd.f32 %v2525, %v2717
        %2719 = vmatprep.mubr.bf16.mxu0 %v1221
        %2720 = vmatmul.mubr.bf16.gmra.mrb[0].mxu0 %v1220
        %v2721 = vpop.f32.mrb[0].mxu0
        %v2722 = vadd.f32 %v2529, %v2721
        %v2723 = vpop.f32.mrb[0].mxu0
        %v2724 = vadd.f32 %v2531, %v2723
        %v2725 = vpop.f32.mrb[0].mxu0
        %v2726 = vadd.f32 %v2533, %v2725
        %v2727 = vpop.f32.mrb[0].mxu0
        %v2728 = vadd.f32 %v2535, %v2727
        %2729 = vmatprep.mubr.bf16.mxu0 %v1225
        %2730 = vmatmul.mubr.bf16.gmra.mrb[0].mxu0 %v1224
        %v2731 = vpop.f32.mrb[0].mxu0
        %v2732 = vadd.f32 %v2539, %v2731
        %v2733 = vpop.f32.mrb[0].mxu0
        %v2734 = vadd.f32 %v2541, %v2733
        %v2735 = vpop.f32.mrb[0].mxu0
        %v2736 = vadd.f32 %v2543, %v2735
        %v2737 = vpop.f32.mrb[0].mxu0
        %v2738 = vadd.f32 %v2545, %v2737
        %2739 = vmatprep.mubr.bf16.mxu0 %v1229
        %2740 = vmatmul.mubr.bf16.gmra.mrb[0].mxu0 %v1228
        %v2741 = vpop.f32.mrb[0].mxu0
        %v2742 = vadd.f32 %v2549, %v2741
        %v2743 = vpop.f32.mrb[0].mxu0
        %v2744 = vadd.f32 %v2551, %v2743
        %v2745 = vpop.f32.mrb[0].mxu0
        %v2746 = vadd.f32 %v2553, %v2745
        %v2747 = vpop.f32.mrb[0].mxu0
        %v2748 = vadd.f32 %v2555, %v2747
        %2749 = vmatprep.mubr.bf16.mxu0 %v1233
        %2750 = vmatmul.mubr.bf16.gmra.mrb[0].mxu0 %v1232
        %v2751 = vpop.f32.mrb[0].mxu0
        %v2752 = vadd.f32 %v2559, %v2751
        %v2753 = vpop.f32.mrb[0].mxu0
        %v2754 = vadd.f32 %v2561, %v2753
        %v2755 = vpop.f32.mrb[0].mxu0
        %v2756 = vadd.f32 %v2563, %v2755
        %v2757 = vpop.f32.mrb[0].mxu0
        %v2758 = vadd.f32 %v2565, %v2757
        %2759 = vmatprep.mubr.bf16.mxu0 %v1237
        %2760 = vmatmul.mubr.bf16.gmra.mrb[0].mxu0 %v1236
        %v2761 = vpop.f32.mrb[0].mxu0
        %v2762 = vadd.f32 %v2569, %v2761
        %v2763 = vpop.f32.mrb[0].mxu0
        %v2764 = vadd.f32 %v2571, %v2763
        %v2765 = vpop.f32.mrb[0].mxu0
        %v2766 = vadd.f32 %v2573, %v2765
        %v2767 = vpop.f32.mrb[0].mxu0
        %v2768 = vadd.f32 %v2575, %v2767
        %2769 = vmatprep.mubr.bf16.mxu0 %v1241
        %2770 = vmatmul.mubr.bf16.gmra.mrb[0].mxu0 %v1240
        %v2771 = vpop.f32.mrb[0].mxu0
        %v2772 = vadd.f32 %v2579, %v2771
        %v2773 = vpop.f32.mrb[0].mxu0
        %v2774 = vadd.f32 %v2581, %v2773
        %v2775 = vpop.f32.mrb[0].mxu0
        %v2776 = vadd.f32 %v2583, %v2775
        %v2777 = vpop.f32.mrb[0].mxu0
        %v2778 = vadd.f32 %v2585, %v2777
        %2779 = vmatprep.mubr.bf16.mxu0 %v1245
        %2780 = vmatmul.mubr.bf16.gmra.mrb[0].mxu0 %v1244
        %v2781 = vpop.f32.mrb[0].mxu0
        %v2782 = vadd.f32 %v2589, %v2781
        %v2783 = vpop.f32.mrb[0].mxu0
        %v2784 = vadd.f32 %v2591, %v2783
        %v2785 = vpop.f32.mrb[0].mxu0
        %v2786 = vadd.f32 %v2593, %v2785
        %v2787 = vpop.f32.mrb[0].mxu0
        %v2788 = vadd.f32 %v2595, %v2787
        %2789 = vmatprep.mubr.bf16.mxu0 %v1249
        %2790 = vmatmul.mubr.bf16.gmra.mrb[0].mxu0 %v1248
        %v2791 = vpop.f32.mrb[0].mxu0
        %v2792 = vadd.f32 %v2599, %v2791
        %v2793 = vpop.f32.mrb[0].mxu0
        %v2794 = vadd.f32 %v2601, %v2793
        %v2795 = vpop.f32.mrb[0].mxu0
        %v2796 = vadd.f32 %v2603, %v2795
        %v2797 = vpop.f32.mrb[0].mxu0
        %v2798 = vadd.f32 %v2605, %v2797
        %2799 = vmatprep.mubr.bf16.mxu0 %v1253
        %2800 = vmatmul.mubr.bf16.gmra.mrb[0].mxu0 %v1252
        %v2801 = vpop.f32.mrb[0].mxu0
        %v2802 = vadd.f32 %v2609, %v2801
        %v2803 = vpop.f32.mrb[0].mxu0
        %v2804 = vadd.f32 %v2611, %v2803
        %v2805 = vpop.f32.mrb[0].mxu0
        %v2806 = vadd.f32 %v2613, %v2805
        %v2807 = vpop.f32.mrb[0].mxu0
        %v2808 = vadd.f32 %v2615, %v2807
        %2809 = vmatprep.mubr.bf16.mxu0 %v1257
        %2810 = vmatmul.mubr.bf16.gmra.mrb[0].mxu0 %v1256
        %v2811 = vpop.f32.mrb[0].mxu0
        %v2812 = vadd.f32 %v2619, %v2811
        %v2813 = vpop.f32.mrb[0].mxu0
        %v2814 = vadd.f32 %v2621, %v2813
        %v2815 = vpop.f32.mrb[0].mxu0
        %v2816 = vadd.f32 %v2623, %v2815
        %v2817 = vpop.f32.mrb[0].mxu0
        %v2818 = vadd.f32 %v2625, %v2817
        %2819 = vdwg.mxu0
        %v2820 = vmax.f32 %v2276, 0.0
        %v2821 = vmax.f32 %v2278, 0.0
        %v2822 = vmax.f32 %v2662, 0.0
        %v2823 = vmax.f32 %v2664, 0.0
        %v2824 = vmax.f32 %v2280, 0.0
        %v2825 = vmax.f32 %v2282, 0.0
        %v2826 = vmax.f32 %v2666, 0.0
        %v2827 = vmax.f32 %v2668, 0.0
        %v2828 = vmax.f32 %v2286, 0.0
        %v2829 = vmax.f32 %v2288, 0.0
        %v2830 = vmax.f32 %v2672, 0.0
        %v2831 = vmax.f32 %v2674, 0.0
        %v2832 = vmax.f32 %v2290, 0.0
        %v2833 = vmax.f32 %v2292, 0.0
        %v2834 = vmax.f32 %v2676, 0.0
        %v2835 = vmax.f32 %v2678, 0.0
        %v2836 = vmax.f32 %v2296, 0.0
        %v2837 = vmax.f32 %v2298, 0.0
        %v2838 = vmax.f32 %v2682, 0.0
        %v2839 = vmax.f32 %v2684, 0.0
        %v2840 = vmax.f32 %v2300, 0.0
        %v2841 = vmax.f32 %v2302, 0.0
        %v2842 = vmax.f32 %v2686, 0.0
        %v2843 = vmax.f32 %v2688, 0.0
        %v2844 = vmax.f32 %v2306, 0.0
        %v2845 = vmax.f32 %v2308, 0.0
        %v2846 = vmax.f32 %v2692, 0.0
        %v2847 = vmax.f32 %v2694, 0.0
        %v2848 = vmax.f32 %v2310, 0.0
        %v2849 = vmax.f32 %v2312, 0.0
        %v2850 = vmax.f32 %v2696, 0.0
        %v2851 = vmax.f32 %v2698, 0.0
        %v2852 = vmax.f32 %v2316, 0.0
        %v2853 = vmax.f32 %v2318, 0.0
        %v2854 = vmax.f32 %v2702, 0.0
        %v2855 = vmax.f32 %v2704, 0.0
        %v2856 = vmax.f32 %v2320, 0.0
        %v2857 = vmax.f32 %v2322, 0.0
        %v2858 = vmax.f32 %v2706, 0.0
        %v2859 = vmax.f32 %v2708, 0.0
        %v2860 = vmax.f32 %v2326, 0.0
        %v2861 = vmax.f32 %v2328, 0.0
        %v2862 = vmax.f32 %v2712, 0.0
        %v2863 = vmax.f32 %v2714, 0.0
        %v2864 = vmax.f32 %v2330, 0.0
        %v2865 = vmax.f32 %v2332, 0.0
        %v2866 = vmax.f32 %v2716, 0.0
        %v2867 = vmax.f32 %v2718, 0.0
        %v2868 = vmax.f32 %v2336, 0.0
        %v2869 = vmax.f32 %v2338, 0.0
        %v2870 = vmax.f32 %v2722, 0.0
        %v2871 = vmax.f32 %v2724, 0.0
        %v2872 = vmax.f32 %v2340, 0.0
        %v2873 = vmax.f32 %v2342, 0.0
        %v2874 = vmax.f32 %v2726, 0.0
        %v2875 = vmax.f32 %v2728, 0.0
        %v2876 = vmax.f32 %v2346, 0.0
        %v2877 = vmax.f32 %v2348, 0.0
        %v2878 = vmax.f32 %v2732, 0.0
        %v2879 = vmax.f32 %v2734, 0.0
        %v2880 = vmax.f32 %v2350, 0.0
        %v2881 = vmax.f32 %v2352, 0.0
        %v2882 = vmax.f32 %v2736, 0.0
        %v2883 = vmax.f32 %v2738, 0.0
        %v2884 = vmax.f32 %v2356, 0.0
        %v2885 = vmax.f32 %v2358, 0.0
        %v2886 = vmax.f32 %v2742, 0.0
        %v2887 = vmax.f32 %v2744, 0.0
        %v2888 = vmax.f32 %v2360, 0.0
        %v2889 = vmax.f32 %v2362, 0.0
        %v2890 = vmax.f32 %v2746, 0.0
        %v2891 = vmax.f32 %v2748, 0.0
        %v2892 = vmax.f32 %v2366, 0.0
        %v2893 = vmax.f32 %v2368, 0.0
        %v2894 = vmax.f32 %v2752, 0.0
        %v2895 = vmax.f32 %v2754, 0.0
        %v2896 = vmax.f32 %v2370, 0.0
        %v2897 = vmax.f32 %v2372, 0.0
        %v2898 = vmax.f32 %v2756, 0.0
        %v2899 = vmax.f32 %v2758, 0.0
        %v2900 = vmax.f32 %v2376, 0.0
        %v2901 = vmax.f32 %v2378, 0.0
        %v2902 = vmax.f32 %v2762, 0.0
        %v2903 = vmax.f32 %v2764, 0.0
        %v2904 = vmax.f32 %v2380, 0.0
        %v2905 = vmax.f32 %v2382, 0.0
        %v2906 = vmax.f32 %v2766, 0.0
        %v2907 = vmax.f32 %v2768, 0.0
        %v2908 = vmax.f32 %v2386, 0.0
        %v2909 = vmax.f32 %v2388, 0.0
        %v2910 = vmax.f32 %v2772, 0.0
        %v2911 = vmax.f32 %v2774, 0.0
        %v2912 = vmax.f32 %v2390, 0.0
        %v2913 = vmax.f32 %v2392, 0.0
        %v2914 = vmax.f32 %v2776, 0.0
        %v2915 = vmax.f32 %v2778, 0.0
        %v2916 = vmax.f32 %v2396, 0.0
        %v2917 = vmax.f32 %v2398, 0.0
        %v2918 = vmax.f32 %v2782, 0.0
        %v2919 = vmax.f32 %v2784, 0.0
        %v2920 = vmax.f32 %v2400, 0.0
        %v2921 = vmax.f32 %v2402, 0.0
        %v2922 = vmax.f32 %v2786, 0.0
        %v2923 = vmax.f32 %v2788, 0.0
        %v2924 = vmax.f32 %v2406, 0.0
        %v2925 = vmax.f32 %v2408, 0.0
        %v2926 = vmax.f32 %v2792, 0.0
        %v2927 = vmax.f32 %v2794, 0.0
        %v2928 = vmax.f32 %v2410, 0.0
        %v2929 = vmax.f32 %v2412, 0.0
        %v2930 = vmax.f32 %v2796, 0.0
        %v2931 = vmax.f32 %v2798, 0.0
        %v2932 = vmax.f32 %v2416, 0.0
        %v2933 = vmax.f32 %v2418, 0.0
        %v2934 = vmax.f32 %v2802, 0.0
        %v2935 = vmax.f32 %v2804, 0.0
        %v2936 = vmax.f32 %v2420, 0.0
        %v2937 = vmax.f32 %v2422, 0.0
        %v2938 = vmax.f32 %v2806, 0.0
        %v2939 = vmax.f32 %v2808, 0.0
        %v2940 = vmax.f32 %v2426, 0.0
        %v2941 = vmax.f32 %v2428, 0.0
        %v2942 = vmax.f32 %v2812, 0.0
        %v2943 = vmax.f32 %v2814, 0.0
        %v2944 = vmax.f32 %v2430, 0.0
        %v2945 = vmax.f32 %v2432, 0.0
        %v2946 = vmax.f32 %v2816, 0.0
        %v2947 = vmax.f32 %v2818, 0.0
        %v2948 = vpack.c.bf16 %v2824, %v2820
        %v2949 = vpack.c.bf16 %v2825, %v2821
        %v2950 = vpack.c.bf16 %v2826, %v2822
        %v2951 = vpack.c.bf16 %v2827, %v2823
        %v2952 = vpack.c.bf16 %v2832, %v2828
        %v2953 = vpack.c.bf16 %v2833, %v2829
        %v2954 = vpack.c.bf16 %v2834, %v2830
        %v2955 = vpack.c.bf16 %v2835, %v2831
        %v2956 = vpack.c.bf16 %v2840, %v2836
        %v2957 = vpack.c.bf16 %v2841, %v2837
        %v2958 = vpack.c.bf16 %v2842, %v2838
        %v2959 = vpack.c.bf16 %v2843, %v2839
        %v2960 = vpack.c.bf16 %v2848, %v2844
        %v2961 = vpack.c.bf16 %v2849, %v2845
        %v2962 = vpack.c.bf16 %v2850, %v2846
        %v2963 = vpack.c.bf16 %v2851, %v2847
        %v2964 = vpack.c.bf16 %v2856, %v2852
        %v2965 = vpack.c.bf16 %v2857, %v2853
        %v2966 = vpack.c.bf16 %v2858, %v2854
        %v2967 = vpack.c.bf16 %v2859, %v2855
        %v2968 = vpack.c.bf16 %v2864, %v2860
        %v2969 = vpack.c.bf16 %v2865, %v2861
        %v2970 = vpack.c.bf16 %v2866, %v2862
        %v2971 = vpack.c.bf16 %v2867, %v2863
        %v2972 = vpack.c.bf16 %v2872, %v2868
        %v2973 = vpack.c.bf16 %v2873, %v2869
        %v2974 = vpack.c.bf16 %v2874, %v2870
        %v2975 = vpack.c.bf16 %v2875, %v2871
        %v2976 = vpack.c.bf16 %v2880, %v2876
        %v2977 = vpack.c.bf16 %v2881, %v2877
        %v2978 = vpack.c.bf16 %v2882, %v2878
        %v2979 = vpack.c.bf16 %v2883, %v2879
        %v2980 = vpack.c.bf16 %v2888, %v2884
        %v2981 = vpack.c.bf16 %v2889, %v2885
        %v2982 = vpack.c.bf16 %v2890, %v2886
        %v2983 = vpack.c.bf16 %v2891, %v2887
        %v2984 = vpack.c.bf16 %v2896, %v2892
        %v2985 = vpack.c.bf16 %v2897, %v2893
        %v2986 = vpack.c.bf16 %v2898, %v2894
        %v2987 = vpack.c.bf16 %v2899, %v2895
        %v2988 = vpack.c.bf16 %v2904, %v2900
        %v2989 = vpack.c.bf16 %v2905, %v2901
        %v2990 = vpack.c.bf16 %v2906, %v2902
        %v2991 = vpack.c.bf16 %v2907, %v2903
        %v2992 = vpack.c.bf16 %v2912, %v2908
        %v2993 = vpack.c.bf16 %v2913, %v2909
        %v2994 = vpack.c.bf16 %v2914, %v2910
        %v2995 = vpack.c.bf16 %v2915, %v2911
        %v2996 = vpack.c.bf16 %v2920, %v2916
        %v2997 = vpack.c.bf16 %v2921, %v2917
        %v2998 = vpack.c.bf16 %v2922, %v2918
        %v2999 = vpack.c.bf16 %v2923, %v2919
        %v3000 = vpack.c.bf16 %v2928, %v2924
        %v3001 = vpack.c.bf16 %v2929, %v2925
        %v3002 = vpack.c.bf16 %v2930, %v2926
        %v3003 = vpack.c.bf16 %v2931, %v2927
        %v3004 = vpack.c.bf16 %v2936, %v2932
        %v3005 = vpack.c.bf16 %v2937, %v2933
        %v3006 = vpack.c.bf16 %v2938, %v2934
        %v3007 = vpack.c.bf16 %v2939, %v2935
        %v3008 = vpack.c.bf16 %v2944, %v2940
        %v3009 = vpack.c.bf16 %v2945, %v2941
        %v3010 = vpack.c.bf16 %v2946, %v2942
        %v3011 = vpack.c.bf16 %v2947, %v2943
        %3012 = vst [vmem:[#allocation2] sm:$0xff] %v2948
        %3013 = vst [vmem:[#allocation2 + $0x8] sm:$0xff] %v2949
        %3014 = vst [vmem:[#allocation2 + $0x10] sm:$0xff] %v2950
        %3015 = vst [vmem:[#allocation2 + $0x18] sm:$0xff] %v2951
        %3016 = vst [vmem:[#allocation2 + $0x20] sm:$0xff] %v2952
        %3017 = vst [vmem:[#allocation2 + $0x28] sm:$0xff] %v2953
        %3018 = vst [vmem:[#allocation2 + $0x30] sm:$0xff] %v2954
        %3019 = vst [vmem:[#allocation2 + $0x38] sm:$0xff] %v2955
        %3020 = vst [vmem:[#allocation2 + $0x40] sm:$0xff] %v2956
        %3021 = vst [vmem:[#allocation2 + $0x48] sm:$0xff] %v2957
        %3022 = vst [vmem:[#allocation2 + $0x50] sm:$0xff] %v2958
        %3023 = vst [vmem:[#allocation2 + $0x58] sm:$0xff] %v2959
        %3024 = vst [vmem:[#allocation2 + $0x60] sm:$0xff] %v2960
        %3025 = vst [vmem:[#allocation2 + $0x68] sm:$0xff] %v2961
        %3026 = vst [vmem:[#allocation2 + $0x70] sm:$0xff] %v2962
        %3027 = vst [vmem:[#allocation2 + $0x78] sm:$0xff] %v2963
        %3028 = vst [vmem:[#allocation2 + $0x80] sm:$0xff] %v2964
        %3029 = vst [vmem:[#allocation2 + $0x88] sm:$0xff] %v2965
        %3030 = vst [vmem:[#allocation2 + $0x90] sm:$0xff] %v2966
        %3031 = vst [vmem:[#allocation2 + $0x98] sm:$0xff] %v2967
        %3032 = vst [vmem:[#allocation2 + $0xa0] sm:$0xff] %v2968
        %3033 = vst [vmem:[#allocation2 + $0xa8] sm:$0xff] %v2969
        %3034 = vst [vmem:[#allocation2 + $0xb0] sm:$0xff] %v2970
        %3035 = vst [vmem:[#allocation2 + $0xb8] sm:$0xff] %v2971
        %3036 = vst [vmem:[#allocation2 + $0xc0] sm:$0xff] %v2972
        %3037 = vst [vmem:[#allocation2 + $0xc8] sm:$0xff] %v2973
        %3038 = vst [vmem:[#allocation2 + $0xd0] sm:$0xff] %v2974
        %3039 = vst [vmem:[#allocation2 + $0xd8] sm:$0xff] %v2975
        %3040 = vst [vmem:[#allocation2 + $0xe0] sm:$0xff] %v2976
        %3041 = vst [vmem:[#allocation2 + $0xe8] sm:$0xff] %v2977
        %3042 = vst [vmem:[#allocation2 + $0xf0] sm:$0xff] %v2978
        %3043 = vst [vmem:[#allocation2 + $0xf8] sm:$0xff] %v2979
        %3044 = vst [vmem:[#allocation2 + $0x100] sm:$0xff] %v2980
        %3045 = vst [vmem:[#allocation2 + $0x108] sm:$0xff] %v2981
        %3046 = vst [vmem:[#allocation2 + $0x110] sm:$0xff] %v2982
        %3047 = vst [vmem:[#allocation2 + $0x118] sm:$0xff] %v2983
        %3048 = vst [vmem:[#allocation2 + $0x120] sm:$0xff] %v2984
        %3049 = vst [vmem:[#allocation2 + $0x128] sm:$0xff] %v2985
        %3050 = vst [vmem:[#allocation2 + $0x130] sm:$0xff] %v2986
        %3051 = vst [vmem:[#allocation2 + $0x138] sm:$0xff] %v2987
        %3052 = vst [vmem:[#allocation2 + $0x140] sm:$0xff] %v2988
        %3053 = vst [vmem:[#allocation2 + $0x148] sm:$0xff] %v2989
        %3054 = vst [vmem:[#allocation2 + $0x150] sm:$0xff] %v2990
        %3055 = vst [vmem:[#allocation2 + $0x158] sm:$0xff] %v2991
        %3056 = vst [vmem:[#allocation2 + $0x160] sm:$0xff] %v2992
        %3057 = vst [vmem:[#allocation2 + $0x168] sm:$0xff] %v2993
        %3058 = vst [vmem:[#allocation2 + $0x170] sm:$0xff] %v2994
        %3059 = vst [vmem:[#allocation2 + $0x178] sm:$0xff] %v2995
        %3060 = vst [vmem:[#allocation2 + $0x180] sm:$0xff] %v2996
        %3061 = vst [vmem:[#allocation2 + $0x188] sm:$0xff] %v2997
        %3062 = vst [vmem:[#allocation2 + $0x190] sm:$0xff] %v2998
        %3063 = vst [vmem:[#allocation2 + $0x198] sm:$0xff] %v2999
        %3064 = vst [vmem:[#allocation2 + $0x1a0] sm:$0xff] %v3000
        %3065 = vst [vmem:[#allocation2 + $0x1a8] sm:$0xff] %v3001
        %3066 = vst [vmem:[#allocation2 + $0x1b0] sm:$0xff] %v3002
        %3067 = vst [vmem:[#allocation2 + $0x1b8] sm:$0xff] %v3003
        %3068 = vst [vmem:[#allocation2 + $0x1c0] sm:$0xff] %v3004
        %3069 = vst [vmem:[#allocation2 + $0x1c8] sm:$0xff] %v3005
        %3070 = vst [vmem:[#allocation2 + $0x1d0] sm:$0xff] %v3006
        %3071 = vst [vmem:[#allocation2 + $0x1d8] sm:$0xff] %v3007
        %3072 = vst [vmem:[#allocation2 + $0x1e0] sm:$0xff] %v3008
        %3073 = vst [vmem:[#allocation2 + $0x1e8] sm:$0xff] %v3009
        %3074 = vst [vmem:[#allocation2 + $0x1f0] sm:$0xff] %v3010
        %3075 = vst [vmem:[#allocation2 + $0x1f8] sm:$0xff] %v3011
      $region52: #{tsom_forward.1} parent=47 // pred_fallthru
        _
      %v3076 = vld [vmem:[#allocation2] sm:$0xff]
      %v3077 = vld [vmem:[#allocation2 + $0x8] sm:$0xff]
      %v3078 = vld [vmem:[#allocation2 + $0x10] sm:$0xff]
      %v3079 = vld [vmem:[#allocation2 + $0x18] sm:$0xff]
      %v3080 = vld [vmem:[#allocation2 + $0x20] sm:$0xff]
      %v3081 = vld [vmem:[#allocation2 + $0x28] sm:$0xff]
      %v3082 = vld [vmem:[#allocation2 + $0x30] sm:$0xff]
      %v3083 = vld [vmem:[#allocation2 + $0x38] sm:$0xff]
      %v3084 = vld [vmem:[#allocation2 + $0x40] sm:$0xff]
      %v3085 = vld [vmem:[#allocation2 + $0x48] sm:$0xff]
      %v3086 = vld [vmem:[#allocation2 + $0x50] sm:$0xff]
      %v3087 = vld [vmem:[#allocation2 + $0x58] sm:$0xff]
      %v3088 = vld [vmem:[#allocation2 + $0x60] sm:$0xff]
      %v3089 = vld [vmem:[#allocation2 + $0x68] sm:$0xff]
      %v3090 = vld [vmem:[#allocation2 + $0x70] sm:$0xff]
      %v3091 = vld [vmem:[#allocation2 + $0x78] sm:$0xff]
      %v3092 = vld [vmem:[#allocation2 + $0x80] sm:$0xff]
      %v3093 = vld [vmem:[#allocation2 + $0x88] sm:$0xff]
      %v3094 = vld [vmem:[#allocation2 + $0x90] sm:$0xff]
      %v3095 = vld [vmem:[#allocation2 + $0x98] sm:$0xff]
      %v3096 = vld [vmem:[#allocation2 + $0xa0] sm:$0xff]
      %v3097 = vld [vmem:[#allocation2 + $0xa8] sm:$0xff]
      %v3098 = vld [vmem:[#allocation2 + $0xb0] sm:$0xff]
      %v3099 = vld [vmem:[#allocation2 + $0xb8] sm:$0xff]
      %v3100 = vld [vmem:[#allocation2 + $0xc0] sm:$0xff]
      %v3101 = vld [vmem:[#allocation2 + $0xc8] sm:$0xff]
      %v3102 = vld [vmem:[#allocation2 + $0xd0] sm:$0xff]
      %v3103 = vld [vmem:[#allocation2 + $0xd8] sm:$0xff]
      %v3104 = vld [vmem:[#allocation2 + $0xe0] sm:$0xff]
      %v3105 = vld [vmem:[#allocation2 + $0xe8] sm:$0xff]
      %v3106 = vld [vmem:[#allocation2 + $0xf0] sm:$0xff]
      %v3107 = vld [vmem:[#allocation2 + $0xf8] sm:$0xff]
      %v3108 = vld [vmem:[#allocation2 + $0x100] sm:$0xff]
      %v3109 = vld [vmem:[#allocation2 + $0x108] sm:$0xff]
      %v3110 = vld [vmem:[#allocation2 + $0x110] sm:$0xff]
      %v3111 = vld [vmem:[#allocation2 + $0x118] sm:$0xff]
      %v3112 = vld [vmem:[#allocation2 + $0x120] sm:$0xff]
      %v3113 = vld [vmem:[#allocation2 + $0x128] sm:$0xff]
      %v3114 = vld [vmem:[#allocation2 + $0x130] sm:$0xff]
      %v3115 = vld [vmem:[#allocation2 + $0x138] sm:$0xff]
      %v3116 = vld [vmem:[#allocation2 + $0x140] sm:$0xff]
      %v3117 = vld [vmem:[#allocation2 + $0x148] sm:$0xff]
      %v3118 = vld [vmem:[#allocation2 + $0x150] sm:$0xff]
      %v3119 = vld [vmem:[#allocation2 + $0x158] sm:$0xff]
      %v3120 = vld [vmem:[#allocation2 + $0x160] sm:$0xff]
      %v3121 = vld [vmem:[#allocation2 + $0x168] sm:$0xff]
      %v3122 = vld [vmem:[#allocation2 + $0x170] sm:$0xff]
      %v3123 = vld [vmem:[#allocation2 + $0x178] sm:$0xff]
      %v3124 = vld [vmem:[#allocation2 + $0x180] sm:$0xff]
      %v3125 = vld [vmem:[#allocation2 + $0x188] sm:$0xff]
      %v3126 = vld [vmem:[#allocation2 + $0x190] sm:$0xff]
      %v3127 = vld [vmem:[#allocation2 + $0x198] sm:$0xff]
      %v3128 = vld [vmem:[#allocation2 + $0x1a0] sm:$0xff]
      %v3129 = vld [vmem:[#allocation2 + $0x1a8] sm:$0xff]
      %v3130 = vld [vmem:[#allocation2 + $0x1b0] sm:$0xff]
      %v3131 = vld [vmem:[#allocation2 + $0x1b8] sm:$0xff]
      %v3132 = vld [vmem:[#allocation2 + $0x1c0] sm:$0xff]
      %v3133 = vld [vmem:[#allocation2 + $0x1c8] sm:$0xff]
      %v3134 = vld [vmem:[#allocation2 + $0x1d0] sm:$0xff]
      %v3135 = vld [vmem:[#allocation2 + $0x1d8] sm:$0xff]
      %v3136 = vld [vmem:[#allocation2 + $0x1e0] sm:$0xff]
      %v3137 = vld [vmem:[#allocation2 + $0x1e8] sm:$0xff]
      %v3138 = vld [vmem:[#allocation2 + $0x1f0] sm:$0xff]
      %v3139 = vld [vmem:[#allocation2 + $0x1f8] sm:$0xff]
      %v3140 = vld [vmem:[%s320] sm:$0xf]
      %v3141 = vld [vmem:[%s320 + $0x4] sm:$0xf]
      %v3142 = vld [vmem:[%s320 + $0x8] sm:$0xf]
      %v3143 = vld [vmem:[%s320 + $0xc] sm:$0xf]
      %v3144 = vld [vmem:[%s320 + $0x10] sm:$0xf]
      %v3145 = vld [vmem:[%s320 + $0x14] sm:$0xf]
      %v3146 = vld [vmem:[%s320 + $0x18] sm:$0xf]
      %v3147 = vld [vmem:[%s320 + $0x1c] sm:$0xf]
      %v3148 = vld [vmem:[%s320 + $0x20] sm:$0xf]
      %v3149 = vld [vmem:[%s320 + $0x24] sm:$0xf]
      %v3150 = vld [vmem:[%s320 + $0x28] sm:$0xf]
      %v3151 = vld [vmem:[%s320 + $0x2c] sm:$0xf]
      %v3152 = vld [vmem:[%s320 + $0x30] sm:$0xf]
      %v3153 = vld [vmem:[%s320 + $0x34] sm:$0xf]
      %v3154 = vld [vmem:[%s320 + $0x38] sm:$0xf]
      %v3155 = vld [vmem:[%s320 + $0x3c] sm:$0xf]
      %v3156 = vld [vmem:[%s320 + $0x40] sm:$0xf]
      %v3157 = vld [vmem:[%s320 + $0x44] sm:$0xf]
      %v3158 = vld [vmem:[%s320 + $0x48] sm:$0xf]
      %v3159 = vld [vmem:[%s320 + $0x4c] sm:$0xf]
      %v3160 = vld [vmem:[%s320 + $0x50] sm:$0xf]
      %v3161 = vld [vmem:[%s320 + $0x54] sm:$0xf]
      %v3162 = vld [vmem:[%s320 + $0x58] sm:$0xf]
      %v3163 = vld [vmem:[%s320 + $0x5c] sm:$0xf]
      %v3164 = vld [vmem:[%s320 + $0x60] sm:$0xf]
      %v3165 = vld [vmem:[%s320 + $0x64] sm:$0xf]
      %v3166 = vld [vmem:[%s320 + $0x68] sm:$0xf]
      %v3167 = vld [vmem:[%s320 + $0x6c] sm:$0xf]
      %v3168 = vld [vmem:[%s320 + $0x70] sm:$0xf]
      %v3169 = vld [vmem:[%s320 + $0x74] sm:$0xf]
      %v3170 = vld [vmem:[%s320 + $0x78] sm:$0xf]
      %v3171 = vld [vmem:[%s320 + $0x7c] sm:$0xf]
      %v3172 = vld [vmem:[%s320 + $0x80] sm:$0xf]
      %v3173 = vld [vmem:[%s320 + $0x84] sm:$0xf]
      %v3174 = vld [vmem:[%s320 + $0x88] sm:$0xf]
      %v3175 = vld [vmem:[%s320 + $0x8c] sm:$0xf]
      %v3176 = vld [vmem:[%s320 + $0x90] sm:$0xf]
      %v3177 = vld [vmem:[%s320 + $0x94] sm:$0xf]
      %v3178 = vld [vmem:[%s320 + $0x98] sm:$0xf]
      %v3179 = vld [vmem:[%s320 + $0x9c] sm:$0xf]
      %v3180 = vld [vmem:[%s320 + $0xa0] sm:$0xf]
      %v3181 = vld [vmem:[%s320 + $0xa4] sm:$0xf]
      %v3182 = vld [vmem:[%s320 + $0xa8] sm:$0xf]
      %v3183 = vld [vmem:[%s320 + $0xac] sm:$0xf]
      %v3184 = vld [vmem:[%s320 + $0xb0] sm:$0xf]
      %v3185 = vld [vmem:[%s320 + $0xb4] sm:$0xf]
      %v3186 = vld [vmem:[%s320 + $0xb8] sm:$0xf]
      %v3187 = vld [vmem:[%s320 + $0xbc] sm:$0xf]
      %v3188 = vld [vmem:[%s320 + $0xc0] sm:$0xf]
      %v3189 = vld [vmem:[%s320 + $0xc4] sm:$0xf]
      %v3190 = vld [vmem:[%s320 + $0xc8] sm:$0xf]
      %v3191 = vld [vmem:[%s320 + $0xcc] sm:$0xf]
      %v3192 = vld [vmem:[%s320 + $0xd0] sm:$0xf]
      %v3193 = vld [vmem:[%s320 + $0xd4] sm:$0xf]
      %v3194 = vld [vmem:[%s320 + $0xd8] sm:$0xf]
      %v3195 = vld [vmem:[%s320 + $0xdc] sm:$0xf]
      %v3196 = vld [vmem:[%s320 + $0xe0] sm:$0xf]
      %v3197 = vld [vmem:[%s320 + $0xe4] sm:$0xf]
      %v3198 = vld [vmem:[%s320 + $0xe8] sm:$0xf]
      %v3199 = vld [vmem:[%s320 + $0xec] sm:$0xf]
      %v3200 = vld [vmem:[%s320 + $0xf0] sm:$0xf]
      %v3201 = vld [vmem:[%s320 + $0xf4] sm:$0xf]
      %v3202 = vld [vmem:[%s320 + $0xf8] sm:$0xf]
      %v3203 = vld [vmem:[%s320 + $0xfc] sm:$0xf]
      %v3204 = vld [vmem:[%s323] sm:$0x1]
      %v3206 = vlaneseq
      %v3207 = vshrl.u32 %v3206, 7
      %v3208 = vsub.s32 0, %v3207
      %v3209 = vrot.slane %v3204, %v3208
      %v3275 = vunpack.c.l.b16 %v3140
      %v3276 = vunpack.c.l.b16 %v3141
      %v3277 = vunpack.c.l.b16 %v3142
      %v3278 = vunpack.c.l.b16 %v3143
      %v3279 = vunpack.c.l.b16 %v3144
      %v3280 = vunpack.c.l.b16 %v3145
      %v3281 = vunpack.c.l.b16 %v3146
      %v3282 = vunpack.c.l.b16 %v3147
      %v3283 = vunpack.c.l.b16 %v3148
      %v3284 = vunpack.c.l.b16 %v3149
      %v3285 = vunpack.c.l.b16 %v3150
      %v3286 = vunpack.c.l.b16 %v3151
      %v3287 = vunpack.c.l.b16 %v3152
      %v3288 = vunpack.c.l.b16 %v3153
      %v3289 = vunpack.c.l.b16 %v3154
      %v3290 = vunpack.c.l.b16 %v3155
      %v3291 = vunpack.c.l.b16 %v3156
      %v3292 = vunpack.c.l.b16 %v3157
      %v3293 = vunpack.c.l.b16 %v3158
      %v3294 = vunpack.c.l.b16 %v3159
      %v3295 = vunpack.c.l.b16 %v3160
      %v3296 = vunpack.c.l.b16 %v3161
      %v3297 = vunpack.c.l.b16 %v3162
      %v3298 = vunpack.c.l.b16 %v3163
      %v3299 = vunpack.c.l.b16 %v3164
      %v3300 = vunpack.c.l.b16 %v3165
      %v3301 = vunpack.c.l.b16 %v3166
      %v3302 = vunpack.c.l.b16 %v3167
      %v3303 = vunpack.c.l.b16 %v3168
      %v3304 = vunpack.c.l.b16 %v3169
      %v3305 = vunpack.c.l.b16 %v3170
      %v3306 = vunpack.c.l.b16 %v3171
      %v3307 = vunpack.c.l.b16 %v3172
      %v3308 = vunpack.c.l.b16 %v3173
      %v3309 = vunpack.c.l.b16 %v3174
      %v3310 = vunpack.c.l.b16 %v3175
      %v3311 = vunpack.c.l.b16 %v3176
      %v3312 = vunpack.c.l.b16 %v3177
      %v3313 = vunpack.c.l.b16 %v3178
      %v3314 = vunpack.c.l.b16 %v3179
      %v3315 = vunpack.c.l.b16 %v3180
      %v3316 = vunpack.c.l.b16 %v3181
      %v3317 = vunpack.c.l.b16 %v3182
      %v3318 = vunpack.c.l.b16 %v3183
      %v3319 = vunpack.c.l.b16 %v3184
      %v3320 = vunpack.c.l.b16 %v3185
      %v3321 = vunpack.c.l.b16 %v3186
      %v3322 = vunpack.c.l.b16 %v3187
      %v3323 = vunpack.c.l.b16 %v3188
      %v3324 = vunpack.c.l.b16 %v3189
      %v3325 = vunpack.c.l.b16 %v3190
      %v3326 = vunpack.c.l.b16 %v3191
      %v3327 = vunpack.c.l.b16 %v3192
      %v3328 = vunpack.c.l.b16 %v3193
      %v3329 = vunpack.c.l.b16 %v3194
      %v3330 = vunpack.c.l.b16 %v3195
      %v3331 = vunpack.c.l.b16 %v3196
      %v3332 = vunpack.c.l.b16 %v3197
      %v3333 = vunpack.c.l.b16 %v3198
      %v3334 = vunpack.c.l.b16 %v3199
      %v3335 = vunpack.c.l.b16 %v3200
      %v3336 = vunpack.c.l.b16 %v3201
      %v3337 = vunpack.c.l.b16 %v3202
      %v3338 = vunpack.c.l.b16 %v3203
      %v3339 = vpack.c.b16 %v3276, %v3275
      %v3340 = vpack.c.b16 %v3278, %v3277
      %v3341 = vpack.c.b16 %v3280, %v3279
      %v3342 = vpack.c.b16 %v3282, %v3281
      %v3343 = vpack.c.b16 %v3284, %v3283
      %v3344 = vpack.c.b16 %v3286, %v3285
      %v3345 = vpack.c.b16 %v3288, %v3287
      %v3346 = vpack.c.b16 %v3290, %v3289
      %v3347 = vpack.c.b16 %v3292, %v3291
      %v3348 = vpack.c.b16 %v3294, %v3293
      %v3349 = vpack.c.b16 %v3296, %v3295
      %v3350 = vpack.c.b16 %v3298, %v3297
      %v3351 = vpack.c.b16 %v3300, %v3299
      %v3352 = vpack.c.b16 %v3302, %v3301
      %v3353 = vpack.c.b16 %v3304, %v3303
      %v3354 = vpack.c.b16 %v3306, %v3305
      %v3355 = vpack.c.b16 %v3308, %v3307
      %v3356 = vpack.c.b16 %v3310, %v3309
      %v3357 = vpack.c.b16 %v3312, %v3311
      %v3358 = vpack.c.b16 %v3314, %v3313
      %v3359 = vpack.c.b16 %v3316, %v3315
      %v3360 = vpack.c.b16 %v3318, %v3317
      %v3361 = vpack.c.b16 %v3320, %v3319
      %v3362 = vpack.c.b16 %v3322, %v3321
      %v3363 = vpack.c.b16 %v3324, %v3323
      %v3364 = vpack.c.b16 %v3326, %v3325
      %v3365 = vpack.c.b16 %v3328, %v3327
      %v3366 = vpack.c.b16 %v3330, %v3329
      %v3367 = vpack.c.b16 %v3332, %v3331
      %v3368 = vpack.c.b16 %v3334, %v3333
      %v3369 = vpack.c.b16 %v3336, %v3335
      %v3370 = vpack.c.b16 %v3338, %v3337
      %3403 = vmatprep.subr.bf16.mxu0 0
      %3404 = vmatpush1.bf16.msra.mxu0 %v3339
      %3405 = vmatprep.subr.bf16.mxu0 0
      %3406 = vmatpush1.bf16.msra.mxu0 %v3340
      %3407 = vmatprep.subr.bf16.mxu0 0
      %3408 = vmatpush1.bf16.msra.mxu0 %v3341
      %3409 = vmatprep.subr.bf16.mxu0 0
      %3410 = vmatpush1.bf16.msra.mxu0 %v3342
      %3411 = vmatprep.subr.bf16.mxu0 0
      %3412 = vmatpush1.bf16.msra.mxu0 %v3343
      %3413 = vmatprep.subr.bf16.mxu0 0
      %3414 = vmatpush1.bf16.msra.mxu0 %v3344
      %3415 = vmatprep.subr.bf16.mxu0 0
      %3416 = vmatpush1.bf16.msra.mxu0 %v3345
      %3417 = vmatprep.subr.bf16.mxu0 0
      %3418 = vmatpush1.bf16.msra.mxu0 %v3346
      %3419 = vmatprep.subr.bf16.mxu0 0
      %3420 = vmatpush1.bf16.msra.mxu0 %v3347
      %3421 = vmatprep.subr.bf16.mxu0 0
      %3422 = vmatpush1.bf16.msra.mxu0 %v3348
      %3423 = vmatprep.subr.bf16.mxu0 0
      %3424 = vmatpush1.bf16.msra.mxu0 %v3349
      %3425 = vmatprep.subr.bf16.mxu0 0
      %3426 = vmatpush1.bf16.msra.mxu0 %v3350
      %3427 = vmatprep.subr.bf16.mxu0 0
      %3428 = vmatpush1.bf16.msra.mxu0 %v3351
      %3429 = vmatprep.subr.bf16.mxu0 0
      %3430 = vmatpush1.bf16.msra.mxu0 %v3352
      %3431 = vmatprep.subr.bf16.mxu0 0
      %3432 = vmatpush1.bf16.msra.mxu0 %v3353
      %3433 = vmatprep.subr.bf16.mxu0 0
      %3434 = vmatpush1.bf16.msra.mxu0 %v3354
      %3435 = vmatprep.mubr.bf16.mxu0 %v3077
      %3436 = vmatmul.mubr.bf16.gmra.mrb[0].mxu0 %v3076
      %v3437 = vpop.f32.mrb[0].mxu0
      %v3438 = vadd.f32 %v3209, %v3437
      %v3439 = vpop.f32.mrb[0].mxu0
      %v3440 = vpop.f32.mrb[0].mxu0
      %v3441 = vadd.f32 %v3209, %v3440
      %v3442 = vpop.f32.mrb[0].mxu0
      %3443 = vmatprep.mubr.bf16.mxu0 %v3081
      %3444 = vmatmul.mubr.bf16.gmra.mrb[0].mxu0 %v3080
      %v3445 = vpop.f32.mrb[0].mxu0
      %v3446 = vadd.f32 %v3209, %v3445
      %v3447 = vpop.f32.mrb[0].mxu0
      %v3448 = vpop.f32.mrb[0].mxu0
      %v3449 = vadd.f32 %v3209, %v3448
      %v3450 = vpop.f32.mrb[0].mxu0
      %3451 = vmatprep.mubr.bf16.mxu0 %v3085
      %3452 = vmatmul.mubr.bf16.gmra.mrb[0].mxu0 %v3084
      %v3453 = vpop.f32.mrb[0].mxu0
      %v3454 = vadd.f32 %v3209, %v3453
      %v3455 = vpop.f32.mrb[0].mxu0
      %v3456 = vpop.f32.mrb[0].mxu0
      %v3457 = vadd.f32 %v3209, %v3456
      %v3458 = vpop.f32.mrb[0].mxu0
      %3459 = vmatprep.mubr.bf16.mxu0 %v3089
      %3460 = vmatmul.mubr.bf16.gmra.mrb[0].mxu0 %v3088
      %v3461 = vpop.f32.mrb[0].mxu0
      %v3462 = vadd.f32 %v3209, %v3461
      %v3463 = vpop.f32.mrb[0].mxu0
      %v3464 = vpop.f32.mrb[0].mxu0
      %v3465 = vadd.f32 %v3209, %v3464
      %v3466 = vpop.f32.mrb[0].mxu0
      %3467 = vmatprep.mubr.bf16.mxu0 %v3093
      %3468 = vmatmul.mubr.bf16.gmra.mrb[0].mxu0 %v3092
      %v3469 = vpop.f32.mrb[0].mxu0
      %v3470 = vadd.f32 %v3209, %v3469
      %v3471 = vpop.f32.mrb[0].mxu0
      %v3472 = vpop.f32.mrb[0].mxu0
      %v3473 = vadd.f32 %v3209, %v3472
      %v3474 = vpop.f32.mrb[0].mxu0
      %3475 = vmatprep.mubr.bf16.mxu0 %v3097
      %3476 = vmatmul.mubr.bf16.gmra.mrb[0].mxu0 %v3096
      %v3477 = vpop.f32.mrb[0].mxu0
      %v3478 = vadd.f32 %v3209, %v3477
      %v3479 = vpop.f32.mrb[0].mxu0
      %v3480 = vpop.f32.mrb[0].mxu0
      %v3481 = vadd.f32 %v3209, %v3480
      %v3482 = vpop.f32.mrb[0].mxu0
      %3483 = vmatprep.mubr.bf16.mxu0 %v3101
      %3484 = vmatmul.mubr.bf16.gmra.mrb[0].mxu0 %v3100
      %v3485 = vpop.f32.mrb[0].mxu0
      %v3486 = vadd.f32 %v3209, %v3485
      %v3487 = vpop.f32.mrb[0].mxu0
      %v3488 = vpop.f32.mrb[0].mxu0
      %v3489 = vadd.f32 %v3209, %v3488
      %v3490 = vpop.f32.mrb[0].mxu0
      %3491 = vmatprep.mubr.bf16.mxu0 %v3105
      %3492 = vmatmul.mubr.bf16.gmra.mrb[0].mxu0 %v3104
      %v3493 = vpop.f32.mrb[0].mxu0
      %v3494 = vadd.f32 %v3209, %v3493
      %v3495 = vpop.f32.mrb[0].mxu0
      %v3496 = vpop.f32.mrb[0].mxu0
      %v3497 = vadd.f32 %v3209, %v3496
      %v3498 = vpop.f32.mrb[0].mxu0
      %3499 = vmatprep.mubr.bf16.mxu0 %v3109
      %3500 = vmatmul.mubr.bf16.gmra.mrb[0].mxu0 %v3108
      %v3501 = vpop.f32.mrb[0].mxu0
      %v3502 = vadd.f32 %v3209, %v3501
      %v3503 = vpop.f32.mrb[0].mxu0
      %v3504 = vpop.f32.mrb[0].mxu0
      %v3505 = vadd.f32 %v3209, %v3504
      %v3506 = vpop.f32.mrb[0].mxu0
      %3507 = vmatprep.mubr.bf16.mxu0 %v3113
      %3508 = vmatmul.mubr.bf16.gmra.mrb[0].mxu0 %v3112
      %v3509 = vpop.f32.mrb[0].mxu0
      %v3510 = vadd.f32 %v3209, %v3509
      %v3511 = vpop.f32.mrb[0].mxu0
      %v3512 = vpop.f32.mrb[0].mxu0
      %v3513 = vadd.f32 %v3209, %v3512
      %v3514 = vpop.f32.mrb[0].mxu0
      %3515 = vmatprep.mubr.bf16.mxu0 %v3117
      %3516 = vmatmul.mubr.bf16.gmra.mrb[0].mxu0 %v3116
      %v3517 = vpop.f32.mrb[0].mxu0
      %v3518 = vadd.f32 %v3209, %v3517
      %v3519 = vpop.f32.mrb[0].mxu0
      %v3520 = vpop.f32.mrb[0].mxu0
      %v3521 = vadd.f32 %v3209, %v3520
      %v3522 = vpop.f32.mrb[0].mxu0
      %3523 = vmatprep.mubr.bf16.mxu0 %v3121
      %3524 = vmatmul.mubr.bf16.gmra.mrb[0].mxu0 %v3120
      %v3525 = vpop.f32.mrb[0].mxu0
      %v3526 = vadd.f32 %v3209, %v3525
      %v3527 = vpop.f32.mrb[0].mxu0
      %v3528 = vpop.f32.mrb[0].mxu0
      %v3529 = vadd.f32 %v3209, %v3528
      %v3530 = vpop.f32.mrb[0].mxu0
      %3531 = vmatprep.mubr.bf16.mxu0 %v3125
      %3532 = vmatmul.mubr.bf16.gmra.mrb[0].mxu0 %v3124
      %v3533 = vpop.f32.mrb[0].mxu0
      %v3534 = vadd.f32 %v3209, %v3533
      %v3535 = vpop.f32.mrb[0].mxu0
      %v3536 = vpop.f32.mrb[0].mxu0
      %v3537 = vadd.f32 %v3209, %v3536
      %v3538 = vpop.f32.mrb[0].mxu0
      %3539 = vmatprep.mubr.bf16.mxu0 %v3129
      %3540 = vmatmul.mubr.bf16.gmra.mrb[0].mxu0 %v3128
      %v3541 = vpop.f32.mrb[0].mxu0
      %v3542 = vadd.f32 %v3209, %v3541
      %v3543 = vpop.f32.mrb[0].mxu0
      %v3544 = vpop.f32.mrb[0].mxu0
      %v3545 = vadd.f32 %v3209, %v3544
      %v3546 = vpop.f32.mrb[0].mxu0
      %3547 = vmatprep.mubr.bf16.mxu0 %v3133
      %3548 = vmatmul.mubr.bf16.gmra.mrb[0].mxu0 %v3132
      %v3549 = vpop.f32.mrb[0].mxu0
      %v3550 = vadd.f32 %v3209, %v3549
      %v3551 = vpop.f32.mrb[0].mxu0
      %v3552 = vpop.f32.mrb[0].mxu0
      %v3553 = vadd.f32 %v3209, %v3552
      %v3554 = vpop.f32.mrb[0].mxu0
      %3555 = vmatprep.mubr.bf16.mxu0 %v3137
      %3556 = vmatmul.mubr.bf16.gmra.mrb[0].mxu0 %v3136
      %v3557 = vpop.f32.mrb[0].mxu0
      %v3558 = vadd.f32 %v3209, %v3557
      %v3559 = vpop.f32.mrb[0].mxu0
      %v3560 = vpop.f32.mrb[0].mxu0
      %v3561 = vadd.f32 %v3209, %v3560
      %v3562 = vpop.f32.mrb[0].mxu0
      %3563 = vdwg.mxu0
      %3564 = vmatprep.subr.bf16.mxu0 0
      %3565 = vmatpush1.bf16.msra.mxu0 %v3355
      %3566 = vmatprep.subr.bf16.mxu0 0
      %3567 = vmatpush1.bf16.msra.mxu0 %v3356
      %3568 = vmatprep.subr.bf16.mxu0 0
      %3569 = vmatpush1.bf16.msra.mxu0 %v3357
      %3570 = vmatprep.subr.bf16.mxu0 0
      %3571 = vmatpush1.bf16.msra.mxu0 %v3358
      %3572 = vmatprep.subr.bf16.mxu0 0
      %3573 = vmatpush1.bf16.msra.mxu0 %v3359
      %3574 = vmatprep.subr.bf16.mxu0 0
      %3575 = vmatpush1.bf16.msra.mxu0 %v3360
      %3576 = vmatprep.subr.bf16.mxu0 0
      %3577 = vmatpush1.bf16.msra.mxu0 %v3361
      %3578 = vmatprep.subr.bf16.mxu0 0
      %3579 = vmatpush1.bf16.msra.mxu0 %v3362
      %3580 = vmatprep.subr.bf16.mxu0 0
      %3581 = vmatpush1.bf16.msra.mxu0 %v3363
      %3582 = vmatprep.subr.bf16.mxu0 0
      %3583 = vmatpush1.bf16.msra.mxu0 %v3364
      %3584 = vmatprep.subr.bf16.mxu0 0
      %3585 = vmatpush1.bf16.msra.mxu0 %v3365
      %3586 = vmatprep.subr.bf16.mxu0 0
      %3587 = vmatpush1.bf16.msra.mxu0 %v3366
      %3588 = vmatprep.subr.bf16.mxu0 0
      %3589 = vmatpush1.bf16.msra.mxu0 %v3367
      %3590 = vmatprep.subr.bf16.mxu0 0
      %3591 = vmatpush1.bf16.msra.mxu0 %v3368
      %3592 = vmatprep.subr.bf16.mxu0 0
      %3593 = vmatpush1.bf16.msra.mxu0 %v3369
      %3594 = vmatprep.subr.bf16.mxu0 0
      %3595 = vmatpush1.bf16.msra.mxu0 %v3370
      %3596 = vmatprep.mubr.bf16.mxu0 %v3079
      %3597 = vmatmul.mubr.bf16.gmra.mrb[0].mxu0 %v3078
      %v3598 = vpop.f32.mrb[0].mxu0
      %v3599 = vadd.f32 %v3438, %v3598
      %v3600 = vpop.f32.mrb[0].mxu0
      %v3601 = vpop.f32.mrb[0].mxu0
      %v3602 = vadd.f32 %v3441, %v3601
      %v3603 = vpop.f32.mrb[0].mxu0
      %3604 = vmatprep.mubr.bf16.mxu0 %v3083
      %3605 = vmatmul.mubr.bf16.gmra.mrb[0].mxu0 %v3082
      %v3606 = vpop.f32.mrb[0].mxu0
      %v3607 = vadd.f32 %v3446, %v3606
      %v3608 = vpop.f32.mrb[0].mxu0
      %v3609 = vpop.f32.mrb[0].mxu0
      %v3610 = vadd.f32 %v3449, %v3609
      %v3611 = vpop.f32.mrb[0].mxu0
      %3612 = vmatprep.mubr.bf16.mxu0 %v3087
      %3613 = vmatmul.mubr.bf16.gmra.mrb[0].mxu0 %v3086
      %v3614 = vpop.f32.mrb[0].mxu0
      %v3615 = vadd.f32 %v3454, %v3614
      %v3616 = vpop.f32.mrb[0].mxu0
      %v3617 = vpop.f32.mrb[0].mxu0
      %v3618 = vadd.f32 %v3457, %v3617
      %v3619 = vpop.f32.mrb[0].mxu0
      %3620 = vmatprep.mubr.bf16.mxu0 %v3091
      %3621 = vmatmul.mubr.bf16.gmra.mrb[0].mxu0 %v3090
      %v3622 = vpop.f32.mrb[0].mxu0
      %v3623 = vadd.f32 %v3462, %v3622
      %v3624 = vpop.f32.mrb[0].mxu0
      %v3625 = vpop.f32.mrb[0].mxu0
      %v3626 = vadd.f32 %v3465, %v3625
      %v3627 = vpop.f32.mrb[0].mxu0
      %3628 = vmatprep.mubr.bf16.mxu0 %v3095
      %3629 = vmatmul.mubr.bf16.gmra.mrb[0].mxu0 %v3094
      %v3630 = vpop.f32.mrb[0].mxu0
      %v3631 = vadd.f32 %v3470, %v3630
      %v3632 = vpop.f32.mrb[0].mxu0
      %v3633 = vpop.f32.mrb[0].mxu0
      %v3634 = vadd.f32 %v3473, %v3633
      %v3635 = vpop.f32.mrb[0].mxu0
      %3636 = vmatprep.mubr.bf16.mxu0 %v3099
      %3637 = vmatmul.mubr.bf16.gmra.mrb[0].mxu0 %v3098
      %v3638 = vpop.f32.mrb[0].mxu0
      %v3639 = vadd.f32 %v3478, %v3638
      %v3640 = vpop.f32.mrb[0].mxu0
      %v3641 = vpop.f32.mrb[0].mxu0
      %v3642 = vadd.f32 %v3481, %v3641
      %v3643 = vpop.f32.mrb[0].mxu0
      %3644 = vmatprep.mubr.bf16.mxu0 %v3103
      %3645 = vmatmul.mubr.bf16.gmra.mrb[0].mxu0 %v3102
      %v3646 = vpop.f32.mrb[0].mxu0
      %v3647 = vadd.f32 %v3486, %v3646
      %v3648 = vpop.f32.mrb[0].mxu0
      %v3649 = vpop.f32.mrb[0].mxu0
      %v3650 = vadd.f32 %v3489, %v3649
      %v3651 = vpop.f32.mrb[0].mxu0
      %3652 = vmatprep.mubr.bf16.mxu0 %v3107
      %3653 = vmatmul.mubr.bf16.gmra.mrb[0].mxu0 %v3106
      %v3654 = vpop.f32.mrb[0].mxu0
      %v3655 = vadd.f32 %v3494, %v3654
      %v3656 = vpop.f32.mrb[0].mxu0
      %v3657 = vpop.f32.mrb[0].mxu0
      %v3658 = vadd.f32 %v3497, %v3657
      %v3659 = vpop.f32.mrb[0].mxu0
      %3660 = vmatprep.mubr.bf16.mxu0 %v3111
      %3661 = vmatmul.mubr.bf16.gmra.mrb[0].mxu0 %v3110
      %v3662 = vpop.f32.mrb[0].mxu0
      %v3663 = vadd.f32 %v3502, %v3662
      %v3664 = vpop.f32.mrb[0].mxu0
      %v3665 = vpop.f32.mrb[0].mxu0
      %v3666 = vadd.f32 %v3505, %v3665
      %v3667 = vpop.f32.mrb[0].mxu0
      %3668 = vmatprep.mubr.bf16.mxu0 %v3115
      %3669 = vmatmul.mubr.bf16.gmra.mrb[0].mxu0 %v3114
      %v3670 = vpop.f32.mrb[0].mxu0
      %v3671 = vadd.f32 %v3510, %v3670
      %v3672 = vpop.f32.mrb[0].mxu0
      %v3673 = vpop.f32.mrb[0].mxu0
      %v3674 = vadd.f32 %v3513, %v3673
      %v3675 = vpop.f32.mrb[0].mxu0
      %3676 = vmatprep.mubr.bf16.mxu0 %v3119
      %3677 = vmatmul.mubr.bf16.gmra.mrb[0].mxu0 %v3118
      %v3678 = vpop.f32.mrb[0].mxu0
      %v3679 = vadd.f32 %v3518, %v3678
      %v3680 = vpop.f32.mrb[0].mxu0
      %v3681 = vpop.f32.mrb[0].mxu0
      %v3682 = vadd.f32 %v3521, %v3681
      %v3683 = vpop.f32.mrb[0].mxu0
      %3684 = vmatprep.mubr.bf16.mxu0 %v3123
      %3685 = vmatmul.mubr.bf16.gmra.mrb[0].mxu0 %v3122
      %v3686 = vpop.f32.mrb[0].mxu0
      %v3687 = vadd.f32 %v3526, %v3686
      %v3688 = vpop.f32.mrb[0].mxu0
      %v3689 = vpop.f32.mrb[0].mxu0
      %v3690 = vadd.f32 %v3529, %v3689
      %v3691 = vpop.f32.mrb[0].mxu0
      %3692 = vmatprep.mubr.bf16.mxu0 %v3127
      %3693 = vmatmul.mubr.bf16.gmra.mrb[0].mxu0 %v3126
      %v3694 = vpop.f32.mrb[0].mxu0
      %v3695 = vadd.f32 %v3534, %v3694
      %v3696 = vpop.f32.mrb[0].mxu0
      %v3697 = vpop.f32.mrb[0].mxu0
      %v3698 = vadd.f32 %v3537, %v3697
      %v3699 = vpop.f32.mrb[0].mxu0
      %3700 = vmatprep.mubr.bf16.mxu0 %v3131
      %3701 = vmatmul.mubr.bf16.gmra.mrb[0].mxu0 %v3130
      %v3702 = vpop.f32.mrb[0].mxu0
      %v3703 = vadd.f32 %v3542, %v3702
      %v3704 = vpop.f32.mrb[0].mxu0
      %v3705 = vpop.f32.mrb[0].mxu0
      %v3706 = vadd.f32 %v3545, %v3705
      %v3707 = vpop.f32.mrb[0].mxu0
      %3708 = vmatprep.mubr.bf16.mxu0 %v3135
      %3709 = vmatmul.mubr.bf16.gmra.mrb[0].mxu0 %v3134
      %v3710 = vpop.f32.mrb[0].mxu0
      %v3711 = vadd.f32 %v3550, %v3710
      %v3712 = vpop.f32.mrb[0].mxu0
      %v3713 = vpop.f32.mrb[0].mxu0
      %v3714 = vadd.f32 %v3553, %v3713
      %v3715 = vpop.f32.mrb[0].mxu0
      %3716 = vmatprep.mubr.bf16.mxu0 %v3139
      %3717 = vmatmul.mubr.bf16.gmra.mrb[0].mxu0 %v3138
      %v3718 = vpop.f32.mrb[0].mxu0
      %v3719 = vadd.f32 %v3558, %v3718
      %v3720 = vpop.f32.mrb[0].mxu0
      %v3721 = vpop.f32.mrb[0].mxu0
      %v3722 = vadd.f32 %v3561, %v3721
      %v3723 = vpop.f32.mrb[0].mxu0
      %3724 = vdwg.mxu0
      %3725 = vst [vmem:[%s331] sm:$0xff] %v3599
      %3726 = vst [vmem:[%s331 + $0x8] sm:$0xff] %v3602
      %3727 = vst [vmem:[%s331 + $0x10] sm:$0xff] %v3607
      %3728 = vst [vmem:[%s331 + $0x18] sm:$0xff] %v3610
      %3729 = vst [vmem:[%s331 + $0x20] sm:$0xff] %v3615
      %3730 = vst [vmem:[%s331 + $0x28] sm:$0xff] %v3618
      %3731 = vst [vmem:[%s331 + $0x30] sm:$0xff] %v3623
      %3732 = vst [vmem:[%s331 + $0x38] sm:$0xff] %v3626
      %3733 = vst [vmem:[%s331 + $0x40] sm:$0xff] %v3631
      %3734 = vst [vmem:[%s331 + $0x48] sm:$0xff] %v3634
      %3735 = vst [vmem:[%s331 + $0x50] sm:$0xff] %v3639
      %3736 = vst [vmem:[%s331 + $0x58] sm:$0xff] %v3642
      %3737 = vst [vmem:[%s331 + $0x60] sm:$0xff] %v3647
      %3738 = vst [vmem:[%s331 + $0x68] sm:$0xff] %v3650
      %3739 = vst [vmem:[%s331 + $0x70] sm:$0xff] %v3655
      %3740 = vst [vmem:[%s331 + $0x78] sm:$0xff] %v3658
      %3741 = vst [vmem:[%s331 + $0x80] sm:$0xff] %v3663
      %3742 = vst [vmem:[%s331 + $0x88] sm:$0xff] %v3666
      %3743 = vst [vmem:[%s331 + $0x90] sm:$0xff] %v3671
      %3744 = vst [vmem:[%s331 + $0x98] sm:$0xff] %v3674
      %3745 = vst [vmem:[%s331 + $0xa0] sm:$0xff] %v3679
      %3746 = vst [vmem:[%s331 + $0xa8] sm:$0xff] %v3682
      %3747 = vst [vmem:[%s331 + $0xb0] sm:$0xff] %v3687
      %3748 = vst [vmem:[%s331 + $0xb8] sm:$0xff] %v3690
      %3749 = vst [vmem:[%s331 + $0xc0] sm:$0xff] %v3695
      %3750 = vst [vmem:[%s331 + $0xc8] sm:$0xff] %v3698
      %3751 = vst [vmem:[%s331 + $0xd0] sm:$0xff] %v3703
      %3752 = vst [vmem:[%s331 + $0xd8] sm:$0xff] %v3706
      %3753 = vst [vmem:[%s331 + $0xe0] sm:$0xff] %v3711
      %3754 = vst [vmem:[%s331 + $0xe8] sm:$0xff] %v3714
      %3755 = vst [vmem:[%s331 + $0xf0] sm:$0xff] %v3719
      %3756 = vst [vmem:[%s331 + $0xf8] sm:$0xff] %v3722
      %s3757 = smul.u32 32, %s22
      %p3758 = scmp.lt.s32.totalorder %s3757, 63
      %s3759 = scalar_select %p3758, %s3757, 63
      %p3760 = scmp.lt.s32.totalorder %s23, 0
      %s3761 = scalar_select %p3760, %s23, 0
      %s3762 = sadd.s32 %s3761, %s3759
      %s3763 = smul.addr %s3762, 8
      %s3764 = scalar_lea.vmem %s7, %s3763
      // Predicated region
      $region53: #{tsom_forward.1} parent=47 // pred_check
        %p3765 = pneg %p212
      $region54: #{tsom_forward.1} parent=47 // pred_check_branch
        %3767 = sbr.rel (%p3765) target = $region56
      $region55: #{tsom_forward.1} parent=47 // pred_region
        %s3768 = smul.u32 32, %s22
      $region56: #{tsom_forward.1} parent=47 // pred_fallthru
        _
    $region48: #{tsom_forward.1} parent=5 // pred_fallthru
      _
    %p3769 = scmp.le.s32.totalorder 2, %s13
    // Predicated region
    $region57: #{tsom_forward.1} parent=5 // pred_check
      %p3770 = pneg %p3769
    $region58: #{tsom_forward.1} parent=5 // pred_check_branch
      %3772 = sbr.rel (%p3770) target = $region60
    $region59: #{tsom_forward.1} parent=5 // pred_region
      %s3773 = ssub.s32 %s13, 2
      // Predicated region
      $region61: #{tsom_forward.1} parent=59 // pred_check
        %p3774 = pneg %p218
      $region62: #{tsom_forward.1} parent=59 // pred_check_branch
        %3776 = sbr.rel (%p3774) target = $region64
      $region63: #{tsom_forward.1} parent=59 // pred_region
        %s3777 = smul.u32 32, %s24
        %p3778 = scmp.lt.s32.totalorder %s3777, 63
        %s3779 = scalar_select %p3778, %s3777, 63
        %p3780 = scmp.lt.s32.totalorder %s25, 0
        %s3781 = scalar_select %p3780, %s25, 0
        %s3782 = sadd.s32 %s3781, %s3779
        %s3783 = smul.addr %s3782, 8
        %s3784 = scalar_lea.vmem %s7, %s3783
      $region64: #{tsom_forward.1} parent=59 // pred_fallthru
        _
    $region60: #{tsom_forward.1} parent=5 // pred_fallthru
      _
  $region6: #{tsom_forward.1} parent=0 // loop_footer
    %s17 = sadd.s32 1, %s13
  $region7: #{tsom_forward.1} parent=0 // loop_footer_branch
    %12 = sbr.rel target = $region3
  $region8: #{tsom_forward.1} parent=0 // loop_exit
    _

</llo_original>
